<compile_context>
chip_gen: v6e
topology: v6e:2x2x1
jax: 0.10.0
libtpu: 0.0.40
codegen_flags: <defaults>
</compile_context>

<pallas_src>
import functools

import jax
import jax.numpy as jnp
from jax.experimental import pallas as pl
from jax.experimental.pallas import tpu as pltpu

_VMEM_LIMIT = 48 * 1024 * 1024   # fits v7x's 64 MiB physical VMEM with headroom
_BN_EPS = 1e-5
_LEAKY_SLOPE = 0.2


# ----------------------------------------------------------------------------
# Kernel 1: fused  y = act( BatchNorm1d( x @ w ) )  for the Linear units.
# grid = (N_tiles, K_tiles); K (reduction) is the last, "arbitrary" axis.
# ----------------------------------------------------------------------------
def _mm_bn_act_kernel(x_ref, w_ref, g_ref, beta_ref, o_ref, acc_ref, *, act):
    k = pl.program_id(1)

    @pl.when(k == 0)
    def _():
        acc_ref[...] = jnp.zeros_like(acc_ref)

    acc_ref[...] += jnp.dot(x_ref[...], w_ref[...],
                            preferred_element_type=jnp.float32)

    @pl.when(k == pl.num_programs(1) - 1)
    def _():
        y = acc_ref[...]
        # Training-mode BatchNorm1d: batch statistics per output column.
        # One-pass variance E[y^2] - E[y]^2 (single cross-sublane reduction).
        mean = jnp.mean(y, axis=0, keepdims=True)
        var = jnp.maximum(
            jnp.mean(y * y, axis=0, keepdims=True) - mean * mean, 0.0)
        y = (y - mean) * jax.lax.rsqrt(var + _BN_EPS) * g_ref[...] + beta_ref[...]
        if act == "leaky":
            y = jnp.where(y > 0, y, _LEAKY_SLOPE * y)
        else:  # "tanh"
            y = jnp.tanh(y)
        o_ref[...] = y.astype(o_ref.dtype)


def _pick_tile(dim, target):
    if dim <= target:
        return dim
    t = target
    while dim % t:
        t //= 2
    return t


def mm_bn_act(x, w, gamma, beta, act, out_dtype=jnp.float32):
    """act(batchnorm(x @ w)) with N/K tiling, bf16 MXU operands, f32 BN math."""
    M, K = x.shape
    K2, N = w.shape
    assert K == K2
    tk = _pick_tile(K, 512)   # TODO(synk): sweep TILE_K up to 2048 for very large K.
    tn = _pick_tile(N, 256)
    nn, nk = N // tn, K // tk

    kernel = functools.partial(_mm_bn_act_kernel, act=act)
    cost = pl.CostEstimate(
        flops=2 * M * K * N,
        transcendentals=M * N if act == "tanh" else 0,
        bytes_accessed=2 * (M * K + K * N)
        + M * N * jnp.dtype(out_dtype).itemsize + 8 * N,
    )
    return pl.pallas_call(
        kernel,
        out_shape=jax.ShapeDtypeStruct((M, N), out_dtype),
        grid_spec=pltpu.PrefetchScalarGridSpec(
            num_scalar_prefetch=0,
            grid=(nn, nk),
            in_specs=[
                pl.BlockSpec((M, tk), lambda n, k: (0, k)),
                pl.BlockSpec((tk, tn), lambda n, k: (k, n)),
                pl.BlockSpec((1, tn), lambda n, k: (0, n)),
                pl.BlockSpec((1, tn), lambda n, k: (0, n)),
            ],
            out_specs=pl.BlockSpec((M, tn), lambda n, k: (0, n)),
            scratch_shapes=[pltpu.VMEM((M, tn), jnp.float32)],
        ),
        compiler_params=pltpu.CompilerParams(
            dimension_semantics=("parallel", "arbitrary"),
            vmem_limit_bytes=_VMEM_LIMIT,
        ),
        cost_estimate=cost,
    )(
        x.astype(jnp.bfloat16),
        w.astype(jnp.bfloat16),
        gamma.reshape(1, N).astype(jnp.float32),
        beta.reshape(1, N).astype(jnp.float32),
    )


# ----------------------------------------------------------------------------
# Kernel 2: 3x3 convolution (pre-BN) + per-channel BN statistic accumulation.
# Grid over batch ("arbitrary" so the stats scratch accumulates across it).
# The input arrives padded (and phase-decomposed for stride 2) so that every
# tap is a unit-stride static slice; the 9 taps are concatenated into an
# in-VMEM im2col operand and contracted with a single MXU matmul.
# ----------------------------------------------------------------------------
def _conv3x3_kernel(xph_ref, w_ref, o_ref, stats_ref, sum_ref,
                    *, stride, hp, ho, wo):
    b = pl.program_id(0)

    @pl.when(b == 0)
    def _():
        sum_ref[...] = jnp.zeros_like(sum_ref)

    cin = xph_ref.shape[-1]
    xin = xph_ref[0]                         # (P*Hp, Wp, Cin)  bf16
    w = w_ref[...]                           # (9*Cin, Cout)    bf16

    cols = []
    for di in range(3):
        for dj in range(3):
            p = (di % stride) * stride + (dj % stride)
            r0 = p * hp + di // stride
            c0 = dj // stride
            cols.append(xin[r0:r0 + ho, c0:c0 + wo, :])          # (ho, wo, Cin)
    lhs = jnp.concatenate(cols, axis=-1).reshape(ho * wo, 9 * cin)

    acc = jnp.dot(lhs, w, preferred_element_type=jnp.float32)    # (ho*wo, Cout)
    o_ref[0] = acc.astype(o_ref.dtype)

    # Partial per-channel sums for training-mode BatchNorm2d statistics.
    sum_ref[0:1, :] += jnp.sum(acc, axis=0, keepdims=True)
    sum_ref[1:2, :] += jnp.sum(acc * acc, axis=0, keepdims=True)

    @pl.when(b == pl.num_programs(0) - 1)
    def _():
        stats_ref[...] = sum_ref[...]


# ----------------------------------------------------------------------------
# Kernel 3: element-wise folded BatchNorm2d (scale/shift) + LeakyReLU(0.2).
# ----------------------------------------------------------------------------
def _bn_act_kernel(x_ref, scale_ref, shift_ref, o_ref):
    y = x_ref[0] * scale_ref[...] + shift_ref[...]
    o_ref[0] = jnp.where(y > 0, y, _LEAKY_SLOPE * y).astype(o_ref.dtype)


def conv_unit(x_nhwc, w_oikk, gamma, beta, stride):
    """ConvUnit: Conv2d(3x3, stride, pad=1) -> BatchNorm2d -> LeakyReLU(0.2)."""
    B, H, W, Cin = x_nhwc.shape
    Cout = w_oikk.shape[0]
    Ho = (H + 2 - 3) // stride + 1
    Wo = (W + 2 - 3) // stride + 1

    xpad = jnp.pad(x_nhwc.astype(jnp.bfloat16),
                   ((0, 0), (1, 1), (1, 1), (0, 0)))
    if stride == 1:
        phases = xpad[:, None]                                # (B,1,H+2,W+2,Cin)
    else:
        # stride 2: split the padded input into its 4 spatial phases so the
        # kernel only ever performs unit-stride slicing.
        phases = jnp.stack(
            [xpad[:, pr::2, pc::2, :] for pr in range(2) for pc in range(2)],
            axis=1)                                           # (B,4,Ho+1,Wo+1,Cin)
    P, Hp, Wp = phases.shape[1:4]
    phases = phases.reshape(B, P * Hp, Wp, Cin)

    # PyTorch conv weight (Cout, Cin, 3, 3) -> (9*Cin, Cout), tap-major to
    # match the in-kernel im2col column order.
    w_mat = jnp.transpose(w_oikk, (2, 3, 1, 0)).reshape(9 * Cin, Cout)

    kernel = functools.partial(_conv3x3_kernel,
                               stride=stride, hp=Hp, ho=Ho, wo=Wo)
    conv_out, stats = pl.pallas_call(
        kernel,
        out_shape=(jax.ShapeDtypeStruct((B, Ho * Wo, Cout), jnp.float32),
                   jax.ShapeDtypeStruct((2, Cout), jnp.float32)),
        grid_spec=pltpu.PrefetchScalarGridSpec(
            num_scalar_prefetch=0,
            grid=(B,),
            in_specs=[
                pl.BlockSpec((1, P * Hp, Wp, Cin), lambda b: (b, 0, 0, 0)),
                pl.BlockSpec((9 * Cin, Cout), lambda b: (0, 0)),
            ],
            out_specs=(
                pl.BlockSpec((1, Ho * Wo, Cout), lambda b: (b, 0, 0)),
                pl.BlockSpec((2, Cout), lambda b: (0, 0)),
            ),
            scratch_shapes=[pltpu.VMEM((2, Cout), jnp.float32)],
        ),
        compiler_params=pltpu.CompilerParams(
            # Stats accumulate across the batch axis -> must stay "arbitrary".
            dimension_semantics=("arbitrary",),
            vmem_limit_bytes=_VMEM_LIMIT,
        ),
    )(phases, w_mat.astype(jnp.bfloat16))

    # Fold training-mode BatchNorm2d (biased variance) into scale / shift.
    cnt = float(B * Ho * Wo)
    mean = stats[0] / cnt
    var = jnp.maximum(stats[1] / cnt - mean * mean, 0.0)
    scale = gamma * jax.lax.rsqrt(var + _BN_EPS)
    shift = beta - mean * scale

    act = pl.pallas_call(
        _bn_act_kernel,
        out_shape=jax.ShapeDtypeStruct((B, Ho * Wo, Cout), jnp.bfloat16),
        grid_spec=pltpu.PrefetchScalarGridSpec(
            num_scalar_prefetch=0,
            grid=(B,),
            in_specs=[
                pl.BlockSpec((1, Ho * Wo, Cout), lambda b: (b, 0, 0)),
                pl.BlockSpec((1, Cout), lambda b: (0, 0)),
                pl.BlockSpec((1, Cout), lambda b: (0, 0)),
            ],
            out_specs=pl.BlockSpec((1, Ho * Wo, Cout), lambda b: (b, 0, 0)),
        ),
        compiler_params=pltpu.CompilerParams(
            dimension_semantics=("parallel",),
            vmem_limit_bytes=_VMEM_LIMIT,
        ),
    )(conv_out,
      scale.reshape(1, Cout).astype(jnp.float32),
      shift.reshape(1, Cout).astype(jnp.float32))
    # TODO(synk): pack W into the lane dim ((B, Ho, Wo*Cout) stores) to avoid
    # masked partial stores when Cout < 128, and fuse this BN+LeakyReLU pass
    # into the consumer kernel.
    return act.reshape(B, Ho, Wo, Cout)


# ----------------------------------------------------------------------------
# Parameters (deterministic, in-script).  Conv/Linear biases are omitted: they
# are cancelled exactly by the training-mode BatchNorm that follows them.
# ----------------------------------------------------------------------------
def init_params(key, *, p_dim, p0_dim, conv_dim, in_channels, step, in_size):
    fcs = in_size // 2
    shapes = {
        "conv1": (step // 4, in_channels, 3, 3),     # PyTorch (Cout, Cin, kh, kw)
        "conv2": (step, step // 4, 3, 3),
        "fc0": (step * fcs * fcs, conv_dim * 2),     # (in, out); in rows in NCHW order
        "fc1": (conv_dim * 2, conv_dim),
        "fc_1": (conv_dim, p0_dim),
        "fc_2": (p0_dim, p0_dim),
        "fc_3": (p0_dim, p_dim),
    }
    params = {}
    for name, shape in shapes.items():
        key, kw = jax.random.split(key)
        out_features = shape[0] if name.startswith("conv") else shape[1]
        params[name] = {
            "w": 0.05 * jax.random.normal(kw, shape, jnp.float32),
            "gamma": jnp.ones((out_features,), jnp.float32),
            "beta": jnp.zeros((out_features,), jnp.float32),
        }
    return params


# ----------------------------------------------------------------------------
# Full forward pass (matches Encoder_Network.forward semantics).
# ----------------------------------------------------------------------------
def encoder_forward(x, params, *, in_channels, in_size, step):
    fcs = in_size // 2
    # x.view(-1, C, H, W) in PyTorch (NCHW); we compute in NHWC.
    x = x.reshape(-1, in_channels, in_size, in_size).astype(jnp.float32)
    h = jnp.transpose(x, (0, 2, 3, 1))

    p = params["conv1"]
    h = conv_unit(h, p["w"], p["gamma"], p["beta"], stride=1)
    p = params["conv2"]
    h = conv_unit(h, p["w"], p["gamma"], p["beta"], stride=2)   # (B, fcs, fcs, step)

    # PyTorch flattens NCHW (x.view(-1, step*fcs*fcs)).  Instead of transposing
    # the activations we permute fc0's weight rows once:
    #   c*fcs*fcs + i*fcs + j  ->  i*fcs*step + j*step + c
    h = h.reshape(-1, fcs * fcs * step)
    w0 = params["fc0"]["w"].reshape(step, fcs, fcs, -1)
    w0 = jnp.transpose(w0, (1, 2, 0, 3)).reshape(step * fcs * fcs, -1)

    h = mm_bn_act(h, w0, params["fc0"]["gamma"], params["fc0"]["beta"],
                  act="leaky", out_dtype=jnp.bfloat16)
    for name in ("fc1", "fc_1", "fc_2"):
        p = params[name]
        h = mm_bn_act(h, p["w"], p["gamma"], p["beta"], act="leaky",
                      out_dtype=jnp.bfloat16)
    p = params["fc_3"]
    return mm_bn_act(h, p["w"], p["gamma"], p["beta"], act="tanh",
                     out_dtype=jnp.float32)


if __name__ == "__main__":
    # Small configuration consistent with the module (scaled down from
    # p_dim=128, step=64, in_size=64).
    cfg = dict(p_dim=32, p0_dim=32, conv_dim=32, in_channels=3, step=16,
               in_size=16)
    batch = 2

    key = jax.random.PRNGKey(0)
    key, kx = jax.random.split(key)
    x = jax.random.normal(
        kx, (batch, cfg["in_channels"], cfg["in_size"], cfg["in_size"]),
        jnp.float32)
    params = init_params(key, **cfg)

    fwd = jax.jit(functools.partial(
        encoder_forward, in_channels=cfg["in_channels"],
        in_size=cfg["in_size"], step=cfg["step"]))
    z = jax.block_until_ready(fwd(x, params))

    assert z.shape == (batch, cfg["p_dim"]), z.shape
    assert bool(jnp.all(jnp.isfinite(z)))
    assert bool(jnp.all(jnp.abs(z) <= 1.0))   # fc_3 ends in Tanh
    print("KERNEL_OK")
</pallas_src>

<mosaic_0001>
module attributes {stable_mosaic.version = 11 : i64} {
  func.func @_conv3x3_kernel(%arg0: i32, %arg1: memref<1x18x18x3xbf16, #tpu.memory_space<vmem>>, %arg2: memref<27x4xbf16, #tpu.memory_space<vmem>>, %arg3: memref<1x256x4xf32, #tpu.memory_space<vmem>>, %arg4: memref<2x4xf32, #tpu.memory_space<vmem>>, %arg5: memref<2x4xf32, #tpu.memory_space<vmem>>) attributes {dimension_semantics = [#tpu.dimension_semantics<arbitrary>], iteration_bounds = array<i64: 2>, scalar_prefetch = 0 : i64, scratch_operands = 1 : i64, tpu.core_type = #tpu.core_type<tc>, window_params = [{transform_indices = @transform_0, window_bounds = array<i64: 1, 18, 18, 3>}, {pipeline_mode = #tpu.pipeline_mode<synchronous>, transform_indices = @transform_1, window_bounds = array<i64: 27, 4>}, {transform_indices = @transform_2, window_bounds = array<i64: 1, 256, 4>}, {pipeline_mode = #tpu.pipeline_mode<synchronous>, transform_indices = @transform_3, window_bounds = array<i64: 2, 4>}]} {
    %c0_i32 = arith.constant 0 : i32
    %0 = arith.cmpi eq, %arg0, %c0_i32 : i32
    %1 = arith.extui %0 : i1 to i32
    %c0_i32_0 = arith.constant 0 : i32
    %2 = arith.cmpi ne, %1, %c0_i32_0 : i32
    scf.if %2 {
      %cst_19 = arith.constant 0.000000e+00 : f32
      %35 = vector.broadcast %cst_19 : f32 to vector<2x4xf32>
      %c0_20 = arith.constant 0 : index
      %c0_21 = arith.constant 0 : index
      %36 = vector.load %arg5[%c0_20, %c0_21] : memref<2x4xf32, #tpu.memory_space<vmem>>, vector<2x4xf32>
      tpu.vector_store %arg5[%c0_20, %c0_21], %35 {strides = array<i32>} : memref<2x4xf32, #tpu.memory_space<vmem>>, vector<2x4xf32>,
    } else {
    }
    %c0 = arith.constant 0 : index
    %c0_1 = arith.constant 0 : index
    %c0_2 = arith.constant 0 : index
    %c0_3 = arith.constant 0 : index
    %3 = vector.load %arg1[%c0, %c0_1, %c0_2, %c0_3] : memref<1x18x18x3xbf16, #tpu.memory_space<vmem>>, vector<1x18x18x3xbf16>
    %4 = vector.shape_cast %3 : vector<1x18x18x3xbf16> to vector<18x18x3xbf16>
    %c0_4 = arith.constant 0 : index
    %c0_5 = arith.constant 0 : index
    %5 = vector.load %arg2[%c0_4, %c0_5] : memref<27x4xbf16, #tpu.memory_space<vmem>>, vector<27x4xbf16>
    %6 = vector.extract_strided_slice %4 {offsets = [0, 0, 0], sizes = [16, 16, 3], strides = [1, 1, 1]} : vector<18x18x3xbf16> to vector<16x16x3xbf16>
    %7 = vector.extract_strided_slice %4 {offsets = [0, 1, 0], sizes = [16, 16, 3], strides = [1, 1, 1]} : vector<18x18x3xbf16> to vector<16x16x3xbf16>
    %8 = vector.extract_strided_slice %4 {offsets = [0, 2, 0], sizes = [16, 16, 3], strides = [1, 1, 1]} : vector<18x18x3xbf16> to vector<16x16x3xbf16>
    %9 = vector.extract_strided_slice %4 {offsets = [1, 0, 0], sizes = [16, 16, 3], strides = [1, 1, 1]} : vector<18x18x3xbf16> to vector<16x16x3xbf16>
    %10 = vector.extract_strided_slice %4 {offsets = [1, 1, 0], sizes = [16, 16, 3], strides = [1, 1, 1]} : vector<18x18x3xbf16> to vector<16x16x3xbf16>
    %11 = vector.extract_strided_slice %4 {offsets = [1, 2, 0], sizes = [16, 16, 3], strides = [1, 1, 1]} : vector<18x18x3xbf16> to vector<16x16x3xbf16>
    %12 = vector.extract_strided_slice %4 {offsets = [2, 0, 0], sizes = [16, 16, 3], strides = [1, 1, 1]} : vector<18x18x3xbf16> to vector<16x16x3xbf16>
    %13 = vector.extract_strided_slice %4 {offsets = [2, 1, 0], sizes = [16, 16, 3], strides = [1, 1, 1]} : vector<18x18x3xbf16> to vector<16x16x3xbf16>
    %14 = vector.extract_strided_slice %4 {offsets = [2, 2, 0], sizes = [16, 16, 3], strides = [1, 1, 1]} : vector<18x18x3xbf16> to vector<16x16x3xbf16>
    %15 = tpu.concatenate %6, %7, %8, %9, %10, %11, %12, %13, %14 in 2 : vector<16x16x3xbf16>, vector<16x16x3xbf16>, vector<16x16x3xbf16>, vector<16x16x3xbf16>, vector<16x16x3xbf16>, vector<16x16x3xbf16>, vector<16x16x3xbf16>, vector<16x16x3xbf16>, vector<16x16x3xbf16> -> vector<16x16x27xbf16>
    %16 = vector.shape_cast %15 : vector<16x16x27xbf16> to vector<256x27xbf16>
    %cst = arith.constant dense<0.000000e+00> : vector<256x4xf32>
    %17 = tpu.matmul %16, %5, %cst {dimension_numbers = #tpu.dot_dimension_numbers<[1], [0], [0], [1], [0, 0, 1, 1], [], []>} : vector<256x27xbf16>, vector<27x4xbf16>, vector<256x4xf32> -> vector<256x4xf32>
    %c0_6 = arith.constant 0 : index
    %c0_7 = arith.constant 0 : index
    %c0_8 = arith.constant 0 : index
    %18 = vector.load %arg3[%c0_6, %c0_7, %c0_8] : memref<1x256x4xf32, #tpu.memory_space<vmem>>, vector<1x256x4xf32>
    %19 = vector.shape_cast %18 : vector<1x256x4xf32> to vector<256x4xf32>
    %20 = vector.shape_cast %17 : vector<256x4xf32> to vector<1x256x4xf32>
    tpu.vector_store %arg3[%c0_6, %c0_7, %c0_8], %20 {strides = array<i32>} : memref<1x256x4xf32, #tpu.memory_space<vmem>>, vector<1x256x4xf32>,
    %c0_9 = arith.constant 0 : index
    %c0_10 = arith.constant 0 : index
    %21 = vector.load %arg5[%c0_9, %c0_10] : memref<2x4xf32, #tpu.memory_space<vmem>>, vector<1x4xf32>
    %cst_11 = arith.constant dense<0.000000e+00> : vector<4xf32>
    %22 = vector.multi_reduction <add>, %17, %cst_11 [0] : vector<256x4xf32> to vector<4xf32>
    %23 = vector.shape_cast %22 : vector<4xf32> to vector<1x4xf32>
    %24 = arith.addf %21, %23 : vector<1x4xf32>
    %c0_12 = arith.constant 0 : index
    %c0_13 = arith.constant 0 : index
    %25 = vector.load %arg5[%c0_12, %c0_13] : memref<2x4xf32, #tpu.memory_space<vmem>>, vector<1x4xf32>
    tpu.vector_store %arg5[%c0_12, %c0_13], %24 {strides = array<i32>} : memref<2x4xf32, #tpu.memory_space<vmem>>, vector<1x4xf32>,
    %c1 = arith.constant 1 : index
    %c0_14 = arith.constant 0 : index
    %26 = vector.load %arg5[%c1, %c0_14] : memref<2x4xf32, #tpu.memory_space<vmem>>, vector<1x4xf32>
    %27 = arith.mulf %17, %17 : vector<256x4xf32>
    %cst_15 = arith.constant dense<0.000000e+00> : vector<4xf32>
    %28 = vector.multi_reduction <add>, %27, %cst_15 [0] : vector<256x4xf32> to vector<4xf32>
    %29 = vector.shape_cast %28 : vector<4xf32> to vector<1x4xf32>
    %30 = arith.addf %26, %29 : vector<1x4xf32>
    %c1_16 = arith.constant 1 : index
    %c0_17 = arith.constant 0 : index
    %31 = vector.load %arg5[%c1_16, %c0_17] : memref<2x4xf32, #tpu.memory_space<vmem>>, vector<1x4xf32>
    tpu.vector_store %arg5[%c1_16, %c0_17], %30 {strides = array<i32>} : memref<2x4xf32, #tpu.memory_space<vmem>>, vector<1x4xf32>,
    %c1_i32 = arith.constant 1 : i32
    %32 = arith.cmpi eq, %arg0, %c1_i32 : i32
    %33 = arith.extui %32 : i1 to i32
    %c0_i32_18 = arith.constant 0 : i32
    %34 = arith.cmpi ne, %33, %c0_i32_18 : i32
    scf.if %34 {
      %c0_19 = arith.constant 0 : index
      %c0_20 = arith.constant 0 : index
      %35 = vector.load %arg5[%c0_19, %c0_20] : memref<2x4xf32, #tpu.memory_space<vmem>>, vector<2x4xf32>
      %c0_21 = arith.constant 0 : index
      %c0_22 = arith.constant 0 : index
      %36 = vector.load %arg4[%c0_21, %c0_22] : memref<2x4xf32, #tpu.memory_space<vmem>>, vector<2x4xf32>
      tpu.vector_store %arg4[%c0_21, %c0_22], %35 {strides = array<i32>} : memref<2x4xf32, #tpu.memory_space<vmem>>, vector<2x4xf32>,
    } else {
    }
    return
  }
  func.func @transform_0(%arg0: i32) -> (i32, i32, i32, i32) {
    %c0_i32 = arith.constant 0 : i32
    %c0_i32_0 = arith.constant 0 : i32
    %c0_i32_1 = arith.constant 0 : i32
    %c0_i32_2 = arith.constant 0 : i32
    return %arg0, %c0_i32, %c0_i32_0, %c0_i32_1 : i32, i32, i32, i32
  }
  func.func @transform_1(%arg0: i32) -> (i32, i32) {
    %c0_i32 = arith.constant 0 : i32
    %c0_i32_0 = arith.constant 0 : i32
    %c0_i32_1 = arith.constant 0 : i32
    return %c0_i32, %c0_i32_0 : i32, i32
  }
  func.func @transform_2(%arg0: i32) -> (i32, i32, i32) {
    %c0_i32 = arith.constant 0 : i32
    %c0_i32_0 = arith.constant 0 : i32
    %c0_i32_1 = arith.constant 0 : i32
    return %arg0, %c0_i32, %c0_i32_0 : i32, i32, i32
  }
  func.func @transform_3(%arg0: i32) -> (i32, i32) {
    %c0_i32 = arith.constant 0 : i32
    %c0_i32_0 = arith.constant 0 : i32
    %c0_i32_1 = arith.constant 0 : i32
    return %c0_i32, %c0_i32_0 : i32, i32
  }
}

module attributes {stable_mosaic.version = 11 : i64} {
  func.func @_bn_act_kernel(%arg0: i32, %arg1: memref<1x256x4xf32, #tpu.memory_space<vmem>>, %arg2: memref<1x4xf32, #tpu.memory_space<vmem>>, %arg3: memref<1x4xf32, #tpu.memory_space<vmem>>, %arg4: memref<1x256x4xbf16, #tpu.memory_space<vmem>>) attributes {dimension_semantics = [#tpu.dimension_semantics<parallel>], iteration_bounds = array<i64: 2>, scalar_prefetch = 0 : i64, scratch_operands = 0 : i64, tpu.core_type = #tpu.core_type<tc>, window_params = [{transform_indices = @transform_0, window_bounds = array<i64: 1, 256, 4>}, {pipeline_mode = #tpu.pipeline_mode<synchronous>, transform_indices = @transform_1, window_bounds = array<i64: 1, 4>}, {pipeline_mode = #tpu.pipeline_mode<synchronous>, transform_indices = @transform_2, window_bounds = array<i64: 1, 4>}, {transform_indices = @transform_3, window_bounds = array<i64: 1, 256, 4>}]} {
    %c0 = arith.constant 0 : index
    %c0_0 = arith.constant 0 : index
    %c0_1 = arith.constant 0 : index
    %0 = vector.load %arg1[%c0, %c0_0, %c0_1] : memref<1x256x4xf32, #tpu.memory_space<vmem>>, vector<1x256x4xf32>
    %1 = vector.shape_cast %0 : vector<1x256x4xf32> to vector<256x4xf32>
    %c0_2 = arith.constant 0 : index
    %c0_3 = arith.constant 0 : index
    %2 = vector.load %arg2[%c0_2, %c0_3] : memref<1x4xf32, #tpu.memory_space<vmem>>, vector<1x4xf32>
    %3 = vector.broadcast %2 : vector<1x4xf32> to vector<256x4xf32>
    %4 = arith.mulf %1, %3 : vector<256x4xf32>
    %c0_4 = arith.constant 0 : index
    %c0_5 = arith.constant 0 : index
    %5 = vector.load %arg3[%c0_4, %c0_5] : memref<1x4xf32, #tpu.memory_space<vmem>>, vector<1x4xf32>
    %6 = vector.broadcast %5 : vector<1x4xf32> to vector<256x4xf32>
    %7 = arith.addf %4, %6 : vector<256x4xf32>
    %cst = arith.constant 0.000000e+00 : f32
    %8 = vector.broadcast %cst : f32 to vector<256x4xf32>
    %9 = arith.cmpf ogt, %7, %8 : vector<256x4xf32>
    %cst_6 = arith.constant 2.000000e-01 : f32
    %10 = vector.broadcast %cst_6 : f32 to vector<256x4xf32>
    %11 = arith.mulf %10, %7 : vector<256x4xf32>
    %12 = arith.select %9, %7, %11 : vector<256x4xi1>, vector<256x4xf32>
    %13 = arith.truncf %12 : vector<256x4xf32> to vector<256x4xbf16>
    %c0_7 = arith.constant 0 : index
    %c0_8 = arith.constant 0 : index
    %c0_9 = arith.constant 0 : index
    %14 = vector.load %arg4[%c0_7, %c0_8, %c0_9] : memref<1x256x4xbf16, #tpu.memory_space<vmem>>, vector<1x256x4xbf16>
    %15 = vector.shape_cast %14 : vector<1x256x4xbf16> to vector<256x4xbf16>
    %16 = vector.shape_cast %13 : vector<256x4xbf16> to vector<1x256x4xbf16>
    tpu.vector_store %arg4[%c0_7, %c0_8, %c0_9], %16 {strides = array<i32>} : memref<1x256x4xbf16, #tpu.memory_space<vmem>>, vector<1x256x4xbf16>,
    return
  }
  func.func @transform_0(%arg0: i32) -> (i32, i32, i32) {
    %c0_i32 = arith.constant 0 : i32
    %c0_i32_0 = arith.constant 0 : i32
    %c0_i32_1 = arith.constant 0 : i32
    return %arg0, %c0_i32, %c0_i32_0 : i32, i32, i32
  }
  func.func @transform_1(%arg0: i32) -> (i32, i32) {
    %c0_i32 = arith.constant 0 : i32
    %c0_i32_0 = arith.constant 0 : i32
    %c0_i32_1 = arith.constant 0 : i32
    return %c0_i32, %c0_i32_0 : i32, i32
  }
  func.func @transform_2(%arg0: i32) -> (i32, i32) {
    %c0_i32 = arith.constant 0 : i32
    %c0_i32_0 = arith.constant 0 : i32
    %c0_i32_1 = arith.constant 0 : i32
    return %c0_i32, %c0_i32_0 : i32, i32
  }
  func.func @transform_3(%arg0: i32) -> (i32, i32, i32) {
    %c0_i32 = arith.constant 0 : i32
    %c0_i32_0 = arith.constant 0 : i32
    %c0_i32_1 = arith.constant 0 : i32
    return %arg0, %c0_i32, %c0_i32_0 : i32, i32, i32
  }
}

module attributes {stable_mosaic.version = 11 : i64} {
  func.func @_conv3x3_kernel(%arg0: i32, %arg1: memref<1x36x9x4xbf16, #tpu.memory_space<vmem>>, %arg2: memref<36x16xbf16, #tpu.memory_space<vmem>>, %arg3: memref<1x64x16xf32, #tpu.memory_space<vmem>>, %arg4: memref<2x16xf32, #tpu.memory_space<vmem>>, %arg5: memref<2x16xf32, #tpu.memory_space<vmem>>) attributes {dimension_semantics = [#tpu.dimension_semantics<arbitrary>], iteration_bounds = array<i64: 2>, scalar_prefetch = 0 : i64, scratch_operands = 1 : i64, tpu.core_type = #tpu.core_type<tc>, window_params = [{transform_indices = @transform_0, window_bounds = array<i64: 1, 36, 9, 4>}, {pipeline_mode = #tpu.pipeline_mode<synchronous>, transform_indices = @transform_1, window_bounds = array<i64: 36, 16>}, {transform_indices = @transform_2, window_bounds = array<i64: 1, 64, 16>}, {pipeline_mode = #tpu.pipeline_mode<synchronous>, transform_indices = @transform_3, window_bounds = array<i64: 2, 16>}]} {
    %c0_i32 = arith.constant 0 : i32
    %0 = arith.cmpi eq, %arg0, %c0_i32 : i32
    %1 = arith.extui %0 : i1 to i32
    %c0_i32_0 = arith.constant 0 : i32
    %2 = arith.cmpi ne, %1, %c0_i32_0 : i32
    scf.if %2 {
      %cst_19 = arith.constant 0.000000e+00 : f32
      %35 = vector.broadcast %cst_19 : f32 to vector<2x16xf32>
      %c0_20 = arith.constant 0 : index
      %c0_21 = arith.constant 0 : index
      %36 = vector.load %arg5[%c0_20, %c0_21] : memref<2x16xf32, #tpu.memory_space<vmem>>, vector<2x16xf32>
      tpu.vector_store %arg5[%c0_20, %c0_21], %35 {strides = array<i32>} : memref<2x16xf32, #tpu.memory_space<vmem>>, vector<2x16xf32>,
    } else {
    }
    %c0 = arith.constant 0 : index
    %c0_1 = arith.constant 0 : index
    %c0_2 = arith.constant 0 : index
    %c0_3 = arith.constant 0 : index
    %3 = vector.load %arg1[%c0, %c0_1, %c0_2, %c0_3] : memref<1x36x9x4xbf16, #tpu.memory_space<vmem>>, vector<1x36x9x4xbf16>
    %4 = vector.shape_cast %3 : vector<1x36x9x4xbf16> to vector<36x9x4xbf16>
    %c0_4 = arith.constant 0 : index
    %c0_5 = arith.constant 0 : index
    %5 = vector.load %arg2[%c0_4, %c0_5] : memref<36x16xbf16, #tpu.memory_space<vmem>>, vector<36x16xbf16>
    %6 = vector.extract_strided_slice %4 {offsets = [0, 0, 0], sizes = [8, 8, 4], strides = [1, 1, 1]} : vector<36x9x4xbf16> to vector<8x8x4xbf16>
    %7 = vector.extract_strided_slice %4 {offsets = [9, 0, 0], sizes = [8, 8, 4], strides = [1, 1, 1]} : vector<36x9x4xbf16> to vector<8x8x4xbf16>
    %8 = vector.extract_strided_slice %4 {offsets = [0, 1, 0], sizes = [8, 8, 4], strides = [1, 1, 1]} : vector<36x9x4xbf16> to vector<8x8x4xbf16>
    %9 = vector.extract_strided_slice %4 {offsets = [18, 0, 0], sizes = [8, 8, 4], strides = [1, 1, 1]} : vector<36x9x4xbf16> to vector<8x8x4xbf16>
    %10 = vector.extract_strided_slice %4 {offsets = [27, 0, 0], sizes = [8, 8, 4], strides = [1, 1, 1]} : vector<36x9x4xbf16> to vector<8x8x4xbf16>
    %11 = vector.extract_strided_slice %4 {offsets = [18, 1, 0], sizes = [8, 8, 4], strides = [1, 1, 1]} : vector<36x9x4xbf16> to vector<8x8x4xbf16>
    %12 = vector.extract_strided_slice %4 {offsets = [1, 0, 0], sizes = [8, 8, 4], strides = [1, 1, 1]} : vector<36x9x4xbf16> to vector<8x8x4xbf16>
    %13 = vector.extract_strided_slice %4 {offsets = [10, 0, 0], sizes = [8, 8, 4], strides = [1, 1, 1]} : vector<36x9x4xbf16> to vector<8x8x4xbf16>
    %14 = vector.extract_strided_slice %4 {offsets = [1, 1, 0], sizes = [8, 8, 4], strides = [1, 1, 1]} : vector<36x9x4xbf16> to vector<8x8x4xbf16>
    %15 = tpu.concatenate %6, %7, %8, %9, %10, %11, %12, %13, %14 in 2 : vector<8x8x4xbf16>, vector<8x8x4xbf16>, vector<8x8x4xbf16>, vector<8x8x4xbf16>, vector<8x8x4xbf16>, vector<8x8x4xbf16>, vector<8x8x4xbf16>, vector<8x8x4xbf16>, vector<8x8x4xbf16> -> vector<8x8x36xbf16>
    %16 = vector.shape_cast %15 : vector<8x8x36xbf16> to vector<64x36xbf16>
    %cst = arith.constant dense<0.000000e+00> : vector<64x16xf32>
    %17 = tpu.matmul %16, %5, %cst {dimension_numbers = #tpu.dot_dimension_numbers<[1], [0], [0], [1], [0, 0, 1, 1], [], []>} : vector<64x36xbf16>, vector<36x16xbf16>, vector<64x16xf32> -> vector<64x16xf32>
    %c0_6 = arith.constant 0 : index
    %c0_7 = arith.constant 0 : index
    %c0_8 = arith.constant 0 : index
    %18 = vector.load %arg3[%c0_6, %c0_7, %c0_8] : memref<1x64x16xf32, #tpu.memory_space<vmem>>, vector<1x64x16xf32>
    %19 = vector.shape_cast %18 : vector<1x64x16xf32> to vector<64x16xf32>
    %20 = vector.shape_cast %17 : vector<64x16xf32> to vector<1x64x16xf32>
    tpu.vector_store %arg3[%c0_6, %c0_7, %c0_8], %20 {strides = array<i32>} : memref<1x64x16xf32, #tpu.memory_space<vmem>>, vector<1x64x16xf32>,
    %c0_9 = arith.constant 0 : index
    %c0_10 = arith.constant 0 : index
    %21 = vector.load %arg5[%c0_9, %c0_10] : memref<2x16xf32, #tpu.memory_space<vmem>>, vector<1x16xf32>
    %cst_11 = arith.constant dense<0.000000e+00> : vector<16xf32>
    %22 = vector.multi_reduction <add>, %17, %cst_11 [0] : vector<64x16xf32> to vector<16xf32>
    %23 = vector.shape_cast %22 : vector<16xf32> to vector<1x16xf32>
    %24 = arith.addf %21, %23 : vector<1x16xf32>
    %c0_12 = arith.constant 0 : index
    %c0_13 = arith.constant 0 : index
    %25 = vector.load %arg5[%c0_12, %c0_13] : memref<2x16xf32, #tpu.memory_space<vmem>>, vector<1x16xf32>
    tpu.vector_store %arg5[%c0_12, %c0_13], %24 {strides = array<i32>} : memref<2x16xf32, #tpu.memory_space<vmem>>, vector<1x16xf32>,
    %c1 = arith.constant 1 : index
    %c0_14 = arith.constant 0 : index
    %26 = vector.load %arg5[%c1, %c0_14] : memref<2x16xf32, #tpu.memory_space<vmem>>, vector<1x16xf32>
    %27 = arith.mulf %17, %17 : vector<64x16xf32>
    %cst_15 = arith.constant dense<0.000000e+00> : vector<16xf32>
    %28 = vector.multi_reduction <add>, %27, %cst_15 [0] : vector<64x16xf32> to vector<16xf32>
    %29 = vector.shape_cast %28 : vector<16xf32> to vector<1x16xf32>
    %30 = arith.addf %26, %29 : vector<1x16xf32>
    %c1_16 = arith.constant 1 : index
    %c0_17 = arith.constant 0 : index
    %31 = vector.load %arg5[%c1_16, %c0_17] : memref<2x16xf32, #tpu.memory_space<vmem>>, vector<1x16xf32>
    tpu.vector_store %arg5[%c1_16, %c0_17], %30 {strides = array<i32>} : memref<2x16xf32, #tpu.memory_space<vmem>>, vector<1x16xf32>,
    %c1_i32 = arith.constant 1 : i32
    %32 = arith.cmpi eq, %arg0, %c1_i32 : i32
    %33 = arith.extui %32 : i1 to i32
    %c0_i32_18 = arith.constant 0 : i32
    %34 = arith.cmpi ne, %33, %c0_i32_18 : i32
    scf.if %34 {
      %c0_19 = arith.constant 0 : index
      %c0_20 = arith.constant 0 : index
      %35 = vector.load %arg5[%c0_19, %c0_20] : memref<2x16xf32, #tpu.memory_space<vmem>>, vector<2x16xf32>
      %c0_21 = arith.constant 0 : index
      %c0_22 = arith.constant 0 : index
      %36 = vector.load %arg4[%c0_21, %c0_22] : memref<2x16xf32, #tpu.memory_space<vmem>>, vector<2x16xf32>
      tpu.vector_store %arg4[%c0_21, %c0_22], %35 {strides = array<i32>} : memref<2x16xf32, #tpu.memory_space<vmem>>, vector<2x16xf32>,
    } else {
    }
    return
  }
  func.func @transform_0(%arg0: i32) -> (i32, i32, i32, i32) {
    %c0_i32 = arith.constant 0 : i32
    %c0_i32_0 = arith.constant 0 : i32
    %c0_i32_1 = arith.constant 0 : i32
    %c0_i32_2 = arith.constant 0 : i32
    return %arg0, %c0_i32, %c0_i32_0, %c0_i32_1 : i32, i32, i32, i32
  }
  func.func @transform_1(%arg0: i32) -> (i32, i32) {
    %c0_i32 = arith.constant 0 : i32
    %c0_i32_0 = arith.constant 0 : i32
    %c0_i32_1 = arith.constant 0 : i32
    return %c0_i32, %c0_i32_0 : i32, i32
  }
  func.func @transform_2(%arg0: i32) -> (i32, i32, i32) {
    %c0_i32 = arith.constant 0 : i32
    %c0_i32_0 = arith.constant 0 : i32
    %c0_i32_1 = arith.constant 0 : i32
    return %arg0, %c0_i32, %c0_i32_0 : i32, i32, i32
  }
  func.func @transform_3(%arg0: i32) -> (i32, i32) {
    %c0_i32 = arith.constant 0 : i32
    %c0_i32_0 = arith.constant 0 : i32
    %c0_i32_1 = arith.constant 0 : i32
    return %c0_i32, %c0_i32_0 : i32, i32
  }
}

module attributes {stable_mosaic.version = 11 : i64} {
  func.func @_bn_act_kernel(%arg0: i32, %arg1: memref<1x64x16xf32, #tpu.memory_space<vmem>>, %arg2: memref<1x16xf32, #tpu.memory_space<vmem>>, %arg3: memref<1x16xf32, #tpu.memory_space<vmem>>, %arg4: memref<1x64x16xbf16, #tpu.memory_space<vmem>>) attributes {dimension_semantics = [#tpu.dimension_semantics<parallel>], iteration_bounds = array<i64: 2>, scalar_prefetch = 0 : i64, scratch_operands = 0 : i64, tpu.core_type = #tpu.core_type<tc>, window_params = [{transform_indices = @transform_0, window_bounds = array<i64: 1, 64, 16>}, {pipeline_mode = #tpu.pipeline_mode<synchronous>, transform_indices = @transform_1, window_bounds = array<i64: 1, 16>}, {pipeline_mode = #tpu.pipeline_mode<synchronous>, transform_indices = @transform_2, window_bounds = array<i64: 1, 16>}, {transform_indices = @transform_3, window_bounds = array<i64: 1, 64, 16>}]} {
    %c0 = arith.constant 0 : index
    %c0_0 = arith.constant 0 : index
    %c0_1 = arith.constant 0 : index
    %0 = vector.load %arg1[%c0, %c0_0, %c0_1] : memref<1x64x16xf32, #tpu.memory_space<vmem>>, vector<1x64x16xf32>
    %1 = vector.shape_cast %0 : vector<1x64x16xf32> to vector<64x16xf32>
    %c0_2 = arith.constant 0 : index
    %c0_3 = arith.constant 0 : index
    %2 = vector.load %arg2[%c0_2, %c0_3] : memref<1x16xf32, #tpu.memory_space<vmem>>, vector<1x16xf32>
    %3 = vector.broadcast %2 : vector<1x16xf32> to vector<64x16xf32>
    %4 = arith.mulf %1, %3 : vector<64x16xf32>
    %c0_4 = arith.constant 0 : index
    %c0_5 = arith.constant 0 : index
    %5 = vector.load %arg3[%c0_4, %c0_5] : memref<1x16xf32, #tpu.memory_space<vmem>>, vector<1x16xf32>
    %6 = vector.broadcast %5 : vector<1x16xf32> to vector<64x16xf32>
    %7 = arith.addf %4, %6 : vector<64x16xf32>
    %cst = arith.constant 0.000000e+00 : f32
    %8 = vector.broadcast %cst : f32 to vector<64x16xf32>
    %9 = arith.cmpf ogt, %7, %8 : vector<64x16xf32>
    %cst_6 = arith.constant 2.000000e-01 : f32
    %10 = vector.broadcast %cst_6 : f32 to vector<64x16xf32>
    %11 = arith.mulf %10, %7 : vector<64x16xf32>
    %12 = arith.select %9, %7, %11 : vector<64x16xi1>, vector<64x16xf32>
    %13 = arith.truncf %12 : vector<64x16xf32> to vector<64x16xbf16>
    %c0_7 = arith.constant 0 : index
    %c0_8 = arith.constant 0 : index
    %c0_9 = arith.constant 0 : index
    %14 = vector.load %arg4[%c0_7, %c0_8, %c0_9] : memref<1x64x16xbf16, #tpu.memory_space<vmem>>, vector<1x64x16xbf16>
    %15 = vector.shape_cast %14 : vector<1x64x16xbf16> to vector<64x16xbf16>
    %16 = vector.shape_cast %13 : vector<64x16xbf16> to vector<1x64x16xbf16>
    tpu.vector_store %arg4[%c0_7, %c0_8, %c0_9], %16 {strides = array<i32>} : memref<1x64x16xbf16, #tpu.memory_space<vmem>>, vector<1x64x16xbf16>,
    return
  }
  func.func @transform_0(%arg0: i32) -> (i32, i32, i32) {
    %c0_i32 = arith.constant 0 : i32
    %c0_i32_0 = arith.constant 0 : i32
    %c0_i32_1 = arith.constant 0 : i32
    return %arg0, %c0_i32, %c0_i32_0 : i32, i32, i32
  }
  func.func @transform_1(%arg0: i32) -> (i32, i32) {
    %c0_i32 = arith.constant 0 : i32
    %c0_i32_0 = arith.constant 0 : i32
    %c0_i32_1 = arith.constant 0 : i32
    return %c0_i32, %c0_i32_0 : i32, i32
  }
  func.func @transform_2(%arg0: i32) -> (i32, i32) {
    %c0_i32 = arith.constant 0 : i32
    %c0_i32_0 = arith.constant 0 : i32
    %c0_i32_1 = arith.constant 0 : i32
    return %c0_i32, %c0_i32_0 : i32, i32
  }
  func.func @transform_3(%arg0: i32) -> (i32, i32, i32) {
    %c0_i32 = arith.constant 0 : i32
    %c0_i32_0 = arith.constant 0 : i32
    %c0_i32_1 = arith.constant 0 : i32
    return %arg0, %c0_i32, %c0_i32_0 : i32, i32, i32
  }
}

module attributes {stable_mosaic.version = 11 : i64} {
  func.func @_mm_bn_act_kernel(%arg0: i32, %arg1: i32, %arg2: memref<2x512xbf16, #tpu.memory_space<vmem>>, %arg3: memref<512x64xbf16, #tpu.memory_space<vmem>>, %arg4: memref<1x64xf32, #tpu.memory_space<vmem>>, %arg5: memref<1x64xf32, #tpu.memory_space<vmem>>, %arg6: memref<2x64xbf16, #tpu.memory_space<vmem>>, %arg7: memref<2x64xf32, #tpu.memory_space<vmem>>) attributes {dimension_semantics = [#tpu.dimension_semantics<parallel>, #tpu.dimension_semantics<arbitrary>], iteration_bounds = array<i64: 1, 2>, scalar_prefetch = 0 : i64, scratch_operands = 1 : i64, tpu.core_type = #tpu.core_type<tc>, window_params = [{transform_indices = @transform_0, window_bounds = array<i64: 2, 512>}, {transform_indices = @transform_1, window_bounds = array<i64: 512, 64>}, {transform_indices = @transform_2, window_bounds = array<i64: 1, 64>}, {transform_indices = @transform_3, window_bounds = array<i64: 1, 64>}, {transform_indices = @transform_4, window_bounds = array<i64: 2, 64>}]} {
    %c0_i32 = arith.constant 0 : i32
    %0 = arith.cmpi eq, %arg1, %c0_i32 : i32
    %1 = arith.extui %0 : i1 to i32
    %c0_i32_0 = arith.constant 0 : i32
    %2 = arith.cmpi ne, %1, %c0_i32_0 : i32
    scf.if %2 {
      %cst_9 = arith.constant 0.000000e+00 : f32
      %12 = vector.broadcast %cst_9 : f32 to vector<2x64xf32>
      %c0_10 = arith.constant 0 : index
      %c0_11 = arith.constant 0 : index
      %13 = vector.load %arg7[%c0_10, %c0_11] : memref<2x64xf32, #tpu.memory_space<vmem>>, vector<2x64xf32>
      tpu.vector_store %arg7[%c0_10, %c0_11], %12 {strides = array<i32>} : memref<2x64xf32, #tpu.memory_space<vmem>>, vector<2x64xf32>,
    } else {
    }
    %c0 = arith.constant 0 : index
    %c0_1 = arith.constant 0 : index
    %3 = vector.load %arg7[%c0, %c0_1] : memref<2x64xf32, #tpu.memory_space<vmem>>, vector<2x64xf32>
    %c0_2 = arith.constant 0 : index
    %c0_3 = arith.constant 0 : index
    %4 = vector.load %arg2[%c0_2, %c0_3] : memref<2x512xbf16, #tpu.memory_space<vmem>>, vector<2x512xbf16>
    %c0_4 = arith.constant 0 : index
    %c0_5 = arith.constant 0 : index
    %5 = vector.load %arg3[%c0_4, %c0_5] : memref<512x64xbf16, #tpu.memory_space<vmem>>, vector<512x64xbf16>
    %cst = arith.constant dense<0.000000e+00> : vector<2x64xf32>
    %6 = tpu.matmul %4, %5, %cst {dimension_numbers = #tpu.dot_dimension_numbers<[1], [0], [0], [1], [0, 0, 1, 1], [], []>} : vector<2x512xbf16>, vector<512x64xbf16>, vector<2x64xf32> -> vector<2x64xf32>
    %7 = arith.addf %3, %6 : vector<2x64xf32>
    %c0_6 = arith.constant 0 : index
    %c0_7 = arith.constant 0 : index
    %8 = vector.load %arg7[%c0_6, %c0_7] : memref<2x64xf32, #tpu.memory_space<vmem>>, vector<2x64xf32>
    tpu.vector_store %arg7[%c0_6, %c0_7], %7 {strides = array<i32>} : memref<2x64xf32, #tpu.memory_space<vmem>>, vector<2x64xf32>,
    %c1_i32 = arith.constant 1 : i32
    %9 = arith.cmpi eq, %arg1, %c1_i32 : i32
    %10 = arith.extui %9 : i1 to i32
    %c0_i32_8 = arith.constant 0 : i32
    %11 = arith.cmpi ne, %10, %c0_i32_8 : i32
    scf.if %11 {
      %c0_9 = arith.constant 0 : index
      %c0_10 = arith.constant 0 : index
      %12 = vector.load %arg7[%c0_9, %c0_10] : memref<2x64xf32, #tpu.memory_space<vmem>>, vector<2x64xf32>
      %cst_11 = arith.constant dense<0.000000e+00> : vector<64xf32>
      %13 = vector.multi_reduction <add>, %12, %cst_11 [0] : vector<2x64xf32> to vector<64xf32>
      %14 = vector.shape_cast %13 : vector<64xf32> to vector<1x64xf32>
      %cst_12 = arith.constant 2.000000e+00 : f32
      %15 = vector.broadcast %cst_12 : f32 to vector<1x64xf32>
      %16 = arith.divf %14, %15 : vector<1x64xf32>
      %17 = arith.mulf %12, %12 : vector<2x64xf32>
      %cst_13 = arith.constant dense<0.000000e+00> : vector<64xf32>
      %18 = vector.multi_reduction <add>, %17, %cst_13 [0] : vector<2x64xf32> to vector<64xf32>
      %19 = vector.shape_cast %18 : vector<64xf32> to vector<1x64xf32>
      %cst_14 = arith.constant 2.000000e+00 : f32
      %20 = vector.broadcast %cst_14 : f32 to vector<1x64xf32>
      %21 = arith.divf %19, %20 : vector<1x64xf32>
      %22 = arith.mulf %16, %16 : vector<1x64xf32>
      %23 = arith.subf %21, %22 : vector<1x64xf32>
      %cst_15 = arith.constant 0.000000e+00 : f32
      %24 = vector.broadcast %cst_15 : f32 to vector<1x64xf32>
      %25 = arith.maximumf %23, %24 : vector<1x64xf32>
      %26 = vector.broadcast %16 : vector<1x64xf32> to vector<2x64xf32>
      %27 = arith.subf %12, %26 : vector<2x64xf32>
      %cst_16 = arith.constant 9.99999974E-6 : f32
      %28 = vector.broadcast %cst_16 : f32 to vector<1x64xf32>
      %29 = arith.addf %25, %28 : vector<1x64xf32>
      %30 = math.rsqrt %29 : vector<1x64xf32>
      %31 = vector.broadcast %30 : vector<1x64xf32> to vector<2x64xf32>
      %32 = arith.mulf %27, %31 : vector<2x64xf32>
      %c0_17 = arith.constant 0 : index
      %c0_18 = arith.constant 0 : index
      %33 = vector.load %arg4[%c0_17, %c0_18] : memref<1x64xf32, #tpu.memory_space<vmem>>, vector<1x64xf32>
      %34 = vector.broadcast %33 : vector<1x64xf32> to vector<2x64xf32>
      %35 = arith.mulf %32, %34 : vector<2x64xf32>
      %c0_19 = arith.constant 0 : index
      %c0_20 = arith.constant 0 : index
      %36 = vector.load %arg5[%c0_19, %c0_20] : memref<1x64xf32, #tpu.memory_space<vmem>>, vector<1x64xf32>
      %37 = vector.broadcast %36 : vector<1x64xf32> to vector<2x64xf32>
      %38 = arith.addf %35, %37 : vector<2x64xf32>
      %cst_21 = arith.constant 0.000000e+00 : f32
      %39 = vector.broadcast %cst_21 : f32 to vector<2x64xf32>
      %40 = arith.cmpf ogt, %38, %39 : vector<2x64xf32>
      %cst_22 = arith.constant 2.000000e-01 : f32
      %41 = vector.broadcast %cst_22 : f32 to vector<2x64xf32>
      %42 = arith.mulf %41, %38 : vector<2x64xf32>
      %43 = arith.select %40, %38, %42 : vector<2x64xi1>, vector<2x64xf32>
      %44 = arith.truncf %43 : vector<2x64xf32> to vector<2x64xbf16>
      %c0_23 = arith.constant 0 : index
      %c0_24 = arith.constant 0 : index
      %45 = vector.load %arg6[%c0_23, %c0_24] : memref<2x64xbf16, #tpu.memory_space<vmem>>, vector<2x64xbf16>
      tpu.vector_store %arg6[%c0_23, %c0_24], %44 {strides = array<i32>} : memref<2x64xbf16, #tpu.memory_space<vmem>>, vector<2x64xbf16>,
    } else {
    }
    return
  }
  func.func @transform_0(%arg0: i32, %arg1: i32) -> (i32, i32) {
    %c0_i32 = arith.constant 0 : i32
    %c0_i32_0 = arith.constant 0 : i32
    return %c0_i32, %arg1 : i32, i32
  }
  func.func @transform_1(%arg0: i32, %arg1: i32) -> (i32, i32) {
    %c0_i32 = arith.constant 0 : i32
    return %arg1, %arg0 : i32, i32
  }
  func.func @transform_2(%arg0: i32, %arg1: i32) -> (i32, i32) {
    %c0_i32 = arith.constant 0 : i32
    %c0_i32_0 = arith.constant 0 : i32
    return %c0_i32, %arg0 : i32, i32
  }
  func.func @transform_3(%arg0: i32, %arg1: i32) -> (i32, i32) {
    %c0_i32 = arith.constant 0 : i32
    %c0_i32_0 = arith.constant 0 : i32
    return %c0_i32, %arg0 : i32, i32
  }
  func.func @transform_4(%arg0: i32, %arg1: i32) -> (i32, i32) {
    %c0_i32 = arith.constant 0 : i32
    %c0_i32_0 = arith.constant 0 : i32
    return %c0_i32, %arg0 : i32, i32
  }
}

module attributes {stable_mosaic.version = 11 : i64} {
  func.func @_mm_bn_act_kernel(%arg0: i32, %arg1: i32, %arg2: memref<2x64xbf16, #tpu.memory_space<vmem>>, %arg3: memref<64x32xbf16, #tpu.memory_space<vmem>>, %arg4: memref<1x32xf32, #tpu.memory_space<vmem>>, %arg5: memref<1x32xf32, #tpu.memory_space<vmem>>, %arg6: memref<2x32xbf16, #tpu.memory_space<vmem>>, %arg7: memref<2x32xf32, #tpu.memory_space<vmem>>) attributes {dimension_semantics = [#tpu.dimension_semantics<parallel>, #tpu.dimension_semantics<arbitrary>], iteration_bounds = array<i64: 1, 1>, scalar_prefetch = 0 : i64, scratch_operands = 1 : i64, tpu.core_type = #tpu.core_type<tc>, window_params = [{transform_indices = @transform_0, window_bounds = array<i64: 2, 64>}, {transform_indices = @transform_1, window_bounds = array<i64: 64, 32>}, {transform_indices = @transform_2, window_bounds = array<i64: 1, 32>}, {transform_indices = @transform_3, window_bounds = array<i64: 1, 32>}, {transform_indices = @transform_4, window_bounds = array<i64: 2, 32>}]} {
    %c0_i32 = arith.constant 0 : i32
    %0 = arith.cmpi eq, %arg1, %c0_i32 : i32
    %1 = arith.extui %0 : i1 to i32
    %c0_i32_0 = arith.constant 0 : i32
    %2 = arith.cmpi ne, %1, %c0_i32_0 : i32
    scf.if %2 {
      %cst_10 = arith.constant 0.000000e+00 : f32
      %12 = vector.broadcast %cst_10 : f32 to vector<2x32xf32>
      %c0_11 = arith.constant 0 : index
      %c0_12 = arith.constant 0 : index
      %13 = vector.load %arg7[%c0_11, %c0_12] : memref<2x32xf32, #tpu.memory_space<vmem>>, vector<2x32xf32>
      tpu.vector_store %arg7[%c0_11, %c0_12], %12 {strides = array<i32>} : memref<2x32xf32, #tpu.memory_space<vmem>>, vector<2x32xf32>,
    } else {
    }
    %c0 = arith.constant 0 : index
    %c0_1 = arith.constant 0 : index
    %3 = vector.load %arg7[%c0, %c0_1] : memref<2x32xf32, #tpu.memory_space<vmem>>, vector<2x32xf32>
    %c0_2 = arith.constant 0 : index
    %c0_3 = arith.constant 0 : index
    %4 = vector.load %arg2[%c0_2, %c0_3] : memref<2x64xbf16, #tpu.memory_space<vmem>>, vector<2x64xbf16>
    %c0_4 = arith.constant 0 : index
    %c0_5 = arith.constant 0 : index
    %5 = vector.load %arg3[%c0_4, %c0_5] : memref<64x32xbf16, #tpu.memory_space<vmem>>, vector<64x32xbf16>
    %cst = arith.constant dense<0.000000e+00> : vector<2x32xf32>
    %6 = tpu.matmul %4, %5, %cst {dimension_numbers = #tpu.dot_dimension_numbers<[1], [0], [0], [1], [0, 0, 1, 1], [], []>} : vector<2x64xbf16>, vector<64x32xbf16>, vector<2x32xf32> -> vector<2x32xf32>
    %7 = arith.addf %3, %6 : vector<2x32xf32>
    %c0_6 = arith.constant 0 : index
    %c0_7 = arith.constant 0 : index
    %8 = vector.load %arg7[%c0_6, %c0_7] : memref<2x32xf32, #tpu.memory_space<vmem>>, vector<2x32xf32>
    tpu.vector_store %arg7[%c0_6, %c0_7], %7 {strides = array<i32>} : memref<2x32xf32, #tpu.memory_space<vmem>>, vector<2x32xf32>,
    %c0_i32_8 = arith.constant 0 : i32
    %9 = arith.cmpi eq, %arg1, %c0_i32_8 : i32
    %10 = arith.extui %9 : i1 to i32
    %c0_i32_9 = arith.constant 0 : i32
    %11 = arith.cmpi ne, %10, %c0_i32_9 : i32
    scf.if %11 {
      %c0_10 = arith.constant 0 : index
      %c0_11 = arith.constant 0 : index
      %12 = vector.load %arg7[%c0_10, %c0_11] : memref<2x32xf32, #tpu.memory_space<vmem>>, vector<2x32xf32>
      %cst_12 = arith.constant dense<0.000000e+00> : vector<32xf32>
      %13 = vector.multi_reduction <add>, %12, %cst_12 [0] : vector<2x32xf32> to vector<32xf32>
      %14 = vector.shape_cast %13 : vector<32xf32> to vector<1x32xf32>
      %cst_13 = arith.constant 2.000000e+00 : f32
      %15 = vector.broadcast %cst_13 : f32 to vector<1x32xf32>
      %16 = arith.divf %14, %15 : vector<1x32xf32>
      %17 = arith.mulf %12, %12 : vector<2x32xf32>
      %cst_14 = arith.constant dense<0.000000e+00> : vector<32xf32>
      %18 = vector.multi_reduction <add>, %17, %cst_14 [0] : vector<2x32xf32> to vector<32xf32>
      %19 = vector.shape_cast %18 : vector<32xf32> to vector<1x32xf32>
      %cst_15 = arith.constant 2.000000e+00 : f32
      %20 = vector.broadcast %cst_15 : f32 to vector<1x32xf32>
      %21 = arith.divf %19, %20 : vector<1x32xf32>
      %22 = arith.mulf %16, %16 : vector<1x32xf32>
      %23 = arith.subf %21, %22 : vector<1x32xf32>
      %cst_16 = arith.constant 0.000000e+00 : f32
      %24 = vector.broadcast %cst_16 : f32 to vector<1x32xf32>
      %25 = arith.maximumf %23, %24 : vector<1x32xf32>
      %26 = vector.broadcast %16 : vector<1x32xf32> to vector<2x32xf32>
      %27 = arith.subf %12, %26 : vector<2x32xf32>
      %cst_17 = arith.constant 9.99999974E-6 : f32
      %28 = vector.broadcast %cst_17 : f32 to vector<1x32xf32>
      %29 = arith.addf %25, %28 : vector<1x32xf32>
      %30 = math.rsqrt %29 : vector<1x32xf32>
      %31 = vector.broadcast %30 : vector<1x32xf32> to vector<2x32xf32>
      %32 = arith.mulf %27, %31 : vector<2x32xf32>
      %c0_18 = arith.constant 0 : index
      %c0_19 = arith.constant 0 : index
      %33 = vector.load %arg4[%c0_18, %c0_19] : memref<1x32xf32, #tpu.memory_space<vmem>>, vector<1x32xf32>
      %34 = vector.broadcast %33 : vector<1x32xf32> to vector<2x32xf32>
      %35 = arith.mulf %32, %34 : vector<2x32xf32>
      %c0_20 = arith.constant 0 : index
      %c0_21 = arith.constant 0 : index
      %36 = vector.load %arg5[%c0_20, %c0_21] : memref<1x32xf32, #tpu.memory_space<vmem>>, vector<1x32xf32>
      %37 = vector.broadcast %36 : vector<1x32xf32> to vector<2x32xf32>
      %38 = arith.addf %35, %37 : vector<2x32xf32>
      %cst_22 = arith.constant 0.000000e+00 : f32
      %39 = vector.broadcast %cst_22 : f32 to vector<2x32xf32>
      %40 = arith.cmpf ogt, %38, %39 : vector<2x32xf32>
      %cst_23 = arith.constant 2.000000e-01 : f32
      %41 = vector.broadcast %cst_23 : f32 to vector<2x32xf32>
      %42 = arith.mulf %41, %38 : vector<2x32xf32>
      %43 = arith.select %40, %38, %42 : vector<2x32xi1>, vector<2x32xf32>
      %44 = arith.truncf %43 : vector<2x32xf32> to vector<2x32xbf16>
      %c0_24 = arith.constant 0 : index
      %c0_25 = arith.constant 0 : index
      %45 = vector.load %arg6[%c0_24, %c0_25] : memref<2x32xbf16, #tpu.memory_space<vmem>>, vector<2x32xbf16>
      tpu.vector_store %arg6[%c0_24, %c0_25], %44 {strides = array<i32>} : memref<2x32xbf16, #tpu.memory_space<vmem>>, vector<2x32xbf16>,
    } else {
    }
    return
  }
  func.func @transform_0(%arg0: i32, %arg1: i32) -> (i32, i32) {
    %c0_i32 = arith.constant 0 : i32
    %c0_i32_0 = arith.constant 0 : i32
    return %c0_i32, %arg1 : i32, i32
  }
  func.func @transform_1(%arg0: i32, %arg1: i32) -> (i32, i32) {
    %c0_i32 = arith.constant 0 : i32
    return %arg1, %arg0 : i32, i32
  }
  func.func @transform_2(%arg0: i32, %arg1: i32) -> (i32, i32) {
    %c0_i32 = arith.constant 0 : i32
    %c0_i32_0 = arith.constant 0 : i32
    return %c0_i32, %arg0 : i32, i32
  }
  func.func @transform_3(%arg0: i32, %arg1: i32) -> (i32, i32) {
    %c0_i32 = arith.constant 0 : i32
    %c0_i32_0 = arith.constant 0 : i32
    return %c0_i32, %arg0 : i32, i32
  }
  func.func @transform_4(%arg0: i32, %arg1: i32) -> (i32, i32) {
    %c0_i32 = arith.constant 0 : i32
    %c0_i32_0 = arith.constant 0 : i32
    return %c0_i32, %arg0 : i32, i32
  }
}

module attributes {stable_mosaic.version = 11 : i64} {
  func.func @_mm_bn_act_kernel(%arg0: i32, %arg1: i32, %arg2: memref<2x32xbf16, #tpu.memory_space<vmem>>, %arg3: memref<32x32xbf16, #tpu.memory_space<vmem>>, %arg4: memref<1x32xf32, #tpu.memory_space<vmem>>, %arg5: memref<1x32xf32, #tpu.memory_space<vmem>>, %arg6: memref<2x32xbf16, #tpu.memory_space<vmem>>, %arg7: memref<2x32xf32, #tpu.memory_space<vmem>>) attributes {dimension_semantics = [#tpu.dimension_semantics<parallel>, #tpu.dimension_semantics<arbitrary>], iteration_bounds = array<i64: 1, 1>, scalar_prefetch = 0 : i64, scratch_operands = 1 : i64, tpu.core_type = #tpu.core_type<tc>, window_params = [{transform_indices = @transform_0, window_bounds = array<i64: 2, 32>}, {transform_indices = @transform_1, window_bounds = array<i64: 32, 32>}, {transform_indices = @transform_2, window_bounds = array<i64: 1, 32>}, {transform_indices = @transform_3, window_bounds = array<i64: 1, 32>}, {transform_indices = @transform_4, window_bounds = array<i64: 2, 32>}]} {
    %c0_i32 = arith.constant 0 : i32
    %0 = arith.cmpi eq, %arg1, %c0_i32 : i32
    %1 = arith.extui %0 : i1 to i32
    %c0_i32_0 = arith.constant 0 : i32
    %2 = arith.cmpi ne, %1, %c0_i32_0 : i32
    scf.if %2 {
      %cst_10 = arith.constant 0.000000e+00 : f32
      %12 = vector.broadcast %cst_10 : f32 to vector<2x32xf32>
      %c0_11 = arith.constant 0 : index
      %c0_12 = arith.constant 0 : index
      %13 = vector.load %arg7[%c0_11, %c0_12] : memref<2x32xf32, #tpu.memory_space<vmem>>, vector<2x32xf32>
      tpu.vector_store %arg7[%c0_11, %c0_12], %12 {strides = array<i32>} : memref<2x32xf32, #tpu.memory_space<vmem>>, vector<2x32xf32>,
    } else {
    }
    %c0 = arith.constant 0 : index
    %c0_1 = arith.constant 0 : index
    %3 = vector.load %arg7[%c0, %c0_1] : memref<2x32xf32, #tpu.memory_space<vmem>>, vector<2x32xf32>
    %c0_2 = arith.constant 0 : index
    %c0_3 = arith.constant 0 : index
    %4 = vector.load %arg2[%c0_2, %c0_3] : memref<2x32xbf16, #tpu.memory_space<vmem>>, vector<2x32xbf16>
    %c0_4 = arith.constant 0 : index
    %c0_5 = arith.constant 0 : index
    %5 = vector.load %arg3[%c0_4, %c0_5] : memref<32x32xbf16, #tpu.memory_space<vmem>>, vector<32x32xbf16>
    %cst = arith.constant dense<0.000000e+00> : vector<2x32xf32>
    %6 = tpu.matmul %4, %5, %cst {dimension_numbers = #tpu.dot_dimension_numbers<[1], [0], [0], [1], [0, 0, 1, 1], [], []>} : vector<2x32xbf16>, vector<32x32xbf16>, vector<2x32xf32> -> vector<2x32xf32>
    %7 = arith.addf %3, %6 : vector<2x32xf32>
    %c0_6 = arith.constant 0 : index
    %c0_7 = arith.constant 0 : index
    %8 = vector.load %arg7[%c0_6, %c0_7] : memref<2x32xf32, #tpu.memory_space<vmem>>, vector<2x32xf32>
    tpu.vector_store %arg7[%c0_6, %c0_7], %7 {strides = array<i32>} : memref<2x32xf32, #tpu.memory_space<vmem>>, vector<2x32xf32>,
    %c0_i32_8 = arith.constant 0 : i32
    %9 = arith.cmpi eq, %arg1, %c0_i32_8 : i32
    %10 = arith.extui %9 : i1 to i32
    %c0_i32_9 = arith.constant 0 : i32
    %11 = arith.cmpi ne, %10, %c0_i32_9 : i32
    scf.if %11 {
      %c0_10 = arith.constant 0 : index
      %c0_11 = arith.constant 0 : index
      %12 = vector.load %arg7[%c0_10, %c0_11] : memref<2x32xf32, #tpu.memory_space<vmem>>, vector<2x32xf32>
      %cst_12 = arith.constant dense<0.000000e+00> : vector<32xf32>
      %13 = vector.multi_reduction <add>, %12, %cst_12 [0] : vector<2x32xf32> to vector<32xf32>
      %14 = vector.shape_cast %13 : vector<32xf32> to vector<1x32xf32>
      %cst_13 = arith.constant 2.000000e+00 : f32
      %15 = vector.broadcast %cst_13 : f32 to vector<1x32xf32>
      %16 = arith.divf %14, %15 : vector<1x32xf32>
      %17 = arith.mulf %12, %12 : vector<2x32xf32>
      %cst_14 = arith.constant dense<0.000000e+00> : vector<32xf32>
      %18 = vector.multi_reduction <add>, %17, %cst_14 [0] : vector<2x32xf32> to vector<32xf32>
      %19 = vector.shape_cast %18 : vector<32xf32> to vector<1x32xf32>
      %cst_15 = arith.constant 2.000000e+00 : f32
      %20 = vector.broadcast %cst_15 : f32 to vector<1x32xf32>
      %21 = arith.divf %19, %20 : vector<1x32xf32>
      %22 = arith.mulf %16, %16 : vector<1x32xf32>
      %23 = arith.subf %21, %22 : vector<1x32xf32>
      %cst_16 = arith.constant 0.000000e+00 : f32
      %24 = vector.broadcast %cst_16 : f32 to vector<1x32xf32>
      %25 = arith.maximumf %23, %24 : vector<1x32xf32>
      %26 = vector.broadcast %16 : vector<1x32xf32> to vector<2x32xf32>
      %27 = arith.subf %12, %26 : vector<2x32xf32>
      %cst_17 = arith.constant 9.99999974E-6 : f32
      %28 = vector.broadcast %cst_17 : f32 to vector<1x32xf32>
      %29 = arith.addf %25, %28 : vector<1x32xf32>
      %30 = math.rsqrt %29 : vector<1x32xf32>
      %31 = vector.broadcast %30 : vector<1x32xf32> to vector<2x32xf32>
      %32 = arith.mulf %27, %31 : vector<2x32xf32>
      %c0_18 = arith.constant 0 : index
      %c0_19 = arith.constant 0 : index
      %33 = vector.load %arg4[%c0_18, %c0_19] : memref<1x32xf32, #tpu.memory_space<vmem>>, vector<1x32xf32>
      %34 = vector.broadcast %33 : vector<1x32xf32> to vector<2x32xf32>
      %35 = arith.mulf %32, %34 : vector<2x32xf32>
      %c0_20 = arith.constant 0 : index
      %c0_21 = arith.constant 0 : index
      %36 = vector.load %arg5[%c0_20, %c0_21] : memref<1x32xf32, #tpu.memory_space<vmem>>, vector<1x32xf32>
      %37 = vector.broadcast %36 : vector<1x32xf32> to vector<2x32xf32>
      %38 = arith.addf %35, %37 : vector<2x32xf32>
      %cst_22 = arith.constant 0.000000e+00 : f32
      %39 = vector.broadcast %cst_22 : f32 to vector<2x32xf32>
      %40 = arith.cmpf ogt, %38, %39 : vector<2x32xf32>
      %cst_23 = arith.constant 2.000000e-01 : f32
      %41 = vector.broadcast %cst_23 : f32 to vector<2x32xf32>
      %42 = arith.mulf %41, %38 : vector<2x32xf32>
      %43 = arith.select %40, %38, %42 : vector<2x32xi1>, vector<2x32xf32>
      %44 = arith.truncf %43 : vector<2x32xf32> to vector<2x32xbf16>
      %c0_24 = arith.constant 0 : index
      %c0_25 = arith.constant 0 : index
      %45 = vector.load %arg6[%c0_24, %c0_25] : memref<2x32xbf16, #tpu.memory_space<vmem>>, vector<2x32xbf16>
      tpu.vector_store %arg6[%c0_24, %c0_25], %44 {strides = array<i32>} : memref<2x32xbf16, #tpu.memory_space<vmem>>, vector<2x32xbf16>,
    } else {
    }
    return
  }
  func.func @transform_0(%arg0: i32, %arg1: i32) -> (i32, i32) {
    %c0_i32 = arith.constant 0 : i32
    %c0_i32_0 = arith.constant 0 : i32
    return %c0_i32, %arg1 : i32, i32
  }
  func.func @transform_1(%arg0: i32, %arg1: i32) -> (i32, i32) {
    %c0_i32 = arith.constant 0 : i32
    return %arg1, %arg0 : i32, i32
  }
  func.func @transform_2(%arg0: i32, %arg1: i32) -> (i32, i32) {
    %c0_i32 = arith.constant 0 : i32
    %c0_i32_0 = arith.constant 0 : i32
    return %c0_i32, %arg0 : i32, i32
  }
  func.func @transform_3(%arg0: i32, %arg1: i32) -> (i32, i32) {
    %c0_i32 = arith.constant 0 : i32
    %c0_i32_0 = arith.constant 0 : i32
    return %c0_i32, %arg0 : i32, i32
  }
  func.func @transform_4(%arg0: i32, %arg1: i32) -> (i32, i32) {
    %c0_i32 = arith.constant 0 : i32
    %c0_i32_0 = arith.constant 0 : i32
    return %c0_i32, %arg0 : i32, i32
  }
}

module attributes {stable_mosaic.version = 11 : i64} {
  func.func @_mm_bn_act_kernel(%arg0: i32, %arg1: i32, %arg2: memref<2x32xbf16, #tpu.memory_space<vmem>>, %arg3: memref<32x32xbf16, #tpu.memory_space<vmem>>, %arg4: memref<1x32xf32, #tpu.memory_space<vmem>>, %arg5: memref<1x32xf32, #tpu.memory_space<vmem>>, %arg6: memref<2x32xf32, #tpu.memory_space<vmem>>, %arg7: memref<2x32xf32, #tpu.memory_space<vmem>>) attributes {dimension_semantics = [#tpu.dimension_semantics<parallel>, #tpu.dimension_semantics<arbitrary>], iteration_bounds = array<i64: 1, 1>, scalar_prefetch = 0 : i64, scratch_operands = 1 : i64, tpu.core_type = #tpu.core_type<tc>, window_params = [{transform_indices = @transform_0, window_bounds = array<i64: 2, 32>}, {transform_indices = @transform_1, window_bounds = array<i64: 32, 32>}, {transform_indices = @transform_2, window_bounds = array<i64: 1, 32>}, {transform_indices = @transform_3, window_bounds = array<i64: 1, 32>}, {transform_indices = @transform_4, window_bounds = array<i64: 2, 32>}]} {
    %c0_i32 = arith.constant 0 : i32
    %0 = arith.cmpi eq, %arg1, %c0_i32 : i32
    %1 = arith.extui %0 : i1 to i32
    %c0_i32_0 = arith.constant 0 : i32
    %2 = arith.cmpi ne, %1, %c0_i32_0 : i32
    scf.if %2 {
      %cst_10 = arith.constant 0.000000e+00 : f32
      %12 = vector.broadcast %cst_10 : f32 to vector<2x32xf32>
      %c0_11 = arith.constant 0 : index
      %c0_12 = arith.constant 0 : index
      %13 = vector.load %arg7[%c0_11, %c0_12] : memref<2x32xf32, #tpu.memory_space<vmem>>, vector<2x32xf32>
      tpu.vector_store %arg7[%c0_11, %c0_12], %12 {strides = array<i32>} : memref<2x32xf32, #tpu.memory_space<vmem>>, vector<2x32xf32>,
    } else {
    }
    %c0 = arith.constant 0 : index
    %c0_1 = arith.constant 0 : index
    %3 = vector.load %arg7[%c0, %c0_1] : memref<2x32xf32, #tpu.memory_space<vmem>>, vector<2x32xf32>
    %c0_2 = arith.constant 0 : index
    %c0_3 = arith.constant 0 : index
    %4 = vector.load %arg2[%c0_2, %c0_3] : memref<2x32xbf16, #tpu.memory_space<vmem>>, vector<2x32xbf16>
    %c0_4 = arith.constant 0 : index
    %c0_5 = arith.constant 0 : index
    %5 = vector.load %arg3[%c0_4, %c0_5] : memref<32x32xbf16, #tpu.memory_space<vmem>>, vector<32x32xbf16>
    %cst = arith.constant dense<0.000000e+00> : vector<2x32xf32>
    %6 = tpu.matmul %4, %5, %cst {dimension_numbers = #tpu.dot_dimension_numbers<[1], [0], [0], [1], [0, 0, 1, 1], [], []>} : vector<2x32xbf16>, vector<32x32xbf16>, vector<2x32xf32> -> vector<2x32xf32>
    %7 = arith.addf %3, %6 : vector<2x32xf32>
    %c0_6 = arith.constant 0 : index
    %c0_7 = arith.constant 0 : index
    %8 = vector.load %arg7[%c0_6, %c0_7] : memref<2x32xf32, #tpu.memory_space<vmem>>, vector<2x32xf32>
    tpu.vector_store %arg7[%c0_6, %c0_7], %7 {strides = array<i32>} : memref<2x32xf32, #tpu.memory_space<vmem>>, vector<2x32xf32>,
    %c0_i32_8 = arith.constant 0 : i32
    %9 = arith.cmpi eq, %arg1, %c0_i32_8 : i32
    %10 = arith.extui %9 : i1 to i32
    %c0_i32_9 = arith.constant 0 : i32
    %11 = arith.cmpi ne, %10, %c0_i32_9 : i32
    scf.if %11 {
      %c0_10 = arith.constant 0 : index
      %c0_11 = arith.constant 0 : index
      %12 = vector.load %arg7[%c0_10, %c0_11] : memref<2x32xf32, #tpu.memory_space<vmem>>, vector<2x32xf32>
      %cst_12 = arith.constant dense<0.000000e+00> : vector<32xf32>
      %13 = vector.multi_reduction <add>, %12, %cst_12 [0] : vector<2x32xf32> to vector<32xf32>
      %14 = vector.shape_cast %13 : vector<32xf32> to vector<1x32xf32>
      %cst_13 = arith.constant 2.000000e+00 : f32
      %15 = vector.broadcast %cst_13 : f32 to vector<1x32xf32>
      %16 = arith.divf %14, %15 : vector<1x32xf32>
      %17 = arith.mulf %12, %12 : vector<2x32xf32>
      %cst_14 = arith.constant dense<0.000000e+00> : vector<32xf32>
      %18 = vector.multi_reduction <add>, %17, %cst_14 [0] : vector<2x32xf32> to vector<32xf32>
      %19 = vector.shape_cast %18 : vector<32xf32> to vector<1x32xf32>
      %cst_15 = arith.constant 2.000000e+00 : f32
      %20 = vector.broadcast %cst_15 : f32 to vector<1x32xf32>
      %21 = arith.divf %19, %20 : vector<1x32xf32>
      %22 = arith.mulf %16, %16 : vector<1x32xf32>
      %23 = arith.subf %21, %22 : vector<1x32xf32>
      %cst_16 = arith.constant 0.000000e+00 : f32
      %24 = vector.broadcast %cst_16 : f32 to vector<1x32xf32>
      %25 = arith.maximumf %23, %24 : vector<1x32xf32>
      %26 = vector.broadcast %16 : vector<1x32xf32> to vector<2x32xf32>
      %27 = arith.subf %12, %26 : vector<2x32xf32>
      %cst_17 = arith.constant 9.99999974E-6 : f32
      %28 = vector.broadcast %cst_17 : f32 to vector<1x32xf32>
      %29 = arith.addf %25, %28 : vector<1x32xf32>
      %30 = math.rsqrt %29 : vector<1x32xf32>
      %31 = vector.broadcast %30 : vector<1x32xf32> to vector<2x32xf32>
      %32 = arith.mulf %27, %31 : vector<2x32xf32>
      %c0_18 = arith.constant 0 : index
      %c0_19 = arith.constant 0 : index
      %33 = vector.load %arg4[%c0_18, %c0_19] : memref<1x32xf32, #tpu.memory_space<vmem>>, vector<1x32xf32>
      %34 = vector.broadcast %33 : vector<1x32xf32> to vector<2x32xf32>
      %35 = arith.mulf %32, %34 : vector<2x32xf32>
      %c0_20 = arith.constant 0 : index
      %c0_21 = arith.constant 0 : index
      %36 = vector.load %arg5[%c0_20, %c0_21] : memref<1x32xf32, #tpu.memory_space<vmem>>, vector<1x32xf32>
      %37 = vector.broadcast %36 : vector<1x32xf32> to vector<2x32xf32>
      %38 = arith.addf %35, %37 : vector<2x32xf32>
      %39 = math.tanh %38 : vector<2x32xf32>
      %c0_22 = arith.constant 0 : index
      %c0_23 = arith.constant 0 : index
      %40 = vector.load %arg6[%c0_22, %c0_23] : memref<2x32xf32, #tpu.memory_space<vmem>>, vector<2x32xf32>
      tpu.vector_store %arg6[%c0_22, %c0_23], %39 {strides = array<i32>} : memref<2x32xf32, #tpu.memory_space<vmem>>, vector<2x32xf32>,
    } else {
    }
    return
  }
  func.func @transform_0(%arg0: i32, %arg1: i32) -> (i32, i32) {
    %c0_i32 = arith.constant 0 : i32
    %c0_i32_0 = arith.constant 0 : i32
    return %c0_i32, %arg1 : i32, i32
  }
  func.func @transform_1(%arg0: i32, %arg1: i32) -> (i32, i32) {
    %c0_i32 = arith.constant 0 : i32
    return %arg1, %arg0 : i32, i32
  }
  func.func @transform_2(%arg0: i32, %arg1: i32) -> (i32, i32) {
    %c0_i32 = arith.constant 0 : i32
    %c0_i32_0 = arith.constant 0 : i32
    return %c0_i32, %arg0 : i32, i32
  }
  func.func @transform_3(%arg0: i32, %arg1: i32) -> (i32, i32) {
    %c0_i32 = arith.constant 0 : i32
    %c0_i32_0 = arith.constant 0 : i32
    return %c0_i32, %arg0 : i32, i32
  }
  func.func @transform_4(%arg0: i32, %arg1: i32) -> (i32, i32) {
    %c0_i32 = arith.constant 0 : i32
    %c0_i32_0 = arith.constant 0 : i32
    return %c0_i32, %arg0 : i32, i32
  }
}

</mosaic_0001>

<llo_original>
// kernel: encoder_forward.10
$region0: #{encoder_forward.10}
  #allocation0 [shape = 'u32[]', space=smem, size = 0x4, offset = 0x4, fixed_abs, tag = 'smem constant byte address 0x4 - core index']
  #allocation1 [shape = 'u32[144,128]{1,0:T(1,128)}', space=vmem, size = 0x12000, scoped, tag = 'internal scratch']
  %s0 = inlined_call_operand.vmem [shape: f32[2,256,4], index: 0, kind: input, shape index: {}]
  %s1 = inlined_call_operand.vmem [shape: f32[1,4], index: 1, kind: input, shape index: {}]
  %s2 = inlined_call_operand.vmem [shape: f32[1,4], index: 2, kind: input, shape index: {}]
  %s3 = inlined_call_operand.vmem [shape: bf16[2,256,4], index: 3, kind: output, shape index: {}]
  %s4 = sld [smem:[#allocation0]]
  $region45: #{encoder_forward.10} parent=0
    _
  %s6 = ssub.s32 1, %s4
  %s7 = scalar_select 0, %s6, %s4
  loop: start=0, step=1, limit=4
  $region2: #{encoder_forward.10} parent=0 // loop_pre_header
    _
  $region3: #{encoder_forward.10} parent=0 // loop_header
    %s9 = sphi 0, %s13
    %p10 = scmp.ge.s32.totalorder %s9, 4
    %s19 = sphi 0, %s21
    %s22 = sphi 0, %s19
    %s23 = sphi 0, %s22
    %s39 = sphi 0, %s23
    %s43 = sphi 0, %s43
    %s45 = sphi 0, %s43
    %s46 = sphi 0, %s45
    %s60 = sphi 0, %s46
    %s64 = sphi 0, %s64
    %s66 = sphi 0, %s64
    %s67 = sphi 0, %s66
    %s81 = sphi 0, %s67
    %s87 = sphi 0, %s89
    %s90 = sphi 0, %s87
    %s91 = sphi 0, %s90
    %s107 = sphi 0, %s91
  $region4: #{encoder_forward.10} parent=0 // loop_header_branch
    %12 = sbr.rel (%p10) target = $region8
  $region5: #{encoder_forward.10} parent=0 // loop_body
    %s14 = ssub.s32 %s9, 1
    %s15 = ssub.s32 %s9, 2
    %s16 = sadd.s32 %s9, 1
    %s17 = ssub.s32 %s9, %s16
    %p18 = scmp.eq.s32.totalorder %s17, 0
    %s20 = sadd.s32 %s19, 1
    %s21 = scalar_select %p18, %s19, %s20
    %p24 = pneg %p18
    %p25 = scmp.eq.s32.totalorder %s9, 1
    %p26 = por %p24, %p25
    %p27 = scmp.ne.s32.totalorder %s19, %s22
    %p28 = scmp.eq.s32.totalorder %s9, 0
    %p29 = por %p27, %p28
    %p30 = scmp.ne.s32.totalorder %s19, %s22
    %p31 = scmp.eq.s32.totalorder %s14, 1
    %p32 = por %p30, %p31
    %p33 = scmp.ne.s32.totalorder %s22, %s23
    %p34 = scmp.eq.s32.totalorder %s14, 0
    %p35 = por %p33, %p34
    %p36 = scmp.ne.s32.totalorder %s22, %s23
    %p37 = scmp.eq.s32.totalorder %s15, 1
    %p38 = por %p36, %p37
    %p40 = scmp.ne.s32.totalorder %s23, %s39
    %p41 = scmp.eq.s32.totalorder %s15, 0
    %p42 = por %p40, %p41
    %s44 = sadd.s32 %s43, 1
    %p47 = scmp.eq.s32.totalorder %s9, 1
    %p48 = scmp.ne.s32.totalorder %s43, %s45
    %p49 = scmp.eq.s32.totalorder %s9, 0
    %p50 = por %p48, %p49
    %p51 = scmp.ne.s32.totalorder %s43, %s45
    %p52 = scmp.eq.s32.totalorder %s14, 1
    %p53 = por %p51, %p52
    %p54 = scmp.ne.s32.totalorder %s45, %s46
    %p55 = scmp.eq.s32.totalorder %s14, 0
    %p56 = por %p54, %p55
    %p57 = scmp.ne.s32.totalorder %s45, %s46
    %p58 = scmp.eq.s32.totalorder %s15, 1
    %p59 = por %p57, %p58
    %p61 = scmp.ne.s32.totalorder %s46, %s60
    %p62 = scmp.eq.s32.totalorder %s15, 0
    %p63 = por %p61, %p62
    %s65 = sadd.s32 %s64, 1
    %p68 = scmp.eq.s32.totalorder %s9, 1
    %p69 = scmp.ne.s32.totalorder %s64, %s66
    %p70 = scmp.eq.s32.totalorder %s9, 0
    %p71 = por %p69, %p70
    %p72 = scmp.ne.s32.totalorder %s64, %s66
    %p73 = scmp.eq.s32.totalorder %s14, 1
    %p74 = por %p72, %p73
    %p75 = scmp.ne.s32.totalorder %s66, %s67
    %p76 = scmp.eq.s32.totalorder %s14, 0
    %p77 = por %p75, %p76
    %p78 = scmp.ne.s32.totalorder %s66, %s67
    %p79 = scmp.eq.s32.totalorder %s15, 1
    %p80 = por %p78, %p79
    %p82 = scmp.ne.s32.totalorder %s67, %s81
    %p83 = scmp.eq.s32.totalorder %s15, 0
    %p84 = por %p82, %p83
    %s85 = ssub.s32 %s9, %s16
    %p86 = scmp.eq.s32.totalorder %s85, 0
    %s88 = sadd.s32 %s87, 1
    %s89 = scalar_select %p86, %s87, %s88
    %p92 = pneg %p86
    %p93 = scmp.eq.s32.totalorder %s9, 1
    %p94 = por %p92, %p93
    %p95 = scmp.ne.s32.totalorder %s87, %s90
    %p96 = scmp.eq.s32.totalorder %s9, 0
    %p97 = por %p95, %p96
    %p98 = scmp.ne.s32.totalorder %s87, %s90
    %p99 = scmp.eq.s32.totalorder %s14, 1
    %p100 = por %p98, %p99
    %p101 = scmp.ne.s32.totalorder %s90, %s91
    %p102 = scmp.eq.s32.totalorder %s14, 0
    %p103 = por %p101, %p102
    %p104 = scmp.ne.s32.totalorder %s90, %s91
    %p105 = scmp.eq.s32.totalorder %s15, 1
    %p106 = por %p104, %p105
    %p108 = scmp.ne.s32.totalorder %s91, %s107
    %p109 = scmp.eq.s32.totalorder %s15, 0
    %p110 = por %p108, %p109
    %p111 = scmp.le.s32.totalorder 1, %s9
    %p112 = scmp.lt.s32.totalorder %s9, 3
    %p113 = pnand %p111, %p112
    %p114 = pneg %p113
    // Predicated region
    $region9: #{encoder_forward.10} parent=5 // pred_check
      _
    $region10: #{encoder_forward.10} parent=5 // pred_check_branch
      %116 = sbr.rel (%p113) target = $region12
    $region11: #{encoder_forward.10} parent=5 // pred_region
      %s117 = ssub.s32 %s9, 1
      // Predicated region
      $region13: #{encoder_forward.10} parent=11 // pred_check
        %p118 = pneg %p56
      $region14: #{encoder_forward.10} parent=11 // pred_check_branch
        %120 = sbr.rel (%p118) target = $region16
      $region15: #{encoder_forward.10} parent=11 // pred_region
        _
      $region16: #{encoder_forward.10} parent=11 // pred_fallthru
        _
      // Predicated region
      $region17: #{encoder_forward.10} parent=11 // pred_check
        %p121 = pneg %p77
      $region18: #{encoder_forward.10} parent=11 // pred_check_branch
        %123 = sbr.rel (%p121) target = $region20
      $region19: #{encoder_forward.10} parent=11 // pred_region
        _
      $region20: #{encoder_forward.10} parent=11 // pred_fallthru
        _
    $region12: #{encoder_forward.10} parent=5 // pred_fallthru
      _
    %p124 = scmp.lt.s32.totalorder %s9, 2
    // Predicated region
    $region21: #{encoder_forward.10} parent=5 // pred_check
      %p125 = pneg %p124
    $region22: #{encoder_forward.10} parent=5 // pred_check_branch
      %127 = sbr.rel (%p125) target = $region24
    $region23: #{encoder_forward.10} parent=5 // pred_region
      // Predicated region
      $region25: #{encoder_forward.10} parent=23 // pred_check
        %p128 = pneg %p29
      $region26: #{encoder_forward.10} parent=23 // pred_check_branch
        %130 = sbr.rel (%p128) target = $region28
      $region27: #{encoder_forward.10} parent=23 // pred_region
        %p131 = scmp.lt.s32.totalorder %s9, 1
        %s132 = scalar_select %p131, %s9, 1
        %s133 = smul.addr %s132, 32
        %s134 = smul.addr %s133, 8
        %s135 = scalar_lea.vmem %s0, %s134
      $region28: #{encoder_forward.10} parent=23 // pred_fallthru
        _
    $region24: #{encoder_forward.10} parent=5 // pred_fallthru
      _
    %p136 = scmp.le.s32.totalorder 1, %s9
    %p137 = scmp.lt.s32.totalorder %s9, 3
    %p138 = pnand %p136, %p137
    %p139 = pneg %p138
    // Predicated region
    $region29: #{encoder_forward.10} parent=5 // pred_check
      _
    $region30: #{encoder_forward.10} parent=5 // pred_check_branch
      %141 = sbr.rel (%p138) target = $region32
    $region31: #{encoder_forward.10} parent=5 // pred_region
      %s142 = ssub.s32 %s9, 1
      %p143 = scmp.lt.s32.totalorder %s14, 1
      %s144 = scalar_select %p143, %s14, 1
      %s145 = smul.addr %s144, 32
      %s146 = smul.addr %s145, 8
      %s147 = scalar_lea.vmem %s0, %s146
      %p148 = pneg %p35
      %p149 = pneg %p32
      %p150 = pneg %p56
      %p151 = pneg %p53
      %p152 = pneg %p77
      %p153 = pneg %p74
      %p154 = pneg %p103
      %p155 = pneg %p100
      %p156 = scmp.lt.s32.totalorder %s14, 1
      %s157 = scalar_select %p156, %s14, 1
      %s158 = smul.addr %s157, 32
      %s159 = smul.addr %s158, 4
      %s160 = scalar_lea.vmem %s3, %s159
      %p161 = scmp.lt.s32.totalorder %s14, 1
      %s162 = scalar_select %p161, %s14, 1
      %s163 = smul.addr %s162, 32
      %s164 = smul.addr %s163, 8
      %s165 = scalar_lea.vmem %s0, %s164
      %p166 = scmp.lt.s32.totalorder %s14, 1
      %s167 = scalar_select %p166, %s14, 1
      %s168 = smul.addr %s167, 32
      %s169 = smul.addr %s168, 4
      %s170 = scalar_lea.vmem %s3, %s169
      %v171 = vld [vmem:[%s165] sm:$0xff]
      %v172 = vld [vmem:[%s165 + $0x8] sm:$0xff]
      %v173 = vld [vmem:[%s165 + $0x10] sm:$0xff]
      %v174 = vld [vmem:[%s165 + $0x18] sm:$0xff]
      %v175 = vld [vmem:[%s165 + $0x20] sm:$0xff]
      %v176 = vld [vmem:[%s165 + $0x28] sm:$0xff]
      %v177 = vld [vmem:[%s165 + $0x30] sm:$0xff]
      %v178 = vld [vmem:[%s165 + $0x38] sm:$0xff]
      %v179 = vld [vmem:[%s165 + $0x40] sm:$0xff]
      %v180 = vld [vmem:[%s165 + $0x48] sm:$0xff]
      %v181 = vld [vmem:[%s165 + $0x50] sm:$0xff]
      %v182 = vld [vmem:[%s165 + $0x58] sm:$0xff]
      %v183 = vld [vmem:[%s165 + $0x60] sm:$0xff]
      %v184 = vld [vmem:[%s165 + $0x68] sm:$0xff]
      %v185 = vld [vmem:[%s165 + $0x70] sm:$0xff]
      %v186 = vld [vmem:[%s165 + $0x78] sm:$0xff]
      %v187 = vld [vmem:[%s165 + $0x80] sm:$0xff]
      %v188 = vld [vmem:[%s165 + $0x88] sm:$0xff]
      %v189 = vld [vmem:[%s165 + $0x90] sm:$0xff]
      %v190 = vld [vmem:[%s165 + $0x98] sm:$0xff]
      %v191 = vld [vmem:[%s165 + $0xa0] sm:$0xff]
      %v192 = vld [vmem:[%s165 + $0xa8] sm:$0xff]
      %v193 = vld [vmem:[%s165 + $0xb0] sm:$0xff]
      %v194 = vld [vmem:[%s165 + $0xb8] sm:$0xff]
      %v195 = vld [vmem:[%s165 + $0xc0] sm:$0xff]
      %v196 = vld [vmem:[%s165 + $0xc8] sm:$0xff]
      %v197 = vld [vmem:[%s165 + $0xd0] sm:$0xff]
      %v198 = vld [vmem:[%s165 + $0xd8] sm:$0xff]
      %v199 = vld [vmem:[%s165 + $0xe0] sm:$0xff]
      %v200 = vld [vmem:[%s165 + $0xe8] sm:$0xff]
      %v201 = vld [vmem:[%s165 + $0xf0] sm:$0xff]
      %v202 = vld [vmem:[%s165 + $0xf8] sm:$0xff]
      %v203 = vld [vmem:[%s1] sm:$0x1]
      %v205 = vlaneseq
      %v206 = vshrl.u32 %v205, 7
      %v207 = vsub.s32 0, %v206
      %v208 = vrot.slane %v203, %v207
      %v210 = vmul.f32 %v171, %v208
      %v211 = vmul.f32 %v172, %v208
      %v212 = vmul.f32 %v173, %v208
      %v213 = vmul.f32 %v174, %v208
      %v214 = vmul.f32 %v175, %v208
      %v215 = vmul.f32 %v176, %v208
      %v216 = vmul.f32 %v177, %v208
      %v217 = vmul.f32 %v178, %v208
      %v218 = vmul.f32 %v179, %v208
      %v219 = vmul.f32 %v180, %v208
      %v220 = vmul.f32 %v181, %v208
      %v221 = vmul.f32 %v182, %v208
      %v222 = vmul.f32 %v183, %v208
      %v223 = vmul.f32 %v184, %v208
      %v224 = vmul.f32 %v185, %v208
      %v225 = vmul.f32 %v186, %v208
      %v226 = vmul.f32 %v187, %v208
      %v227 = vmul.f32 %v188, %v208
      %v228 = vmul.f32 %v189, %v208
      %v229 = vmul.f32 %v190, %v208
      %v230 = vmul.f32 %v191, %v208
      %v231 = vmul.f32 %v192, %v208
      %v232 = vmul.f32 %v193, %v208
      %v233 = vmul.f32 %v194, %v208
      %v234 = vmul.f32 %v195, %v208
      %v235 = vmul.f32 %v196, %v208
      %v236 = vmul.f32 %v197, %v208
      %v237 = vmul.f32 %v198, %v208
      %v238 = vmul.f32 %v199, %v208
      %v239 = vmul.f32 %v200, %v208
      %v240 = vmul.f32 %v201, %v208
      %v241 = vmul.f32 %v202, %v208
      %v242 = vld [vmem:[%s2] sm:$0x1]
      %v244 = vlaneseq
      %v245 = vshrl.u32 %v244, 7
      %v246 = vsub.s32 0, %v245
      %v247 = vrot.slane %v242, %v246
      %v249 = vadd.f32 %v210, %v247
      %v250 = vadd.f32 %v211, %v247
      %v251 = vadd.f32 %v212, %v247
      %v252 = vadd.f32 %v213, %v247
      %v253 = vadd.f32 %v214, %v247
      %v254 = vadd.f32 %v215, %v247
      %v255 = vadd.f32 %v216, %v247
      %v256 = vadd.f32 %v217, %v247
      %v257 = vadd.f32 %v218, %v247
      %v258 = vadd.f32 %v219, %v247
      %v259 = vadd.f32 %v220, %v247
      %v260 = vadd.f32 %v221, %v247
      %v261 = vadd.f32 %v222, %v247
      %v262 = vadd.f32 %v223, %v247
      %v263 = vadd.f32 %v224, %v247
      %v264 = vadd.f32 %v225, %v247
      %v265 = vadd.f32 %v226, %v247
      %v266 = vadd.f32 %v227, %v247
      %v267 = vadd.f32 %v228, %v247
      %v268 = vadd.f32 %v229, %v247
      %v269 = vadd.f32 %v230, %v247
      %v270 = vadd.f32 %v231, %v247
      %v271 = vadd.f32 %v232, %v247
      %v272 = vadd.f32 %v233, %v247
      %v273 = vadd.f32 %v234, %v247
      %v274 = vadd.f32 %v235, %v247
      %v275 = vadd.f32 %v236, %v247
      %v276 = vadd.f32 %v237, %v247
      %v277 = vadd.f32 %v238, %v247
      %v278 = vadd.f32 %v239, %v247
      %v279 = vadd.f32 %v240, %v247
      %v280 = vadd.f32 %v241, %v247
      %vm281 = vcmp.gt.f32.partialorder %v249, 0.0
      %vm282 = vcmp.gt.f32.partialorder %v250, 0.0
      %vm283 = vcmp.gt.f32.partialorder %v251, 0.0
      %vm284 = vcmp.gt.f32.partialorder %v252, 0.0
      %vm285 = vcmp.gt.f32.partialorder %v253, 0.0
      %vm286 = vcmp.gt.f32.partialorder %v254, 0.0
      %vm287 = vcmp.gt.f32.partialorder %v255, 0.0
      %vm288 = vcmp.gt.f32.partialorder %v256, 0.0
      %vm289 = vcmp.gt.f32.partialorder %v257, 0.0
      %vm290 = vcmp.gt.f32.partialorder %v258, 0.0
      %vm291 = vcmp.gt.f32.partialorder %v259, 0.0
      %vm292 = vcmp.gt.f32.partialorder %v260, 0.0
      %vm293 = vcmp.gt.f32.partialorder %v261, 0.0
      %vm294 = vcmp.gt.f32.partialorder %v262, 0.0
      %vm295 = vcmp.gt.f32.partialorder %v263, 0.0
      %vm296 = vcmp.gt.f32.partialorder %v264, 0.0
      %vm297 = vcmp.gt.f32.partialorder %v265, 0.0
      %vm298 = vcmp.gt.f32.partialorder %v266, 0.0
      %vm299 = vcmp.gt.f32.partialorder %v267, 0.0
      %vm300 = vcmp.gt.f32.partialorder %v268, 0.0
      %vm301 = vcmp.gt.f32.partialorder %v269, 0.0
      %vm302 = vcmp.gt.f32.partialorder %v270, 0.0
      %vm303 = vcmp.gt.f32.partialorder %v271, 0.0
      %vm304 = vcmp.gt.f32.partialorder %v272, 0.0
      %vm305 = vcmp.gt.f32.partialorder %v273, 0.0
      %vm306 = vcmp.gt.f32.partialorder %v274, 0.0
      %vm307 = vcmp.gt.f32.partialorder %v275, 0.0
      %vm308 = vcmp.gt.f32.partialorder %v276, 0.0
      %vm309 = vcmp.gt.f32.partialorder %v277, 0.0
      %vm310 = vcmp.gt.f32.partialorder %v278, 0.0
      %vm311 = vcmp.gt.f32.partialorder %v279, 0.0
      %vm312 = vcmp.gt.f32.partialorder %v280, 0.0
      %v313 = vmul.f32 %v249, 0.2
      %v314 = vmul.f32 %v250, 0.2
      %v315 = vmul.f32 %v251, 0.2
      %v316 = vmul.f32 %v252, 0.2
      %v317 = vmul.f32 %v253, 0.2
      %v318 = vmul.f32 %v254, 0.2
      %v319 = vmul.f32 %v255, 0.2
      %v320 = vmul.f32 %v256, 0.2
      %v321 = vmul.f32 %v257, 0.2
      %v322 = vmul.f32 %v258, 0.2
      %v323 = vmul.f32 %v259, 0.2
      %v324 = vmul.f32 %v260, 0.2
      %v325 = vmul.f32 %v261, 0.2
      %v326 = vmul.f32 %v262, 0.2
      %v327 = vmul.f32 %v263, 0.2
      %v328 = vmul.f32 %v264, 0.2
      %v329 = vmul.f32 %v265, 0.2
      %v330 = vmul.f32 %v266, 0.2
      %v331 = vmul.f32 %v267, 0.2
      %v332 = vmul.f32 %v268, 0.2
      %v333 = vmul.f32 %v269, 0.2
      %v334 = vmul.f32 %v270, 0.2
      %v335 = vmul.f32 %v271, 0.2
      %v336 = vmul.f32 %v272, 0.2
      %v337 = vmul.f32 %v273, 0.2
      %v338 = vmul.f32 %v274, 0.2
      %v339 = vmul.f32 %v275, 0.2
      %v340 = vmul.f32 %v276, 0.2
      %v341 = vmul.f32 %v277, 0.2
      %v342 = vmul.f32 %v278, 0.2
      %v343 = vmul.f32 %v279, 0.2
      %v344 = vmul.f32 %v280, 0.2
      %v345 = vsel %vm281, %v249, %v313
      %v346 = vsel %vm282, %v250, %v314
      %v347 = vsel %vm283, %v251, %v315
      %v348 = vsel %vm284, %v252, %v316
      %v349 = vsel %vm285, %v253, %v317
      %v350 = vsel %vm286, %v254, %v318
      %v351 = vsel %vm287, %v255, %v319
      %v352 = vsel %vm288, %v256, %v320
      %v353 = vsel %vm289, %v257, %v321
      %v354 = vsel %vm290, %v258, %v322
      %v355 = vsel %vm291, %v259, %v323
      %v356 = vsel %vm292, %v260, %v324
      %v357 = vsel %vm293, %v261, %v325
      %v358 = vsel %vm294, %v262, %v326
      %v359 = vsel %vm295, %v263, %v327
      %v360 = vsel %vm296, %v264, %v328
      %v361 = vsel %vm297, %v265, %v329
      %v362 = vsel %vm298, %v266, %v330
      %v363 = vsel %vm299, %v267, %v331
      %v364 = vsel %vm300, %v268, %v332
      %v365 = vsel %vm301, %v269, %v333
      %v366 = vsel %vm302, %v270, %v334
      %v367 = vsel %vm303, %v271, %v335
      %v368 = vsel %vm304, %v272, %v336
      %v369 = vsel %vm305, %v273, %v337
      %v370 = vsel %vm306, %v274, %v338
      %v371 = vsel %vm307, %v275, %v339
      %v372 = vsel %vm308, %v276, %v340
      %v373 = vsel %vm309, %v277, %v341
      %v374 = vsel %vm310, %v278, %v342
      %v375 = vsel %vm311, %v279, %v343
      %v376 = vsel %vm312, %v280, %v344
      %v377 = vpack.c.bf16 %v346, %v345
      %v378 = vpack.c.bf16 %v348, %v347
      %v379 = vpack.c.bf16 %v350, %v349
      %v380 = vpack.c.bf16 %v352, %v351
      %v381 = vpack.c.bf16 %v354, %v353
      %v382 = vpack.c.bf16 %v356, %v355
      %v383 = vpack.c.bf16 %v358, %v357
      %v384 = vpack.c.bf16 %v360, %v359
      %v385 = vpack.c.bf16 %v362, %v361
      %v386 = vpack.c.bf16 %v364, %v363
      %v387 = vpack.c.bf16 %v366, %v365
      %v388 = vpack.c.bf16 %v368, %v367
      %v389 = vpack.c.bf16 %v370, %v369
      %v390 = vpack.c.bf16 %v372, %v371
      %v391 = vpack.c.bf16 %v374, %v373
      %v392 = vpack.c.bf16 %v376, %v375
      %v409 = vunpack.c.l.b16 %v377
      %v410 = vunpack.c.h.b16 %v377
      %v411 = vunpack.c.l.b16 %v378
      %v412 = vunpack.c.h.b16 %v378
      %v413 = vunpack.c.l.b16 %v379
      %v414 = vunpack.c.h.b16 %v379
      %v415 = vunpack.c.l.b16 %v380
      %v416 = vunpack.c.h.b16 %v380
      %v417 = vunpack.c.l.b16 %v381
      %v418 = vunpack.c.h.b16 %v381
      %v419 = vunpack.c.l.b16 %v382
      %v420 = vunpack.c.h.b16 %v382
      %v421 = vunpack.c.l.b16 %v383
      %v422 = vunpack.c.h.b16 %v383
      %v423 = vunpack.c.l.b16 %v384
      %v424 = vunpack.c.h.b16 %v384
      %v425 = vunpack.c.l.b16 %v385
      %v426 = vunpack.c.h.b16 %v385
      %v427 = vunpack.c.l.b16 %v386
      %v428 = vunpack.c.h.b16 %v386
      %v429 = vunpack.c.l.b16 %v387
      %v430 = vunpack.c.h.b16 %v387
      %v431 = vunpack.c.l.b16 %v388
      %v432 = vunpack.c.h.b16 %v388
      %v433 = vunpack.c.l.b16 %v389
      %v434 = vunpack.c.h.b16 %v389
      %v435 = vunpack.c.l.b16 %v390
      %v436 = vunpack.c.h.b16 %v390
      %v437 = vunpack.c.l.b16 %v391
      %v438 = vunpack.c.h.b16 %v391
      %v439 = vunpack.c.l.b16 %v392
      %v440 = vunpack.c.h.b16 %v392
      %v441 = vpack.c.b16 %v409, %v409
      %v442 = vpack.c.b16 %v410, %v410
      %v443 = vpack.c.b16 %v411, %v411
      %v444 = vpack.c.b16 %v412, %v412
      %v445 = vpack.c.b16 %v413, %v413
      %v446 = vpack.c.b16 %v414, %v414
      %v447 = vpack.c.b16 %v415, %v415
      %v448 = vpack.c.b16 %v416, %v416
      %v449 = vpack.c.b16 %v417, %v417
      %v450 = vpack.c.b16 %v418, %v418
      %v451 = vpack.c.b16 %v419, %v419
      %v452 = vpack.c.b16 %v420, %v420
      %v453 = vpack.c.b16 %v421, %v421
      %v454 = vpack.c.b16 %v422, %v422
      %v455 = vpack.c.b16 %v423, %v423
      %v456 = vpack.c.b16 %v424, %v424
      %v457 = vpack.c.b16 %v425, %v425
      %v458 = vpack.c.b16 %v426, %v426
      %v459 = vpack.c.b16 %v427, %v427
      %v460 = vpack.c.b16 %v428, %v428
      %v461 = vpack.c.b16 %v429, %v429
      %v462 = vpack.c.b16 %v430, %v430
      %v463 = vpack.c.b16 %v431, %v431
      %v464 = vpack.c.b16 %v432, %v432
      %v465 = vpack.c.b16 %v433, %v433
      %v466 = vpack.c.b16 %v434, %v434
      %v467 = vpack.c.b16 %v435, %v435
      %v468 = vpack.c.b16 %v436, %v436
      %v469 = vpack.c.b16 %v437, %v437
      %v470 = vpack.c.b16 %v438, %v438
      %v471 = vpack.c.b16 %v439, %v439
      %v472 = vpack.c.b16 %v440, %v440
      %vm505 = vcmask 27648
      %506 = vst.msk [vmem:[%s170] sm:$0xf] %vm505, %v441
      %507 = vst.msk [vmem:[%s170 + $0x4] sm:$0xf] %vm505, %v442
      %508 = vst.msk [vmem:[%s170 + $0x8] sm:$0xf] %vm505, %v443
      %509 = vst.msk [vmem:[%s170 + $0xc] sm:$0xf] %vm505, %v444
      %510 = vst.msk [vmem:[%s170 + $0x10] sm:$0xf] %vm505, %v445
      %511 = vst.msk [vmem:[%s170 + $0x14] sm:$0xf] %vm505, %v446
      %512 = vst.msk [vmem:[%s170 + $0x18] sm:$0xf] %vm505, %v447
      %513 = vst.msk [vmem:[%s170 + $0x1c] sm:$0xf] %vm505, %v448
      %514 = vst.msk [vmem:[%s170 + $0x20] sm:$0xf] %vm505, %v449
      %515 = vst.msk [vmem:[%s170 + $0x24] sm:$0xf] %vm505, %v450
      %516 = vst.msk [vmem:[%s170 + $0x28] sm:$0xf] %vm505, %v451
      %517 = vst.msk [vmem:[%s170 + $0x2c] sm:$0xf] %vm505, %v452
      %518 = vst.msk [vmem:[%s170 + $0x30] sm:$0xf] %vm505, %v453
      %519 = vst.msk [vmem:[%s170 + $0x34] sm:$0xf] %vm505, %v454
      %520 = vst.msk [vmem:[%s170 + $0x38] sm:$0xf] %vm505, %v455
      %521 = vst.msk [vmem:[%s170 + $0x3c] sm:$0xf] %vm505, %v456
      %522 = vst.msk [vmem:[%s170 + $0x40] sm:$0xf] %vm505, %v457
      %523 = vst.msk [vmem:[%s170 + $0x44] sm:$0xf] %vm505, %v458
      %524 = vst.msk [vmem:[%s170 + $0x48] sm:$0xf] %vm505, %v459
      %525 = vst.msk [vmem:[%s170 + $0x4c] sm:$0xf] %vm505, %v460
      %526 = vst.msk [vmem:[%s170 + $0x50] sm:$0xf] %vm505, %v461
      %527 = vst.msk [vmem:[%s170 + $0x54] sm:$0xf] %vm505, %v462
      %528 = vst.msk [vmem:[%s170 + $0x58] sm:$0xf] %vm505, %v463
      %529 = vst.msk [vmem:[%s170 + $0x5c] sm:$0xf] %vm505, %v464
      %530 = vst.msk [vmem:[%s170 + $0x60] sm:$0xf] %vm505, %v465
      %531 = vst.msk [vmem:[%s170 + $0x64] sm:$0xf] %vm505, %v466
      %532 = vst.msk [vmem:[%s170 + $0x68] sm:$0xf] %vm505, %v467
      %533 = vst.msk [vmem:[%s170 + $0x6c] sm:$0xf] %vm505, %v468
      %534 = vst.msk [vmem:[%s170 + $0x70] sm:$0xf] %vm505, %v469
      %535 = vst.msk [vmem:[%s170 + $0x74] sm:$0xf] %vm505, %v470
      %536 = vst.msk [vmem:[%s170 + $0x78] sm:$0xf] %vm505, %v471
      %537 = vst.msk [vmem:[%s170 + $0x7c] sm:$0xf] %vm505, %v472
      %p538 = scmp.lt.s32.totalorder %s14, 1
      %s539 = scalar_select %p538, %s14, 1
      %s540 = smul.addr %s539, 32
      %s541 = smul.addr %s540, 4
      %s542 = scalar_lea.vmem %s3, %s541
      // Predicated region
      $region33: #{encoder_forward.10} parent=31 // pred_check
        %p543 = pneg %p100
      $region34: #{encoder_forward.10} parent=31 // pred_check_branch
        %545 = sbr.rel (%p543) target = $region36
      $region35: #{encoder_forward.10} parent=31 // pred_region
        _
      $region36: #{encoder_forward.10} parent=31 // pred_fallthru
        _
    $region32: #{encoder_forward.10} parent=5 // pred_fallthru
      _
    %p546 = scmp.le.s32.totalorder 2, %s9
    // Predicated region
    $region37: #{encoder_forward.10} parent=5 // pred_check
      %p547 = pneg %p546
    $region38: #{encoder_forward.10} parent=5 // pred_check_branch
      %549 = sbr.rel (%p547) target = $region40
    $region39: #{encoder_forward.10} parent=5 // pred_region
      %s550 = ssub.s32 %s9, 2
      // Predicated region
      $region41: #{encoder_forward.10} parent=39 // pred_check
        %p551 = pneg %p106
      $region42: #{encoder_forward.10} parent=39 // pred_check_branch
        %553 = sbr.rel (%p551) target = $region44
      $region43: #{encoder_forward.10} parent=39 // pred_region
        %p554 = scmp.lt.s32.totalorder %s15, 1
        %s555 = scalar_select %p554, %s15, 1
        %s556 = smul.addr %s555, 32
        %s557 = smul.addr %s556, 4
        %s558 = scalar_lea.vmem %s3, %s557
      $region44: #{encoder_forward.10} parent=39 // pred_fallthru
        _
    $region40: #{encoder_forward.10} parent=5 // pred_fallthru
      _
  $region6: #{encoder_forward.10} parent=0 // loop_footer
    %s13 = sadd.s32 1, %s9
  $region7: #{encoder_forward.10} parent=0 // loop_footer_branch
    %8 = sbr.rel target = $region3
  $region8: #{encoder_forward.10} parent=0 // loop_exit
    _

// kernel: encoder_forward.9
$region0: #{encoder_forward.9}
  #allocation0 [shape = 'u32[]', space=smem, size = 0x4, offset = 0x4, fixed_abs, tag = 'smem constant byte address 0x4 - core index']
  #allocation1 [shape = 'u32[144,128]{1,0:T(1,128)}', space=vmem, size = 0x12000, scoped, tag = 'internal scratch']
  #allocation2 [shape = 'f32[2,4]{1,0:T(2,128)}', space=vmem, size = 0x400, scoped, tag = 'scratch operand']
  %s0 = inlined_call_operand.vmem [shape: bf16[2,18,18,3], index: 0, kind: input, shape index: {}]
  %s1 = inlined_call_operand.vmem [shape: bf16[27,4], index: 1, kind: input, shape index: {}]
  %s2 = inlined_call_operand.vmem [shape: f32[2,256,4], index: 2, kind: output, shape index: {0}]
  %s3 = inlined_call_operand.vmem [shape: f32[2,4], index: 3, kind: output, shape index: {1}]
  %4 = xla_tuple %s2, %s3
  %s5 = sld [smem:[#allocation0]]
  $region57: #{encoder_forward.9} parent=0
    _
  %s7 = ssub.s32 1, %s5
  %s8 = scalar_select 0, %s7, %s5
  loop: start=0, step=1, limit=4
  $region2: #{encoder_forward.9} parent=0 // loop_pre_header
    _
  $region3: #{encoder_forward.9} parent=0 // loop_header
    %s10 = sphi 0, %s14
    %p11 = scmp.ge.s32.totalorder %s10, 4
    %s20 = sphi 0, %s22
    %s23 = sphi 0, %s20
    %s24 = sphi 0, %s23
    %s40 = sphi 0, %s24
    %s44 = sphi 0, %s44
    %s46 = sphi 0, %s44
    %s47 = sphi 0, %s46
    %s61 = sphi 0, %s47
    %s67 = sphi 0, %s69
    %s70 = sphi 0, %s67
    %s71 = sphi 0, %s70
    %s87 = sphi 0, %s71
    %s91 = sphi 0, %s91
    %s93 = sphi 0, %s91
    %s94 = sphi 0, %s93
    %s108 = sphi 0, %s94
  $region4: #{encoder_forward.9} parent=0 // loop_header_branch
    %13 = sbr.rel (%p11) target = $region8
  $region5: #{encoder_forward.9} parent=0 // loop_body
    %s15 = ssub.s32 %s10, 1
    %s16 = ssub.s32 %s10, 2
    %s17 = sadd.s32 %s10, 1
    %s18 = ssub.s32 %s10, %s17
    %p19 = scmp.eq.s32.totalorder %s18, 0
    %s21 = sadd.s32 %s20, 1
    %s22 = scalar_select %p19, %s20, %s21
    %p25 = pneg %p19
    %p26 = scmp.eq.s32.totalorder %s10, 1
    %p27 = por %p25, %p26
    %p28 = scmp.ne.s32.totalorder %s20, %s23
    %p29 = scmp.eq.s32.totalorder %s10, 0
    %p30 = por %p28, %p29
    %p31 = scmp.ne.s32.totalorder %s20, %s23
    %p32 = scmp.eq.s32.totalorder %s15, 1
    %p33 = por %p31, %p32
    %p34 = scmp.ne.s32.totalorder %s23, %s24
    %p35 = scmp.eq.s32.totalorder %s15, 0
    %p36 = por %p34, %p35
    %p37 = scmp.ne.s32.totalorder %s23, %s24
    %p38 = scmp.eq.s32.totalorder %s16, 1
    %p39 = por %p37, %p38
    %p41 = scmp.ne.s32.totalorder %s24, %s40
    %p42 = scmp.eq.s32.totalorder %s16, 0
    %p43 = por %p41, %p42
    %s45 = sadd.s32 %s44, 1
    %p48 = scmp.eq.s32.totalorder %s10, 1
    %p49 = scmp.ne.s32.totalorder %s44, %s46
    %p50 = scmp.eq.s32.totalorder %s10, 0
    %p51 = por %p49, %p50
    %p52 = scmp.ne.s32.totalorder %s44, %s46
    %p53 = scmp.eq.s32.totalorder %s15, 1
    %p54 = por %p52, %p53
    %p55 = scmp.ne.s32.totalorder %s46, %s47
    %p56 = scmp.eq.s32.totalorder %s15, 0
    %p57 = por %p55, %p56
    %p58 = scmp.ne.s32.totalorder %s46, %s47
    %p59 = scmp.eq.s32.totalorder %s16, 1
    %p60 = por %p58, %p59
    %p62 = scmp.ne.s32.totalorder %s47, %s61
    %p63 = scmp.eq.s32.totalorder %s16, 0
    %p64 = por %p62, %p63
    %s65 = ssub.s32 %s10, %s17
    %p66 = scmp.eq.s32.totalorder %s65, 0
    %s68 = sadd.s32 %s67, 1
    %s69 = scalar_select %p66, %s67, %s68
    %p72 = pneg %p66
    %p73 = scmp.eq.s32.totalorder %s10, 1
    %p74 = por %p72, %p73
    %p75 = scmp.ne.s32.totalorder %s67, %s70
    %p76 = scmp.eq.s32.totalorder %s10, 0
    %p77 = por %p75, %p76
    %p78 = scmp.ne.s32.totalorder %s67, %s70
    %p79 = scmp.eq.s32.totalorder %s15, 1
    %p80 = por %p78, %p79
    %p81 = scmp.ne.s32.totalorder %s70, %s71
    %p82 = scmp.eq.s32.totalorder %s15, 0
    %p83 = por %p81, %p82
    %p84 = scmp.ne.s32.totalorder %s70, %s71
    %p85 = scmp.eq.s32.totalorder %s16, 1
    %p86 = por %p84, %p85
    %p88 = scmp.ne.s32.totalorder %s71, %s87
    %p89 = scmp.eq.s32.totalorder %s16, 0
    %p90 = por %p88, %p89
    %s92 = sadd.s32 %s91, 1
    %p95 = scmp.eq.s32.totalorder %s10, 1
    %p96 = scmp.ne.s32.totalorder %s91, %s93
    %p97 = scmp.eq.s32.totalorder %s10, 0
    %p98 = por %p96, %p97
    %p99 = scmp.ne.s32.totalorder %s91, %s93
    %p100 = scmp.eq.s32.totalorder %s15, 1
    %p101 = por %p99, %p100
    %p102 = scmp.ne.s32.totalorder %s93, %s94
    %p103 = scmp.eq.s32.totalorder %s15, 0
    %p104 = por %p102, %p103
    %p105 = scmp.ne.s32.totalorder %s93, %s94
    %p106 = scmp.eq.s32.totalorder %s16, 1
    %p107 = por %p105, %p106
    %p109 = scmp.ne.s32.totalorder %s94, %s108
    %p110 = scmp.eq.s32.totalorder %s16, 0
    %p111 = por %p109, %p110
    %p112 = scmp.le.s32.totalorder 1, %s10
    %p113 = scmp.lt.s32.totalorder %s10, 3
    %p114 = pnand %p112, %p113
    %p115 = pneg %p114
    // Predicated region
    $region9: #{encoder_forward.9} parent=5 // pred_check
      _
    $region10: #{encoder_forward.9} parent=5 // pred_check_branch
      %117 = sbr.rel (%p114) target = $region12
    $region11: #{encoder_forward.9} parent=5 // pred_region
      %s118 = ssub.s32 %s10, 1
      // Predicated region
      $region13: #{encoder_forward.9} parent=11 // pred_check
        %p119 = pneg %p57
      $region14: #{encoder_forward.9} parent=11 // pred_check_branch
        %121 = sbr.rel (%p119) target = $region16
      $region15: #{encoder_forward.9} parent=11 // pred_region
        _
      $region16: #{encoder_forward.9} parent=11 // pred_fallthru
        _
    $region12: #{encoder_forward.9} parent=5 // pred_fallthru
      _
    %p122 = scmp.lt.s32.totalorder %s10, 2
    // Predicated region
    $region17: #{encoder_forward.9} parent=5 // pred_check
      %p123 = pneg %p122
    $region18: #{encoder_forward.9} parent=5 // pred_check_branch
      %125 = sbr.rel (%p123) target = $region20
    $region19: #{encoder_forward.9} parent=5 // pred_region
      // Predicated region
      $region21: #{encoder_forward.9} parent=19 // pred_check
        %p126 = pneg %p30
      $region22: #{encoder_forward.9} parent=19 // pred_check_branch
        %128 = sbr.rel (%p126) target = $region24
      $region23: #{encoder_forward.9} parent=19 // pred_region
        %p129 = scmp.lt.s32.totalorder %s10, 1
        %s130 = scalar_select %p129, %s10, 1
        %s131 = smul.addr %s130, 54
        %s132 = smul.addr %s131, 4
        %s133 = scalar_lea.vmem %s0, %s132
      $region24: #{encoder_forward.9} parent=19 // pred_fallthru
        _
    $region20: #{encoder_forward.9} parent=5 // pred_fallthru
      _
    %p134 = scmp.le.s32.totalorder 1, %s10
    %p135 = scmp.lt.s32.totalorder %s10, 3
    %p136 = pnand %p134, %p135
    %p137 = pneg %p136
    // Predicated region
    $region25: #{encoder_forward.9} parent=5 // pred_check
      _
    $region26: #{encoder_forward.9} parent=5 // pred_check_branch
      %139 = sbr.rel (%p136) target = $region28
    $region27: #{encoder_forward.9} parent=5 // pred_region
      %s140 = ssub.s32 %s10, 1
      %p141 = scmp.lt.s32.totalorder %s15, 1
      %s142 = scalar_select %p141, %s15, 1
      %s143 = smul.addr %s142, 54
      %s144 = smul.addr %s143, 4
      %s145 = scalar_lea.vmem %s0, %s144
      %p146 = pneg %p36
      %p147 = pneg %p33
      %p148 = pneg %p57
      %p149 = pneg %p54
      %p150 = pneg %p83
      %p151 = pneg %p80
      %p152 = scmp.lt.s32.totalorder %s15, 1
      %s153 = scalar_select %p152, %s15, 1
      %s154 = smul.addr %s153, 32
      %s155 = smul.addr %s154, 8
      %s156 = scalar_lea.vmem %s2, %s155
      %p157 = pneg %p104
      %p158 = pneg %p101
      %p159 = scmp.lt.s32.totalorder %s15, 1
      %s160 = scalar_select %p159, %s15, 1
      %s161 = smul.addr %s160, 54
      %s162 = smul.addr %s161, 4
      %s163 = scalar_lea.vmem %s0, %s162
      %p164 = scmp.lt.s32.totalorder %s15, 1
      %s165 = scalar_select %p164, %s15, 1
      %s166 = smul.addr %s165, 32
      %s167 = smul.addr %s166, 8
      %s168 = scalar_lea.vmem %s2, %s167
      %p170 = scmp.eq.s32.totalorder %s15, 0
      // Predicated region
      $region29: #{encoder_forward.9} parent=27 // pred_check
        %p171 = pneg %p170
      $region30: #{encoder_forward.9} parent=27 // pred_check_branch
        %173 = sbr.rel (%p171) target = $region32
      $region31: #{encoder_forward.9} parent=27 // pred_region
        %vm174 = vcmask 25600
        %175 = vst.msk [vmem:[#allocation2] sm:$0x3] %vm174, 0.0
      $region32: #{encoder_forward.9} parent=27 // pred_fallthru
        _
      %v176 = vld [vmem:[%s163] sm:$0xf]
      %v177 = vld [vmem:[%s163 + $0x4] sm:$0xf]
      %v178 = vld [vmem:[%s163 + $0x8] sm:$0x1]
      %v179 = vld [vmem:[%s163 + $0xc] sm:$0xf]
      %v180 = vld [vmem:[%s163 + $0x10] sm:$0xf]
      %v181 = vld [vmem:[%s163 + $0x14] sm:$0x1]
      %v182 = vld [vmem:[%s163 + $0x18] sm:$0xf]
      %v183 = vld [vmem:[%s163 + $0x1c] sm:$0xf]
      %v184 = vld [vmem:[%s163 + $0x20] sm:$0x1]
      %v185 = vld [vmem:[%s163 + $0x24] sm:$0xf]
      %v186 = vld [vmem:[%s163 + $0x28] sm:$0xf]
      %v187 = vld [vmem:[%s163 + $0x2c] sm:$0x1]
      %v188 = vld [vmem:[%s163 + $0x30] sm:$0xf]
      %v189 = vld [vmem:[%s163 + $0x34] sm:$0xf]
      %v190 = vld [vmem:[%s163 + $0x38] sm:$0x1]
      %v191 = vld [vmem:[%s163 + $0x3c] sm:$0xf]
      %v192 = vld [vmem:[%s163 + $0x40] sm:$0xf]
      %v193 = vld [vmem:[%s163 + $0x44] sm:$0x1]
      %v194 = vld [vmem:[%s163 + $0x48] sm:$0xf]
      %v195 = vld [vmem:[%s163 + $0x4c] sm:$0xf]
      %v196 = vld [vmem:[%s163 + $0x50] sm:$0x1]
      %v197 = vld [vmem:[%s163 + $0x54] sm:$0xf]
      %v198 = vld [vmem:[%s163 + $0x58] sm:$0xf]
      %v199 = vld [vmem:[%s163 + $0x5c] sm:$0x1]
      %v200 = vld [vmem:[%s163 + $0x60] sm:$0xf]
      %v201 = vld [vmem:[%s163 + $0x64] sm:$0xf]
      %v202 = vld [vmem:[%s163 + $0x68] sm:$0x1]
      %v203 = vld [vmem:[%s163 + $0x6c] sm:$0xf]
      %v204 = vld [vmem:[%s163 + $0x70] sm:$0xf]
      %v205 = vld [vmem:[%s163 + $0x74] sm:$0x1]
      %v206 = vld [vmem:[%s163 + $0x78] sm:$0xf]
      %v207 = vld [vmem:[%s163 + $0x7c] sm:$0xf]
      %v208 = vld [vmem:[%s163 + $0x80] sm:$0x1]
      %v209 = vld [vmem:[%s163 + $0x84] sm:$0xf]
      %v210 = vld [vmem:[%s163 + $0x88] sm:$0xf]
      %v211 = vld [vmem:[%s163 + $0x8c] sm:$0x1]
      %v212 = vld [vmem:[%s163 + $0x90] sm:$0xf]
      %v213 = vld [vmem:[%s163 + $0x94] sm:$0xf]
      %v214 = vld [vmem:[%s163 + $0x98] sm:$0x1]
      %v215 = vld [vmem:[%s163 + $0x9c] sm:$0xf]
      %v216 = vld [vmem:[%s163 + $0xa0] sm:$0xf]
      %v217 = vld [vmem:[%s163 + $0xa4] sm:$0x1]
      %v218 = vld [vmem:[%s163 + $0xa8] sm:$0xf]
      %v219 = vld [vmem:[%s163 + $0xac] sm:$0xf]
      %v220 = vld [vmem:[%s163 + $0xb0] sm:$0x1]
      %v221 = vld [vmem:[%s163 + $0xb4] sm:$0xf]
      %v222 = vld [vmem:[%s163 + $0xb8] sm:$0xf]
      %v223 = vld [vmem:[%s163 + $0xbc] sm:$0x1]
      %v224 = vld [vmem:[%s163 + $0xc0] sm:$0xf]
      %v225 = vld [vmem:[%s163 + $0xc4] sm:$0xf]
      %v226 = vld [vmem:[%s163 + $0xc8] sm:$0x1]
      %v227 = vld [vmem:[%s163 + $0xcc] sm:$0xf]
      %v228 = vld [vmem:[%s163 + $0xd0] sm:$0xf]
      %v229 = vld [vmem:[%s163 + $0xd4] sm:$0x1]
      %v230 = vld [vmem:[%s1] sm:$0xf]
      %v231 = vld [vmem:[%s1 + $0x4] sm:$0xf]
      %v232 = vld [vmem:[%s1 + $0x8] sm:$0xf]
      %v233 = vld [vmem:[%s1 + $0xc] sm:$0x3]
      %v266 = vunpack.c.l.b16 %v176
      %v267 = vunpack.c.l.b16 %v177
      %v268 = vunpack.c.l.b16 %v179
      %v269 = vunpack.c.l.b16 %v180
      %v270 = vunpack.c.l.b16 %v182
      %v271 = vunpack.c.l.b16 %v183
      %v272 = vunpack.c.l.b16 %v185
      %v273 = vunpack.c.l.b16 %v186
      %v274 = vunpack.c.l.b16 %v188
      %v275 = vunpack.c.l.b16 %v189
      %v276 = vunpack.c.l.b16 %v191
      %v277 = vunpack.c.l.b16 %v192
      %v278 = vunpack.c.l.b16 %v194
      %v279 = vunpack.c.l.b16 %v195
      %v280 = vunpack.c.l.b16 %v197
      %v281 = vunpack.c.l.b16 %v198
      %v282 = vunpack.c.l.b16 %v200
      %v283 = vunpack.c.l.b16 %v201
      %v284 = vunpack.c.l.b16 %v203
      %v285 = vunpack.c.l.b16 %v204
      %v286 = vunpack.c.l.b16 %v206
      %v287 = vunpack.c.l.b16 %v207
      %v288 = vunpack.c.l.b16 %v209
      %v289 = vunpack.c.l.b16 %v210
      %v290 = vunpack.c.l.b16 %v212
      %v291 = vunpack.c.l.b16 %v213
      %v292 = vunpack.c.l.b16 %v215
      %v293 = vunpack.c.l.b16 %v216
      %v294 = vunpack.c.l.b16 %v218
      %v295 = vunpack.c.l.b16 %v219
      %v296 = vunpack.c.l.b16 %v221
      %v297 = vunpack.c.l.b16 %v222
      %v298 = vpack.c.b16 %v267, %v266
      %v299 = vpack.c.b16 %v269, %v268
      %v300 = vpack.c.b16 %v271, %v270
      %v301 = vpack.c.b16 %v273, %v272
      %v302 = vpack.c.b16 %v275, %v274
      %v303 = vpack.c.b16 %v277, %v276
      %v304 = vpack.c.b16 %v279, %v278
      %v305 = vpack.c.b16 %v281, %v280
      %v306 = vpack.c.b16 %v283, %v282
      %v307 = vpack.c.b16 %v285, %v284
      %v308 = vpack.c.b16 %v287, %v286
      %v309 = vpack.c.b16 %v289, %v288
      %v310 = vpack.c.b16 %v291, %v290
      %v311 = vpack.c.b16 %v293, %v292
      %v312 = vpack.c.b16 %v295, %v294
      %v313 = vpack.c.b16 %v297, %v296
      %v330 = vunpack.c.l.b16 %v178
      %v331 = vunpack.c.l.b16 %v181
      %v332 = vunpack.c.l.b16 %v184
      %v333 = vunpack.c.l.b16 %v187
      %v334 = vunpack.c.l.b16 %v190
      %v335 = vunpack.c.l.b16 %v193
      %v336 = vunpack.c.l.b16 %v196
      %v337 = vunpack.c.l.b16 %v199
      %v338 = vunpack.c.l.b16 %v202
      %v339 = vunpack.c.l.b16 %v205
      %v340 = vunpack.c.l.b16 %v208
      %v341 = vunpack.c.l.b16 %v211
      %v342 = vunpack.c.l.b16 %v214
      %v343 = vunpack.c.l.b16 %v217
      %v344 = vunpack.c.l.b16 %v220
      %v345 = vunpack.c.l.b16 %v223
      %v346 = vpack.c.b16 %v330, %v330
      %v347 = vpack.c.b16 %v331, %v331
      %v348 = vpack.c.b16 %v332, %v332
      %v349 = vpack.c.b16 %v333, %v333
      %v350 = vpack.c.b16 %v334, %v334
      %v351 = vpack.c.b16 %v335, %v335
      %v352 = vpack.c.b16 %v336, %v336
      %v353 = vpack.c.b16 %v337, %v337
      %v354 = vpack.c.b16 %v338, %v338
      %v355 = vpack.c.b16 %v339, %v339
      %v356 = vpack.c.b16 %v340, %v340
      %v357 = vpack.c.b16 %v341, %v341
      %v358 = vpack.c.b16 %v342, %v342
      %v359 = vpack.c.b16 %v343, %v343
      %v360 = vpack.c.b16 %v344, %v344
      %v361 = vpack.c.b16 %v345, %v345
      %vm362 = vsmask.f32 7424
      %v364 = vshrl.u32 %v298, 16
      %v366 = vshll.u32 %v298, 16
      %v368 = vrot.slane %v366, 1
      %v369 = vor.u32 %v364, %v368
      %v371 = vshll.u32 %v346, 16
      %v373 = vrot.slane %v371, 1
      %v374 = vsel %vm362, %v369, %v373
      %v376 = vshrl.u32 %v299, 16
      %v378 = vshll.u32 %v299, 16
      %v380 = vrot.slane %v378, 1
      %v381 = vor.u32 %v376, %v380
      %v383 = vshll.u32 %v347, 16
      %v385 = vrot.slane %v383, 1
      %v386 = vsel %vm362, %v381, %v385
      %v388 = vshrl.u32 %v300, 16
      %v390 = vshll.u32 %v300, 16
      %v392 = vrot.slane %v390, 1
      %v393 = vor.u32 %v388, %v392
      %v395 = vshll.u32 %v348, 16
      %v397 = vrot.slane %v395, 1
      %v398 = vsel %vm362, %v393, %v397
      %v400 = vshrl.u32 %v301, 16
      %v402 = vshll.u32 %v301, 16
      %v404 = vrot.slane %v402, 1
      %v405 = vor.u32 %v400, %v404
      %v407 = vshll.u32 %v349, 16
      %v409 = vrot.slane %v407, 1
      %v410 = vsel %vm362, %v405, %v409
      %v412 = vshrl.u32 %v302, 16
      %v414 = vshll.u32 %v302, 16
      %v416 = vrot.slane %v414, 1
      %v417 = vor.u32 %v412, %v416
      %v419 = vshll.u32 %v350, 16
      %v421 = vrot.slane %v419, 1
      %v422 = vsel %vm362, %v417, %v421
      %v424 = vshrl.u32 %v303, 16
      %v426 = vshll.u32 %v303, 16
      %v428 = vrot.slane %v426, 1
      %v429 = vor.u32 %v424, %v428
      %v431 = vshll.u32 %v351, 16
      %v433 = vrot.slane %v431, 1
      %v434 = vsel %vm362, %v429, %v433
      %v436 = vshrl.u32 %v304, 16
      %v438 = vshll.u32 %v304, 16
      %v440 = vrot.slane %v438, 1
      %v441 = vor.u32 %v436, %v440
      %v443 = vshll.u32 %v352, 16
      %v445 = vrot.slane %v443, 1
      %v446 = vsel %vm362, %v441, %v445
      %v448 = vshrl.u32 %v305, 16
      %v450 = vshll.u32 %v305, 16
      %v452 = vrot.slane %v450, 1
      %v453 = vor.u32 %v448, %v452
      %v455 = vshll.u32 %v353, 16
      %v457 = vrot.slane %v455, 1
      %v458 = vsel %vm362, %v453, %v457
      %v460 = vshrl.u32 %v306, 16
      %v462 = vshll.u32 %v306, 16
      %v464 = vrot.slane %v462, 1
      %v465 = vor.u32 %v460, %v464
      %v467 = vshll.u32 %v354, 16
      %v469 = vrot.slane %v467, 1
      %v470 = vsel %vm362, %v465, %v469
      %v472 = vshrl.u32 %v307, 16
      %v474 = vshll.u32 %v307, 16
      %v476 = vrot.slane %v474, 1
      %v477 = vor.u32 %v472, %v476
      %v479 = vshll.u32 %v355, 16
      %v481 = vrot.slane %v479, 1
      %v482 = vsel %vm362, %v477, %v481
      %v484 = vshrl.u32 %v308, 16
      %v486 = vshll.u32 %v308, 16
      %v488 = vrot.slane %v486, 1
      %v489 = vor.u32 %v484, %v488
      %v491 = vshll.u32 %v356, 16
      %v493 = vrot.slane %v491, 1
      %v494 = vsel %vm362, %v489, %v493
      %v496 = vshrl.u32 %v309, 16
      %v498 = vshll.u32 %v309, 16
      %v500 = vrot.slane %v498, 1
      %v501 = vor.u32 %v496, %v500
      %v503 = vshll.u32 %v357, 16
      %v505 = vrot.slane %v503, 1
      %v506 = vsel %vm362, %v501, %v505
      %v508 = vshrl.u32 %v310, 16
      %v510 = vshll.u32 %v310, 16
      %v512 = vrot.slane %v510, 1
      %v513 = vor.u32 %v508, %v512
      %v515 = vshll.u32 %v358, 16
      %v517 = vrot.slane %v515, 1
      %v518 = vsel %vm362, %v513, %v517
      %v520 = vshrl.u32 %v311, 16
      %v522 = vshll.u32 %v311, 16
      %v524 = vrot.slane %v522, 1
      %v525 = vor.u32 %v520, %v524
      %v527 = vshll.u32 %v359, 16
      %v529 = vrot.slane %v527, 1
      %v530 = vsel %vm362, %v525, %v529
      %v532 = vshrl.u32 %v312, 16
      %v534 = vshll.u32 %v312, 16
      %v536 = vrot.slane %v534, 1
      %v537 = vor.u32 %v532, %v536
      %v539 = vshll.u32 %v360, 16
      %v541 = vrot.slane %v539, 1
      %v542 = vsel %vm362, %v537, %v541
      %v544 = vshrl.u32 %v313, 16
      %v546 = vshll.u32 %v313, 16
      %v548 = vrot.slane %v546, 1
      %v549 = vor.u32 %v544, %v548
      %v551 = vshll.u32 %v361, 16
      %v553 = vrot.slane %v551, 1
      %v554 = vsel %vm362, %v549, %v553
      %555 = vrot.lane.b32.xlu0 %v374, 3
      %v556 = vpop.permute.xlu0 %555
      %557 = vrot.lane.b32.xlu0 %v386, 3
      %v558 = vpop.permute.xlu0 %557
      %559 = vrot.lane.b32.xlu0 %v398, 3
      %v560 = vpop.permute.xlu0 %559
      %561 = vrot.lane.b32.xlu0 %v410, 3
      %v562 = vpop.permute.xlu0 %561
      %563 = vrot.lane.b32.xlu0 %v422, 3
      %v564 = vpop.permute.xlu0 %563
      %565 = vrot.lane.b32.xlu0 %v434, 3
      %v566 = vpop.permute.xlu0 %565
      %567 = vrot.lane.b32.xlu0 %v446, 3
      %v568 = vpop.permute.xlu0 %567
      %569 = vrot.lane.b32.xlu0 %v458, 3
      %v570 = vpop.permute.xlu0 %569
      %571 = vrot.lane.b32.xlu0 %v470, 3
      %v572 = vpop.permute.xlu0 %571
      %573 = vrot.lane.b32.xlu0 %v482, 3
      %v574 = vpop.permute.xlu0 %573
      %575 = vrot.lane.b32.xlu0 %v494, 3
      %v576 = vpop.permute.xlu0 %575
      %577 = vrot.lane.b32.xlu0 %v506, 3
      %v578 = vpop.permute.xlu0 %577
      %579 = vrot.lane.b32.xlu0 %v518, 3
      %v580 = vpop.permute.xlu0 %579
      %581 = vrot.lane.b32.xlu0 %v530, 3
      %v582 = vpop.permute.xlu0 %581
      %583 = vrot.lane.b32.xlu0 %v542, 3
      %v584 = vpop.permute.xlu0 %583
      %585 = vrot.lane.b32.xlu0 %v554, 3
      %v586 = vpop.permute.xlu0 %585
      %vm587 = vcmask 1046528
      %v588 = vrot.slane %v298, 1
      %v589 = vrot.slane %v346, 1
      %v590 = vsel %vm587, %v588, %v589
      %v591 = vrot.slane %v299, 1
      %v592 = vrot.slane %v347, 1
      %v593 = vsel %vm587, %v591, %v592
      %v594 = vrot.slane %v300, 1
      %v595 = vrot.slane %v348, 1
      %v596 = vsel %vm587, %v594, %v595
      %v597 = vrot.slane %v301, 1
      %v598 = vrot.slane %v349, 1
      %v599 = vsel %vm587, %v597, %v598
      %v600 = vrot.slane %v302, 1
      %v601 = vrot.slane %v350, 1
      %v602 = vsel %vm587, %v600, %v601
      %v603 = vrot.slane %v303, 1
      %v604 = vrot.slane %v351, 1
      %v605 = vsel %vm587, %v603, %v604
      %v606 = vrot.slane %v304, 1
      %v607 = vrot.slane %v352, 1
      %v608 = vsel %vm587, %v606, %v607
      %v609 = vrot.slane %v305, 1
      %v610 = vrot.slane %v353, 1
      %v611 = vsel %vm587, %v609, %v610
      %v612 = vrot.slane %v306, 1
      %v613 = vrot.slane %v354, 1
      %v614 = vsel %vm587, %v612, %v613
      %v615 = vrot.slane %v307, 1
      %v616 = vrot.slane %v355, 1
      %v617 = vsel %vm587, %v615, %v616
      %v618 = vrot.slane %v308, 1
      %v619 = vrot.slane %v356, 1
      %v620 = vsel %vm587, %v618, %v619
      %v621 = vrot.slane %v309, 1
      %v622 = vrot.slane %v357, 1
      %v623 = vsel %vm587, %v621, %v622
      %v624 = vrot.slane %v310, 1
      %v625 = vrot.slane %v358, 1
      %v626 = vsel %vm587, %v624, %v625
      %v627 = vrot.slane %v311, 1
      %v628 = vrot.slane %v359, 1
      %v629 = vsel %vm587, %v627, %v628
      %v630 = vrot.slane %v312, 1
      %v631 = vrot.slane %v360, 1
      %v632 = vsel %vm587, %v630, %v631
      %v633 = vrot.slane %v313, 1
      %v634 = vrot.slane %v361, 1
      %v635 = vsel %vm587, %v633, %v634
      %636 = vrot.lane.b32.xlu0 %v590, 6
      %v637 = vpop.permute.xlu0 %636
      %638 = vrot.lane.b32.xlu0 %v593, 6
      %v639 = vpop.permute.xlu0 %638
      %640 = vrot.lane.b32.xlu0 %v596, 6
      %v641 = vpop.permute.xlu0 %640
      %642 = vrot.lane.b32.xlu0 %v599, 6
      %v643 = vpop.permute.xlu0 %642
      %644 = vrot.lane.b32.xlu0 %v602, 6
      %v645 = vpop.permute.xlu0 %644
      %646 = vrot.lane.b32.xlu0 %v605, 6
      %v647 = vpop.permute.xlu0 %646
      %648 = vrot.lane.b32.xlu0 %v608, 6
      %v649 = vpop.permute.xlu0 %648
      %650 = vrot.lane.b32.xlu0 %v611, 6
      %v651 = vpop.permute.xlu0 %650
      %652 = vrot.lane.b32.xlu0 %v614, 6
      %v653 = vpop.permute.xlu0 %652
      %654 = vrot.lane.b32.xlu0 %v617, 6
      %v655 = vpop.permute.xlu0 %654
      %656 = vrot.lane.b32.xlu0 %v620, 6
      %v657 = vpop.permute.xlu0 %656
      %658 = vrot.lane.b32.xlu0 %v623, 6
      %v659 = vpop.permute.xlu0 %658
      %660 = vrot.lane.b32.xlu0 %v626, 6
      %v661 = vpop.permute.xlu0 %660
      %662 = vrot.lane.b32.xlu0 %v629, 6
      %v663 = vpop.permute.xlu0 %662
      %664 = vrot.lane.b32.xlu0 %v632, 6
      %v665 = vpop.permute.xlu0 %664
      %666 = vrot.lane.b32.xlu0 %v635, 6
      %v667 = vpop.permute.xlu0 %666
      %v670 = vunpack.c.l.b16 %v224
      %v671 = vunpack.c.l.b16 %v225
      %v672 = vpack.c.b16 %v671, %v670
      %673 = vrot.lane.b32.xlu0 %v299, 9
      %v674 = vpop.permute.xlu0 %673
      %675 = vrot.lane.b32.xlu0 %v300, 9
      %v676 = vpop.permute.xlu0 %675
      %677 = vrot.lane.b32.xlu0 %v301, 9
      %v678 = vpop.permute.xlu0 %677
      %679 = vrot.lane.b32.xlu0 %v302, 9
      %v680 = vpop.permute.xlu0 %679
      %681 = vrot.lane.b32.xlu0 %v303, 9
      %v682 = vpop.permute.xlu0 %681
      %683 = vrot.lane.b32.xlu0 %v304, 9
      %v684 = vpop.permute.xlu0 %683
      %685 = vrot.lane.b32.xlu0 %v305, 9
      %v686 = vpop.permute.xlu0 %685
      %687 = vrot.lane.b32.xlu0 %v306, 9
      %v688 = vpop.permute.xlu0 %687
      %689 = vrot.lane.b32.xlu0 %v307, 9
      %v690 = vpop.permute.xlu0 %689
      %691 = vrot.lane.b32.xlu0 %v308, 9
      %v692 = vpop.permute.xlu0 %691
      %693 = vrot.lane.b32.xlu0 %v309, 9
      %v694 = vpop.permute.xlu0 %693
      %695 = vrot.lane.b32.xlu0 %v310, 9
      %v696 = vpop.permute.xlu0 %695
      %697 = vrot.lane.b32.xlu0 %v311, 9
      %v698 = vpop.permute.xlu0 %697
      %699 = vrot.lane.b32.xlu0 %v312, 9
      %v700 = vpop.permute.xlu0 %699
      %701 = vrot.lane.b32.xlu0 %v313, 9
      %v702 = vpop.permute.xlu0 %701
      %703 = vrot.lane.b32.xlu0 %v672, 9
      %v704 = vpop.permute.xlu0 %703
      %v706 = vunpack.c.l.b16 %v226
      %v707 = vpack.c.b16 %v706, %v706
      %v709 = vshrl.u32 %v672, 16
      %v711 = vshll.u32 %v672, 16
      %v713 = vrot.slane %v711, 1
      %v714 = vor.u32 %v709, %v713
      %v716 = vshll.u32 %v707, 16
      %v718 = vrot.slane %v716, 1
      %v719 = vsel %vm362, %v714, %v718
      %720 = vrot.lane.b32.xlu0 %v386, 12
      %v721 = vpop.permute.xlu0 %720
      %722 = vrot.lane.b32.xlu0 %v398, 12
      %v723 = vpop.permute.xlu0 %722
      %724 = vrot.lane.b32.xlu0 %v410, 12
      %v725 = vpop.permute.xlu0 %724
      %726 = vrot.lane.b32.xlu0 %v422, 12
      %v727 = vpop.permute.xlu0 %726
      %728 = vrot.lane.b32.xlu0 %v434, 12
      %v729 = vpop.permute.xlu0 %728
      %730 = vrot.lane.b32.xlu0 %v446, 12
      %v731 = vpop.permute.xlu0 %730
      %732 = vrot.lane.b32.xlu0 %v458, 12
      %v733 = vpop.permute.xlu0 %732
      %734 = vrot.lane.b32.xlu0 %v470, 12
      %v735 = vpop.permute.xlu0 %734
      %736 = vrot.lane.b32.xlu0 %v482, 12
      %v737 = vpop.permute.xlu0 %736
      %738 = vrot.lane.b32.xlu0 %v494, 12
      %v739 = vpop.permute.xlu0 %738
      %740 = vrot.lane.b32.xlu0 %v506, 12
      %v741 = vpop.permute.xlu0 %740
      %742 = vrot.lane.b32.xlu0 %v518, 12
      %v743 = vpop.permute.xlu0 %742
      %744 = vrot.lane.b32.xlu0 %v530, 12
      %v745 = vpop.permute.xlu0 %744
      %746 = vrot.lane.b32.xlu0 %v542, 12
      %v747 = vpop.permute.xlu0 %746
      %748 = vrot.lane.b32.xlu0 %v554, 12
      %v749 = vpop.permute.xlu0 %748
      %750 = vrot.lane.b32.xlu0 %v719, 12
      %v751 = vpop.permute.xlu0 %750
      %v752 = vrot.slane %v672, 1
      %v753 = vrot.slane %v707, 1
      %v754 = vsel %vm587, %v752, %v753
      %755 = vrot.lane.b32.xlu0 %v593, 15
      %v756 = vpop.permute.xlu0 %755
      %757 = vrot.lane.b32.xlu0 %v596, 15
      %v758 = vpop.permute.xlu0 %757
      %759 = vrot.lane.b32.xlu0 %v599, 15
      %v760 = vpop.permute.xlu0 %759
      %761 = vrot.lane.b32.xlu0 %v602, 15
      %v762 = vpop.permute.xlu0 %761
      %763 = vrot.lane.b32.xlu0 %v605, 15
      %v764 = vpop.permute.xlu0 %763
      %765 = vrot.lane.b32.xlu0 %v608, 15
      %v766 = vpop.permute.xlu0 %765
      %767 = vrot.lane.b32.xlu0 %v611, 15
      %v768 = vpop.permute.xlu0 %767
      %769 = vrot.lane.b32.xlu0 %v614, 15
      %v770 = vpop.permute.xlu0 %769
      %771 = vrot.lane.b32.xlu0 %v617, 15
      %v772 = vpop.permute.xlu0 %771
      %773 = vrot.lane.b32.xlu0 %v620, 15
      %v774 = vpop.permute.xlu0 %773
      %775 = vrot.lane.b32.xlu0 %v623, 15
      %v776 = vpop.permute.xlu0 %775
      %777 = vrot.lane.b32.xlu0 %v626, 15
      %v778 = vpop.permute.xlu0 %777
      %779 = vrot.lane.b32.xlu0 %v629, 15
      %v780 = vpop.permute.xlu0 %779
      %781 = vrot.lane.b32.xlu0 %v632, 15
      %v782 = vpop.permute.xlu0 %781
      %783 = vrot.lane.b32.xlu0 %v635, 15
      %v784 = vpop.permute.xlu0 %783
      %785 = vrot.lane.b32.xlu0 %v754, 15
      %v786 = vpop.permute.xlu0 %785
      %v789 = vunpack.c.l.b16 %v227
      %v790 = vunpack.c.l.b16 %v228
      %v791 = vpack.c.b16 %v790, %v789
      %792 = vrot.lane.b32.xlu0 %v300, 18
      %v793 = vpop.permute.xlu0 %792
      %794 = vrot.lane.b32.xlu0 %v301, 18
      %v795 = vpop.permute.xlu0 %794
      %796 = vrot.lane.b32.xlu0 %v302, 18
      %v797 = vpop.permute.xlu0 %796
      %798 = vrot.lane.b32.xlu0 %v303, 18
      %v799 = vpop.permute.xlu0 %798
      %800 = vrot.lane.b32.xlu0 %v304, 18
      %v801 = vpop.permute.xlu0 %800
      %802 = vrot.lane.b32.xlu0 %v305, 18
      %v803 = vpop.permute.xlu0 %802
      %804 = vrot.lane.b32.xlu0 %v306, 18
      %v805 = vpop.permute.xlu0 %804
      %806 = vrot.lane.b32.xlu0 %v307, 18
      %v807 = vpop.permute.xlu0 %806
      %808 = vrot.lane.b32.xlu0 %v308, 18
      %v809 = vpop.permute.xlu0 %808
      %810 = vrot.lane.b32.xlu0 %v309, 18
      %v811 = vpop.permute.xlu0 %810
      %812 = vrot.lane.b32.xlu0 %v310, 18
      %v813 = vpop.permute.xlu0 %812
      %814 = vrot.lane.b32.xlu0 %v311, 18
      %v815 = vpop.permute.xlu0 %814
      %816 = vrot.lane.b32.xlu0 %v312, 18
      %v817 = vpop.permute.xlu0 %816
      %818 = vrot.lane.b32.xlu0 %v313, 18
      %v819 = vpop.permute.xlu0 %818
      %820 = vrot.lane.b32.xlu0 %v672, 18
      %v821 = vpop.permute.xlu0 %820
      %822 = vrot.lane.b32.xlu0 %v791, 18
      %v823 = vpop.permute.xlu0 %822
      %v825 = vunpack.c.l.b16 %v229
      %v826 = vpack.c.b16 %v825, %v825
      %v828 = vshrl.u32 %v791, 16
      %v830 = vshll.u32 %v791, 16
      %v832 = vrot.slane %v830, 1
      %v833 = vor.u32 %v828, %v832
      %v835 = vshll.u32 %v826, 16
      %v837 = vrot.slane %v835, 1
      %v838 = vsel %vm362, %v833, %v837
      %839 = vrot.lane.b32.xlu0 %v398, 21
      %v840 = vpop.permute.xlu0 %839
      %841 = vrot.lane.b32.xlu0 %v410, 21
      %v842 = vpop.permute.xlu0 %841
      %843 = vrot.lane.b32.xlu0 %v422, 21
      %v844 = vpop.permute.xlu0 %843
      %845 = vrot.lane.b32.xlu0 %v434, 21
      %v846 = vpop.permute.xlu0 %845
      %847 = vrot.lane.b32.xlu0 %v446, 21
      %v848 = vpop.permute.xlu0 %847
      %849 = vrot.lane.b32.xlu0 %v458, 21
      %v850 = vpop.permute.xlu0 %849
      %851 = vrot.lane.b32.xlu0 %v470, 21
      %v852 = vpop.permute.xlu0 %851
      %853 = vrot.lane.b32.xlu0 %v482, 21
      %v854 = vpop.permute.xlu0 %853
      %855 = vrot.lane.b32.xlu0 %v494, 21
      %v856 = vpop.permute.xlu0 %855
      %857 = vrot.lane.b32.xlu0 %v506, 21
      %v858 = vpop.permute.xlu0 %857
      %859 = vrot.lane.b32.xlu0 %v518, 21
      %v860 = vpop.permute.xlu0 %859
      %861 = vrot.lane.b32.xlu0 %v530, 21
      %v862 = vpop.permute.xlu0 %861
      %863 = vrot.lane.b32.xlu0 %v542, 21
      %v864 = vpop.permute.xlu0 %863
      %865 = vrot.lane.b32.xlu0 %v554, 21
      %v866 = vpop.permute.xlu0 %865
      %867 = vrot.lane.b32.xlu0 %v719, 21
      %v868 = vpop.permute.xlu0 %867
      %869 = vrot.lane.b32.xlu0 %v838, 21
      %v870 = vpop.permute.xlu0 %869
      %v871 = vrot.slane %v791, 1
      %v872 = vrot.slane %v826, 1
      %v873 = vsel %vm587, %v871, %v872
      %874 = vrot.lane.b32.xlu0 %v596, 24
      %v875 = vpop.permute.xlu0 %874
      %876 = vrot.lane.b32.xlu0 %v599, 24
      %v877 = vpop.permute.xlu0 %876
      %878 = vrot.lane.b32.xlu0 %v602, 24
      %v879 = vpop.permute.xlu0 %878
      %880 = vrot.lane.b32.xlu0 %v605, 24
      %v881 = vpop.permute.xlu0 %880
      %882 = vrot.lane.b32.xlu0 %v608, 24
      %v883 = vpop.permute.xlu0 %882
      %884 = vrot.lane.b32.xlu0 %v611, 24
      %v885 = vpop.permute.xlu0 %884
      %886 = vrot.lane.b32.xlu0 %v614, 24
      %v887 = vpop.permute.xlu0 %886
      %888 = vrot.lane.b32.xlu0 %v617, 24
      %v889 = vpop.permute.xlu0 %888
      %890 = vrot.lane.b32.xlu0 %v620, 24
      %v891 = vpop.permute.xlu0 %890
      %892 = vrot.lane.b32.xlu0 %v623, 24
      %v893 = vpop.permute.xlu0 %892
      %894 = vrot.lane.b32.xlu0 %v626, 24
      %v895 = vpop.permute.xlu0 %894
      %896 = vrot.lane.b32.xlu0 %v629, 24
      %v897 = vpop.permute.xlu0 %896
      %898 = vrot.lane.b32.xlu0 %v632, 24
      %v899 = vpop.permute.xlu0 %898
      %900 = vrot.lane.b32.xlu0 %v635, 24
      %v901 = vpop.permute.xlu0 %900
      %902 = vrot.lane.b32.xlu0 %v754, 24
      %v903 = vpop.permute.xlu0 %902
      %904 = vrot.lane.b32.xlu0 %v873, 24
      %v905 = vpop.permute.xlu0 %904
      %vm906 = vcmask 23552
      %v908 = vsel %vm906, %v298, %v556
      %v910 = vsel %vm906, %v299, %v558
      %v912 = vsel %vm906, %v300, %v560
      %v914 = vsel %vm906, %v301, %v562
      %v916 = vsel %vm906, %v302, %v564
      %v918 = vsel %vm906, %v303, %v566
      %v920 = vsel %vm906, %v304, %v568
      %v922 = vsel %vm906, %v305, %v570
      %v924 = vsel %vm906, %v306, %v572
      %v926 = vsel %vm906, %v307, %v574
      %v928 = vsel %vm906, %v308, %v576
      %v930 = vsel %vm906, %v309, %v578
      %v932 = vsel %vm906, %v310, %v580
      %v934 = vsel %vm906, %v311, %v582
      %v936 = vsel %vm906, %v312, %v584
      %v938 = vsel %vm906, %v313, %v586
      %vm939 = vcmask 48128
      %v941 = vsel %vm939, %v908, %v637
      %v943 = vsel %vm939, %v910, %v639
      %v945 = vsel %vm939, %v912, %v641
      %v947 = vsel %vm939, %v914, %v643
      %v949 = vsel %vm939, %v916, %v645
      %v951 = vsel %vm939, %v918, %v647
      %v953 = vsel %vm939, %v920, %v649
      %v955 = vsel %vm939, %v922, %v651
      %v957 = vsel %vm939, %v924, %v653
      %v959 = vsel %vm939, %v926, %v655
      %v961 = vsel %vm939, %v928, %v657
      %v963 = vsel %vm939, %v930, %v659
      %v965 = vsel %vm939, %v932, %v661
      %v967 = vsel %vm939, %v934, %v663
      %v969 = vsel %vm939, %v936, %v665
      %v971 = vsel %vm939, %v938, %v667
      %vm972 = vcmask 72704
      %v974 = vsel %vm972, %v941, %v674
      %v976 = vsel %vm972, %v943, %v676
      %v978 = vsel %vm972, %v945, %v678
      %v980 = vsel %vm972, %v947, %v680
      %v982 = vsel %vm972, %v949, %v682
      %v984 = vsel %vm972, %v951, %v684
      %v986 = vsel %vm972, %v953, %v686
      %v988 = vsel %vm972, %v955, %v688
      %v990 = vsel %vm972, %v957, %v690
      %v992 = vsel %vm972, %v959, %v692
      %v994 = vsel %vm972, %v961, %v694
      %v996 = vsel %vm972, %v963, %v696
      %v998 = vsel %vm972, %v965, %v698
      %v1000 = vsel %vm972, %v967, %v700
      %v1002 = vsel %vm972, %v969, %v702
      %v1004 = vsel %vm972, %v971, %v704
      %vm1005 = vcmask 97280
      %v1007 = vsel %vm1005, %v974, %v721
      %v1009 = vsel %vm1005, %v976, %v723
      %v1011 = vsel %vm1005, %v978, %v725
      %v1013 = vsel %vm1005, %v980, %v727
      %v1015 = vsel %vm1005, %v982, %v729
      %v1017 = vsel %vm1005, %v984, %v731
      %v1019 = vsel %vm1005, %v986, %v733
      %v1021 = vsel %vm1005, %v988, %v735
      %v1023 = vsel %vm1005, %v990, %v737
      %v1025 = vsel %vm1005, %v992, %v739
      %v1027 = vsel %vm1005, %v994, %v741
      %v1029 = vsel %vm1005, %v996, %v743
      %v1031 = vsel %vm1005, %v998, %v745
      %v1033 = vsel %vm1005, %v1000, %v747
      %v1035 = vsel %vm1005, %v1002, %v749
      %v1037 = vsel %vm1005, %v1004, %v751
      %vm1038 = vcmask 121856
      %v1040 = vsel %vm1038, %v1007, %v756
      %v1042 = vsel %vm1038, %v1009, %v758
      %v1044 = vsel %vm1038, %v1011, %v760
      %v1046 = vsel %vm1038, %v1013, %v762
      %v1048 = vsel %vm1038, %v1015, %v764
      %v1050 = vsel %vm1038, %v1017, %v766
      %v1052 = vsel %vm1038, %v1019, %v768
      %v1054 = vsel %vm1038, %v1021, %v770
      %v1056 = vsel %vm1038, %v1023, %v772
      %v1058 = vsel %vm1038, %v1025, %v774
      %v1060 = vsel %vm1038, %v1027, %v776
      %v1062 = vsel %vm1038, %v1029, %v778
      %v1064 = vsel %vm1038, %v1031, %v780
      %v1066 = vsel %vm1038, %v1033, %v782
      %v1068 = vsel %vm1038, %v1035, %v784
      %v1070 = vsel %vm1038, %v1037, %v786
      %vm1071 = vcmask 146432
      %v1073 = vsel %vm1071, %v1040, %v793
      %v1075 = vsel %vm1071, %v1042, %v795
      %v1077 = vsel %vm1071, %v1044, %v797
      %v1079 = vsel %vm1071, %v1046, %v799
      %v1081 = vsel %vm1071, %v1048, %v801
      %v1083 = vsel %vm1071, %v1050, %v803
      %v1085 = vsel %vm1071, %v1052, %v805
      %v1087 = vsel %vm1071, %v1054, %v807
      %v1089 = vsel %vm1071, %v1056, %v809
      %v1091 = vsel %vm1071, %v1058, %v811
      %v1093 = vsel %vm1071, %v1060, %v813
      %v1095 = vsel %vm1071, %v1062, %v815
      %v1097 = vsel %vm1071, %v1064, %v817
      %v1099 = vsel %vm1071, %v1066, %v819
      %v1101 = vsel %vm1071, %v1068, %v821
      %v1103 = vsel %vm1071, %v1070, %v823
      %vm1104 = vcmask 171008
      %v1106 = vsel %vm1104, %v1073, %v840
      %v1108 = vsel %vm1104, %v1075, %v842
      %v1110 = vsel %vm1104, %v1077, %v844
      %v1112 = vsel %vm1104, %v1079, %v846
      %v1114 = vsel %vm1104, %v1081, %v848
      %v1116 = vsel %vm1104, %v1083, %v850
      %v1118 = vsel %vm1104, %v1085, %v852
      %v1120 = vsel %vm1104, %v1087, %v854
      %v1122 = vsel %vm1104, %v1089, %v856
      %v1124 = vsel %vm1104, %v1091, %v858
      %v1126 = vsel %vm1104, %v1093, %v860
      %v1128 = vsel %vm1104, %v1095, %v862
      %v1130 = vsel %vm1104, %v1097, %v864
      %v1132 = vsel %vm1104, %v1099, %v866
      %v1134 = vsel %vm1104, %v1101, %v868
      %v1136 = vsel %vm1104, %v1103, %v870
      %vm1137 = vcmask 195584
      %v1139 = vsel %vm1137, %v1106, %v875
      %v1141 = vsel %vm1137, %v1108, %v877
      %v1143 = vsel %vm1137, %v1110, %v879
      %v1145 = vsel %vm1137, %v1112, %v881
      %v1147 = vsel %vm1137, %v1114, %v883
      %v1149 = vsel %vm1137, %v1116, %v885
      %v1151 = vsel %vm1137, %v1118, %v887
      %v1153 = vsel %vm1137, %v1120, %v889
      %v1155 = vsel %vm1137, %v1122, %v891
      %v1157 = vsel %vm1137, %v1124, %v893
      %v1159 = vsel %vm1137, %v1126, %v895
      %v1161 = vsel %vm1137, %v1128, %v897
      %v1163 = vsel %vm1137, %v1130, %v899
      %v1165 = vsel %vm1137, %v1132, %v901
      %v1167 = vsel %vm1137, %v1134, %v903
      %v1169 = vsel %vm1137, %v1136, %v905
      %v1174 = vunpack.c.l.b16 %v230
      %v1175 = vunpack.c.l.b16 %v231
      %v1176 = vunpack.c.l.b16 %v232
      %v1177 = vunpack.c.l.b16 %v233
      %v1178 = vpack.c.b16 %v1175, %v1174
      %v1179 = vpack.c.b16 %v1177, %v1176
      %vm1181 = vcmask 220160
      %v1182 = vsel %vm1181, %v1139, 0
      %v1184 = vsel %vm1181, %v1141, 0
      %v1186 = vsel %vm1181, %v1143, 0
      %v1188 = vsel %vm1181, %v1145, 0
      %v1190 = vsel %vm1181, %v1147, 0
      %v1192 = vsel %vm1181, %v1149, 0
      %v1194 = vsel %vm1181, %v1151, 0
      %v1196 = vsel %vm1181, %v1153, 0
      %v1198 = vsel %vm1181, %v1155, 0
      %v1200 = vsel %vm1181, %v1157, 0
      %v1202 = vsel %vm1181, %v1159, 0
      %v1204 = vsel %vm1181, %v1161, 0
      %v1206 = vsel %vm1181, %v1163, 0
      %v1208 = vsel %vm1181, %v1165, 0
      %v1210 = vsel %vm1181, %v1167, 0
      %v1212 = vsel %vm1181, %v1169, 0
      %vm1214 = vcmask 1044480
      %vm1215 = vcmask 1045504
      %v1216 = vsel %vm1214, 4294967295, 65535
      %v1217 = vsel %vm1215, %v1216, 0
      %v1219 = vand.u32 %v1179, %v1217
      %1221 = vmatprep.subr.bf16.mxu0 0
      %1222 = vmatpush1.bf16.msra.mxu0 0
      %1223 = vmatprep.subr.bf16.mxu0 0
      %1224 = vmatpush1.bf16.msra.mxu0 0
      %1225 = vmatprep.subr.bf16.mxu0 0
      %1226 = vmatpush1.bf16.msra.mxu0 0
      %1227 = vmatprep.subr.bf16.mxu0 0
      %1228 = vmatpush1.bf16.msra.mxu0 0
      %1229 = vmatprep.subr.bf16.mxu0 0
      %1230 = vmatpush1.bf16.msra.mxu0 0
      %1231 = vmatprep.subr.bf16.mxu0 0
      %1232 = vmatpush1.bf16.msra.mxu0 0
      %1233 = vmatprep.subr.bf16.mxu0 0
      %1234 = vmatpush1.bf16.msra.mxu0 %v1219
      %1235 = vmatprep.subr.bf16.mxu0 0
      %1236 = vmatpush1.bf16.msra.mxu0 %v1178
      %1237 = vmatprep.subr.bf16.mxu0 0
      %1238 = vmatpush2.bf16.msra.mxu0 0
      %1239 = vmatprep.subr.bf16.mxu0 0
      %1240 = vmatpush2.bf16.msra.mxu0 0
      %1241 = vmatprep.subr.bf16.mxu0 0
      %1242 = vmatpush2.bf16.msra.mxu0 0
      %1243 = vmatprep.subr.bf16.mxu0 0
      %1244 = vmatpush2.bf16.msra.mxu0 0
      %1245 = vmatprep.subr.bf16.mxu0 0
      %1246 = vmatpush2.bf16.msra.mxu0 0
      %1247 = vmatprep.subr.bf16.mxu0 0
      %1248 = vmatpush2.bf16.msra.mxu0 0
      %1249 = vmatprep.subr.bf16.mxu0 0
      %1250 = vmatpush2.bf16.msra.mxu0 0
      %1251 = vmatprep.subr.bf16.mxu0 0
      %1252 = vmatpush2.bf16.msra.mxu0 0
      %1253 = vmatprep.mubr.bf16.mxu0 0
      %1254 = vmatmul.mubr.bf16.gmra.mxu0 %v1182
      %v1255 = vpop.f32.mrf.mxu0
      %v1256 = vadd.f32 0.0, %v1255
      %v1257 = vpop.f32.mrf.mxu0
      %v1258 = vpop.f32.mrf.mxu0
      %v1259 = vadd.f32 0.0, %v1258
      %v1260 = vpop.f32.mrf.mxu0
      %1261 = vmatprep.mubr.bf16.mxu0 0
      %1262 = vmatmul.mubr.bf16.gmra.mxu0 %v1184
      %v1263 = vpop.f32.mrf.mxu0
      %v1264 = vadd.f32 0.0, %v1263
      %v1265 = vpop.f32.mrf.mxu0
      %v1266 = vpop.f32.mrf.mxu0
      %v1267 = vadd.f32 0.0, %v1266
      %v1268 = vpop.f32.mrf.mxu0
      %1269 = vmatprep.mubr.bf16.mxu0 0
      %1270 = vmatmul.mubr.bf16.gmra.mxu0 %v1186
      %v1271 = vpop.f32.mrf.mxu0
      %v1272 = vadd.f32 0.0, %v1271
      %v1273 = vpop.f32.mrf.mxu0
      %v1274 = vpop.f32.mrf.mxu0
      %v1275 = vadd.f32 0.0, %v1274
      %v1276 = vpop.f32.mrf.mxu0
      %1277 = vmatprep.mubr.bf16.mxu0 0
      %1278 = vmatmul.mubr.bf16.gmra.mxu0 %v1188
      %v1279 = vpop.f32.mrf.mxu0
      %v1280 = vadd.f32 0.0, %v1279
      %v1281 = vpop.f32.mrf.mxu0
      %v1282 = vpop.f32.mrf.mxu0
      %v1283 = vadd.f32 0.0, %v1282
      %v1284 = vpop.f32.mrf.mxu0
      %1285 = vmatprep.mubr.bf16.mxu0 0
      %1286 = vmatmul.mubr.bf16.gmra.mxu0 %v1190
      %v1287 = vpop.f32.mrf.mxu0
      %v1288 = vadd.f32 0.0, %v1287
      %v1289 = vpop.f32.mrf.mxu0
      %v1290 = vpop.f32.mrf.mxu0
      %v1291 = vadd.f32 0.0, %v1290
      %v1292 = vpop.f32.mrf.mxu0
      %1293 = vmatprep.mubr.bf16.mxu0 0
      %1294 = vmatmul.mubr.bf16.gmra.mxu0 %v1192
      %v1295 = vpop.f32.mrf.mxu0
      %v1296 = vadd.f32 0.0, %v1295
      %v1297 = vpop.f32.mrf.mxu0
      %v1298 = vpop.f32.mrf.mxu0
      %v1299 = vadd.f32 0.0, %v1298
      %v1300 = vpop.f32.mrf.mxu0
      %1301 = vmatprep.mubr.bf16.mxu0 0
      %1302 = vmatmul.mubr.bf16.gmra.mxu0 %v1194
      %v1303 = vpop.f32.mrf.mxu0
      %v1304 = vadd.f32 0.0, %v1303
      %v1305 = vpop.f32.mrf.mxu0
      %v1306 = vpop.f32.mrf.mxu0
      %v1307 = vadd.f32 0.0, %v1306
      %v1308 = vpop.f32.mrf.mxu0
      %1309 = vmatprep.mubr.bf16.mxu0 0
      %1310 = vmatmul.mubr.bf16.gmra.mxu0 %v1196
      %v1311 = vpop.f32.mrf.mxu0
      %v1312 = vadd.f32 0.0, %v1311
      %v1313 = vpop.f32.mrf.mxu0
      %v1314 = vpop.f32.mrf.mxu0
      %v1315 = vadd.f32 0.0, %v1314
      %v1316 = vpop.f32.mrf.mxu0
      %1317 = vmatprep.mubr.bf16.mxu0 0
      %1318 = vmatmul.mubr.bf16.gmra.mxu0 %v1198
      %v1319 = vpop.f32.mrf.mxu0
      %v1320 = vadd.f32 0.0, %v1319
      %v1321 = vpop.f32.mrf.mxu0
      %v1322 = vpop.f32.mrf.mxu0
      %v1323 = vadd.f32 0.0, %v1322
      %v1324 = vpop.f32.mrf.mxu0
      %1325 = vmatprep.mubr.bf16.mxu0 0
      %1326 = vmatmul.mubr.bf16.gmra.mxu0 %v1200
      %v1327 = vpop.f32.mrf.mxu0
      %v1328 = vadd.f32 0.0, %v1327
      %v1329 = vpop.f32.mrf.mxu0
      %v1330 = vpop.f32.mrf.mxu0
      %v1331 = vadd.f32 0.0, %v1330
      %v1332 = vpop.f32.mrf.mxu0
      %1333 = vmatprep.mubr.bf16.mxu0 0
      %1334 = vmatmul.mubr.bf16.gmra.mxu0 %v1202
      %v1335 = vpop.f32.mrf.mxu0
      %v1336 = vadd.f32 0.0, %v1335
      %v1337 = vpop.f32.mrf.mxu0
      %v1338 = vpop.f32.mrf.mxu0
      %v1339 = vadd.f32 0.0, %v1338
      %v1340 = vpop.f32.mrf.mxu0
      %1341 = vmatprep.mubr.bf16.mxu0 0
      %1342 = vmatmul.mubr.bf16.gmra.mxu0 %v1204
      %v1343 = vpop.f32.mrf.mxu0
      %v1344 = vadd.f32 0.0, %v1343
      %v1345 = vpop.f32.mrf.mxu0
      %v1346 = vpop.f32.mrf.mxu0
      %v1347 = vadd.f32 0.0, %v1346
      %v1348 = vpop.f32.mrf.mxu0
      %1349 = vmatprep.mubr.bf16.mxu0 0
      %1350 = vmatmul.mubr.bf16.gmra.mxu0 %v1206
      %v1351 = vpop.f32.mrf.mxu0
      %v1352 = vadd.f32 0.0, %v1351
      %v1353 = vpop.f32.mrf.mxu0
      %v1354 = vpop.f32.mrf.mxu0
      %v1355 = vadd.f32 0.0, %v1354
      %v1356 = vpop.f32.mrf.mxu0
      %1357 = vmatprep.mubr.bf16.mxu0 0
      %1358 = vmatmul.mubr.bf16.gmra.mxu0 %v1208
      %v1359 = vpop.f32.mrf.mxu0
      %v1360 = vadd.f32 0.0, %v1359
      %v1361 = vpop.f32.mrf.mxu0
      %v1362 = vpop.f32.mrf.mxu0
      %v1363 = vadd.f32 0.0, %v1362
      %v1364 = vpop.f32.mrf.mxu0
      %1365 = vmatprep.mubr.bf16.mxu0 0
      %1366 = vmatmul.mubr.bf16.gmra.mxu0 %v1210
      %v1367 = vpop.f32.mrf.mxu0
      %v1368 = vadd.f32 0.0, %v1367
      %v1369 = vpop.f32.mrf.mxu0
      %v1370 = vpop.f32.mrf.mxu0
      %v1371 = vadd.f32 0.0, %v1370
      %v1372 = vpop.f32.mrf.mxu0
      %1373 = vmatprep.mubr.bf16.mxu0 0
      %1374 = vmatmul.mubr.bf16.gmra.mxu0 %v1212
      %v1375 = vpop.f32.mrf.mxu0
      %v1376 = vadd.f32 0.0, %v1375
      %v1377 = vpop.f32.mrf.mxu0
      %v1378 = vpop.f32.mrf.mxu0
      %v1379 = vadd.f32 0.0, %v1378
      %v1380 = vpop.f32.mrf.mxu0
      %1381 = vdwg.mxu0
      %vm1382 = vcmask 31744
      %1383 = vst.msk [vmem:[%s168] sm:$0xff] %vm1382, %v1256
      %1384 = vst.msk [vmem:[%s168 + $0x8] sm:$0xff] %vm1382, %v1259
      %1385 = vst.msk [vmem:[%s168 + $0x10] sm:$0xff] %vm1382, %v1264
      %1386 = vst.msk [vmem:[%s168 + $0x18] sm:$0xff] %vm1382, %v1267
      %1387 = vst.msk [vmem:[%s168 + $0x20] sm:$0xff] %vm1382, %v1272
      %1388 = vst.msk [vmem:[%s168 + $0x28] sm:$0xff] %vm1382, %v1275
      %1389 = vst.msk [vmem:[%s168 + $0x30] sm:$0xff] %vm1382, %v1280
      %1390 = vst.msk [vmem:[%s168 + $0x38] sm:$0xff] %vm1382, %v1283
      %1391 = vst.msk [vmem:[%s168 + $0x40] sm:$0xff] %vm1382, %v1288
      %1392 = vst.msk [vmem:[%s168 + $0x48] sm:$0xff] %vm1382, %v1291
      %1393 = vst.msk [vmem:[%s168 + $0x50] sm:$0xff] %vm1382, %v1296
      %1394 = vst.msk [vmem:[%s168 + $0x58] sm:$0xff] %vm1382, %v1299
      %1395 = vst.msk [vmem:[%s168 + $0x60] sm:$0xff] %vm1382, %v1304
      %1396 = vst.msk [vmem:[%s168 + $0x68] sm:$0xff] %vm1382, %v1307
      %1397 = vst.msk [vmem:[%s168 + $0x70] sm:$0xff] %vm1382, %v1312
      %1398 = vst.msk [vmem:[%s168 + $0x78] sm:$0xff] %vm1382, %v1315
      %1399 = vst.msk [vmem:[%s168 + $0x80] sm:$0xff] %vm1382, %v1320
      %1400 = vst.msk [vmem:[%s168 + $0x88] sm:$0xff] %vm1382, %v1323
      %1401 = vst.msk [vmem:[%s168 + $0x90] sm:$0xff] %vm1382, %v1328
      %1402 = vst.msk [vmem:[%s168 + $0x98] sm:$0xff] %vm1382, %v1331
      %1403 = vst.msk [vmem:[%s168 + $0xa0] sm:$0xff] %vm1382, %v1336
      %1404 = vst.msk [vmem:[%s168 + $0xa8] sm:$0xff] %vm1382, %v1339
      %1405 = vst.msk [vmem:[%s168 + $0xb0] sm:$0xff] %vm1382, %v1344
      %1406 = vst.msk [vmem:[%s168 + $0xb8] sm:$0xff] %vm1382, %v1347
      %1407 = vst.msk [vmem:[%s168 + $0xc0] sm:$0xff] %vm1382, %v1352
      %1408 = vst.msk [vmem:[%s168 + $0xc8] sm:$0xff] %vm1382, %v1355
      %1409 = vst.msk [vmem:[%s168 + $0xd0] sm:$0xff] %vm1382, %v1360
      %1410 = vst.msk [vmem:[%s168 + $0xd8] sm:$0xff] %vm1382, %v1363
      %1411 = vst.msk [vmem:[%s168 + $0xe0] sm:$0xff] %vm1382, %v1368
      %1412 = vst.msk [vmem:[%s168 + $0xe8] sm:$0xff] %vm1382, %v1371
      %1413 = vst.msk [vmem:[%s168 + $0xf0] sm:$0xff] %vm1382, %v1376
      %1414 = vst.msk [vmem:[%s168 + $0xf8] sm:$0xff] %vm1382, %v1379
      %v1415 = vld [vmem:[#allocation2] sm:$0x1]
      %v1416 = vsel %vm1382, %v1256, 0.0
      %v1417 = vsel %vm1382, %v1259, 0.0
      %v1418 = vadd.f32 %v1416, %v1417
      %v1419 = vsel %vm1382, %v1264, 0.0
      %v1420 = vadd.f32 %v1418, %v1419
      %v1421 = vsel %vm1382, %v1267, 0.0
      %v1422 = vadd.f32 %v1420, %v1421
      %v1423 = vsel %vm1382, %v1272, 0.0
      %v1424 = vadd.f32 %v1422, %v1423
      %v1425 = vsel %vm1382, %v1275, 0.0
      %v1426 = vadd.f32 %v1424, %v1425
      %v1427 = vsel %vm1382, %v1280, 0.0
      %v1428 = vadd.f32 %v1426, %v1427
      %v1429 = vsel %vm1382, %v1283, 0.0
      %v1430 = vadd.f32 %v1428, %v1429
      %v1431 = vsel %vm1382, %v1288, 0.0
      %v1432 = vadd.f32 %v1430, %v1431
      %v1433 = vsel %vm1382, %v1291, 0.0
      %v1434 = vadd.f32 %v1432, %v1433
      %v1435 = vsel %vm1382, %v1296, 0.0
      %v1436 = vadd.f32 %v1434, %v1435
      %v1437 = vsel %vm1382, %v1299, 0.0
      %v1438 = vadd.f32 %v1436, %v1437
      %v1439 = vsel %vm1382, %v1304, 0.0
      %v1440 = vadd.f32 %v1438, %v1439
      %v1441 = vsel %vm1382, %v1307, 0.0
      %v1442 = vadd.f32 %v1440, %v1441
      %v1443 = vsel %vm1382, %v1312, 0.0
      %v1444 = vadd.f32 %v1442, %v1443
      %v1445 = vsel %vm1382, %v1315, 0.0
      %v1446 = vadd.f32 %v1444, %v1445
      %v1447 = vsel %vm1382, %v1320, 0.0
      %v1448 = vadd.f32 %v1446, %v1447
      %v1449 = vsel %vm1382, %v1323, 0.0
      %v1450 = vadd.f32 %v1448, %v1449
      %v1451 = vsel %vm1382, %v1328, 0.0
      %v1452 = vadd.f32 %v1450, %v1451
      %v1453 = vsel %vm1382, %v1331, 0.0
      %v1454 = vadd.f32 %v1452, %v1453
      %v1455 = vsel %vm1382, %v1336, 0.0
      %v1456 = vadd.f32 %v1454, %v1455
      %v1457 = vsel %vm1382, %v1339, 0.0
      %v1458 = vadd.f32 %v1456, %v1457
      %v1459 = vsel %vm1382, %v1344, 0.0
      %v1460 = vadd.f32 %v1458, %v1459
      %v1461 = vsel %vm1382, %v1347, 0.0
      %v1462 = vadd.f32 %v1460, %v1461
      %v1463 = vsel %vm1382, %v1352, 0.0
      %v1464 = vadd.f32 %v1462, %v1463
      %v1465 = vsel %vm1382, %v1355, 0.0
      %v1466 = vadd.f32 %v1464, %v1465
      %v1467 = vsel %vm1382, %v1360, 0.0
      %v1468 = vadd.f32 %v1466, %v1467
      %v1469 = vsel %vm1382, %v1363, 0.0
      %v1470 = vadd.f32 %v1468, %v1469
      %v1471 = vsel %vm1382, %v1368, 0.0
      %v1472 = vadd.f32 %v1470, %v1471
      %v1473 = vsel %vm1382, %v1371, 0.0
      %v1474 = vadd.f32 %v1472, %v1473
      %v1475 = vsel %vm1382, %v1376, 0.0
      %v1476 = vadd.f32 %v1474, %v1475
      %v1477 = vsel %vm1382, %v1379, 0.0
      %v1478 = vadd.f32 %v1476, %v1477
      %v1479 = vrot.slane %v1478, 4
      %v1480 = vadd.f32 %v1478, %v1479
      %v1481 = vrot.slane %v1480, 2
      %v1482 = vadd.f32 %v1480, %v1481
      %v1483 = vrot.slane %v1482, 1
      %v1484 = vadd.f32 %v1482, %v1483
      %v1485 = vadd.f32 %v1415, %v1484
      %vm1486 = vcmask 24576
      %1487 = vst.msk [vmem:[#allocation2] sm:$0x1] %vm1486, %v1485
      %v1488 = vld [vmem:[#allocation2 + $0x1] sm:$0x1]
      %v1489 = vmul.f32 %v1256, %v1256
      %v1490 = vmul.f32 %v1259, %v1259
      %v1491 = vmul.f32 %v1264, %v1264
      %v1492 = vmul.f32 %v1267, %v1267
      %v1493 = vmul.f32 %v1272, %v1272
      %v1494 = vmul.f32 %v1275, %v1275
      %v1495 = vmul.f32 %v1280, %v1280
      %v1496 = vmul.f32 %v1283, %v1283
      %v1497 = vmul.f32 %v1288, %v1288
      %v1498 = vmul.f32 %v1291, %v1291
      %v1499 = vmul.f32 %v1296, %v1296
      %v1500 = vmul.f32 %v1299, %v1299
      %v1501 = vmul.f32 %v1304, %v1304
      %v1502 = vmul.f32 %v1307, %v1307
      %v1503 = vmul.f32 %v1312, %v1312
      %v1504 = vmul.f32 %v1315, %v1315
      %v1505 = vmul.f32 %v1320, %v1320
      %v1506 = vmul.f32 %v1323, %v1323
      %v1507 = vmul.f32 %v1328, %v1328
      %v1508 = vmul.f32 %v1331, %v1331
      %v1509 = vmul.f32 %v1336, %v1336
      %v1510 = vmul.f32 %v1339, %v1339
      %v1511 = vmul.f32 %v1344, %v1344
      %v1512 = vmul.f32 %v1347, %v1347
      %v1513 = vmul.f32 %v1352, %v1352
      %v1514 = vmul.f32 %v1355, %v1355
      %v1515 = vmul.f32 %v1360, %v1360
      %v1516 = vmul.f32 %v1363, %v1363
      %v1517 = vmul.f32 %v1368, %v1368
      %v1518 = vmul.f32 %v1371, %v1371
      %v1519 = vmul.f32 %v1376, %v1376
      %v1520 = vmul.f32 %v1379, %v1379
      %v1521 = vsel %vm1382, %v1489, 0.0
      %v1522 = vsel %vm1382, %v1490, 0.0
      %v1523 = vadd.f32 %v1521, %v1522
      %v1524 = vsel %vm1382, %v1491, 0.0
      %v1525 = vadd.f32 %v1523, %v1524
      %v1526 = vsel %vm1382, %v1492, 0.0
      %v1527 = vadd.f32 %v1525, %v1526
      %v1528 = vsel %vm1382, %v1493, 0.0
      %v1529 = vadd.f32 %v1527, %v1528
      %v1530 = vsel %vm1382, %v1494, 0.0
      %v1531 = vadd.f32 %v1529, %v1530
      %v1532 = vsel %vm1382, %v1495, 0.0
      %v1533 = vadd.f32 %v1531, %v1532
      %v1534 = vsel %vm1382, %v1496, 0.0
      %v1535 = vadd.f32 %v1533, %v1534
      %v1536 = vsel %vm1382, %v1497, 0.0
      %v1537 = vadd.f32 %v1535, %v1536
      %v1538 = vsel %vm1382, %v1498, 0.0
      %v1539 = vadd.f32 %v1537, %v1538
      %v1540 = vsel %vm1382, %v1499, 0.0
      %v1541 = vadd.f32 %v1539, %v1540
      %v1542 = vsel %vm1382, %v1500, 0.0
      %v1543 = vadd.f32 %v1541, %v1542
      %v1544 = vsel %vm1382, %v1501, 0.0
      %v1545 = vadd.f32 %v1543, %v1544
      %v1546 = vsel %vm1382, %v1502, 0.0
      %v1547 = vadd.f32 %v1545, %v1546
      %v1548 = vsel %vm1382, %v1503, 0.0
      %v1549 = vadd.f32 %v1547, %v1548
      %v1550 = vsel %vm1382, %v1504, 0.0
      %v1551 = vadd.f32 %v1549, %v1550
      %v1552 = vsel %vm1382, %v1505, 0.0
      %v1553 = vadd.f32 %v1551, %v1552
      %v1554 = vsel %vm1382, %v1506, 0.0
      %v1555 = vadd.f32 %v1553, %v1554
      %v1556 = vsel %vm1382, %v1507, 0.0
      %v1557 = vadd.f32 %v1555, %v1556
      %v1558 = vsel %vm1382, %v1508, 0.0
      %v1559 = vadd.f32 %v1557, %v1558
      %v1560 = vsel %vm1382, %v1509, 0.0
      %v1561 = vadd.f32 %v1559, %v1560
      %v1562 = vsel %vm1382, %v1510, 0.0
      %v1563 = vadd.f32 %v1561, %v1562
      %v1564 = vsel %vm1382, %v1511, 0.0
      %v1565 = vadd.f32 %v1563, %v1564
      %v1566 = vsel %vm1382, %v1512, 0.0
      %v1567 = vadd.f32 %v1565, %v1566
      %v1568 = vsel %vm1382, %v1513, 0.0
      %v1569 = vadd.f32 %v1567, %v1568
      %v1570 = vsel %vm1382, %v1514, 0.0
      %v1571 = vadd.f32 %v1569, %v1570
      %v1572 = vsel %vm1382, %v1515, 0.0
      %v1573 = vadd.f32 %v1571, %v1572
      %v1574 = vsel %vm1382, %v1516, 0.0
      %v1575 = vadd.f32 %v1573, %v1574
      %v1576 = vsel %vm1382, %v1517, 0.0
      %v1577 = vadd.f32 %v1575, %v1576
      %v1578 = vsel %vm1382, %v1518, 0.0
      %v1579 = vadd.f32 %v1577, %v1578
      %v1580 = vsel %vm1382, %v1519, 0.0
      %v1581 = vadd.f32 %v1579, %v1580
      %v1582 = vsel %vm1382, %v1520, 0.0
      %v1583 = vadd.f32 %v1581, %v1582
      %v1584 = vrot.slane %v1583, 4
      %v1585 = vadd.f32 %v1583, %v1584
      %v1586 = vrot.slane %v1585, 2
      %v1587 = vadd.f32 %v1585, %v1586
      %v1588 = vrot.slane %v1587, 1
      %v1589 = vadd.f32 %v1587, %v1588
      %v1590 = vadd.f32 %v1488, %v1589
      %1591 = vst.msk [vmem:[#allocation2 + $0x1] sm:$0x1] %vm1486, %v1590
      %p1592 = scmp.eq.s32.totalorder %s15, 1
      // Predicated region
      $region33: #{encoder_forward.9} parent=27 // pred_check
        %p1593 = pneg %p1592
      $region34: #{encoder_forward.9} parent=27 // pred_check_branch
        %1595 = sbr.rel (%p1593) target = $region36
      $region35: #{encoder_forward.9} parent=27 // pred_region
        %v1596 = vld [vmem:[#allocation2] sm:$0x3]
        %vm1597 = vcmask 25600
        %1598 = vst.msk [vmem:[%s3] sm:$0x3] %vm1597, %v1596
      $region36: #{encoder_forward.9} parent=27 // pred_fallthru
        _
      %p1599 = scmp.lt.s32.totalorder %s15, 1
      %s1600 = scalar_select %p1599, %s15, 1
      %s1601 = smul.addr %s1600, 32
      %s1602 = smul.addr %s1601, 8
      %s1603 = scalar_lea.vmem %s2, %s1602
      // Predicated region
      $region37: #{encoder_forward.9} parent=27 // pred_check
        %p1604 = pneg %p80
      $region38: #{encoder_forward.9} parent=27 // pred_check_branch
        %1606 = sbr.rel (%p1604) target = $region40
      $region39: #{encoder_forward.9} parent=27 // pred_region
        _
      $region40: #{encoder_forward.9} parent=27 // pred_fallthru
        _
      // Predicated region
      $region41: #{encoder_forward.9} parent=27 // pred_check
        %p1607 = pneg %p101
      $region42: #{encoder_forward.9} parent=27 // pred_check_branch
        %1609 = sbr.rel (%p1607) target = $region44
      $region43: #{encoder_forward.9} parent=27 // pred_region
        _
      $region44: #{encoder_forward.9} parent=27 // pred_fallthru
        _
      // Predicated region
      $region45: #{encoder_forward.9} parent=27 // pred_check
        %p1610 = pneg %p101
      $region46: #{encoder_forward.9} parent=27 // pred_check_branch
        %1612 = sbr.rel (%p1610) target = $region48
      $region47: #{encoder_forward.9} parent=27 // pred_region
        _
      $region48: #{encoder_forward.9} parent=27 // pred_fallthru
        _
    $region28: #{encoder_forward.9} parent=5 // pred_fallthru
      _
    %p1613 = scmp.le.s32.totalorder 2, %s10
    // Predicated region
    $region49: #{encoder_forward.9} parent=5 // pred_check
      %p1614 = pneg %p1613
    $region50: #{encoder_forward.9} parent=5 // pred_check_branch
      %1616 = sbr.rel (%p1614) target = $region52
    $region51: #{encoder_forward.9} parent=5 // pred_region
      %s1617 = ssub.s32 %s10, 2
      // Predicated region
      $region53: #{encoder_forward.9} parent=51 // pred_check
        %p1618 = pneg %p86
      $region54: #{encoder_forward.9} parent=51 // pred_check_branch
        %1620 = sbr.rel (%p1618) target = $region56
      $region55: #{encoder_forward.9} parent=51 // pred_region
        %p1621 = scmp.lt.s32.totalorder %s16, 1
        %s1622 = scalar_select %p1621, %s16, 1
        %s1623 = smul.addr %s1622, 32
        %s1624 = smul.addr %s1623, 8
        %s1625 = scalar_lea.vmem %s2, %s1624
      $region56: #{encoder_forward.9} parent=51 // pred_fallthru
        _
    $region52: #{encoder_forward.9} parent=5 // pred_fallthru
      _
  $region6: #{encoder_forward.9} parent=0 // loop_footer
    %s14 = sadd.s32 1, %s10
  $region7: #{encoder_forward.9} parent=0 // loop_footer_branch
    %9 = sbr.rel target = $region3
  $region8: #{encoder_forward.9} parent=0 // loop_exit
    _

// kernel: encoder_forward.12
$region0: #{encoder_forward.12}
  #allocation0 [shape = 'u32[]', space=smem, size = 0x4, offset = 0x4, fixed_abs, tag = 'smem constant byte address 0x4 - core index']
  #allocation1 [shape = 'u32[144,128]{1,0:T(1,128)}', space=vmem, size = 0x12000, scoped, tag = 'internal scratch']
  %s0 = inlined_call_operand.vmem [shape: f32[2,64,16], index: 0, kind: input, shape index: {}]
  %s1 = inlined_call_operand.vmem [shape: f32[1,16], index: 1, kind: input, shape index: {}]
  %s2 = inlined_call_operand.vmem [shape: f32[1,16], index: 2, kind: input, shape index: {}]
  %s3 = inlined_call_operand.vmem [shape: bf16[2,64,16], index: 3, kind: output, shape index: {}]
  %s4 = sld [smem:[#allocation0]]
  $region45: #{encoder_forward.12} parent=0
    _
  %s6 = ssub.s32 1, %s4
  %s7 = scalar_select 0, %s6, %s4
  loop: start=0, step=1, limit=4
  $region2: #{encoder_forward.12} parent=0 // loop_pre_header
    _
  $region3: #{encoder_forward.12} parent=0 // loop_header
    %s9 = sphi 0, %s13
    %p10 = scmp.ge.s32.totalorder %s9, 4
    %s19 = sphi 0, %s21
    %s22 = sphi 0, %s19
    %s23 = sphi 0, %s22
    %s39 = sphi 0, %s23
    %s43 = sphi 0, %s43
    %s45 = sphi 0, %s43
    %s46 = sphi 0, %s45
    %s60 = sphi 0, %s46
    %s64 = sphi 0, %s64
    %s66 = sphi 0, %s64
    %s67 = sphi 0, %s66
    %s81 = sphi 0, %s67
    %s87 = sphi 0, %s89
    %s90 = sphi 0, %s87
    %s91 = sphi 0, %s90
    %s107 = sphi 0, %s91
  $region4: #{encoder_forward.12} parent=0 // loop_header_branch
    %12 = sbr.rel (%p10) target = $region8
  $region5: #{encoder_forward.12} parent=0 // loop_body
    %s14 = ssub.s32 %s9, 1
    %s15 = ssub.s32 %s9, 2
    %s16 = sadd.s32 %s9, 1
    %s17 = ssub.s32 %s9, %s16
    %p18 = scmp.eq.s32.totalorder %s17, 0
    %s20 = sadd.s32 %s19, 1
    %s21 = scalar_select %p18, %s19, %s20
    %p24 = pneg %p18
    %p25 = scmp.eq.s32.totalorder %s9, 1
    %p26 = por %p24, %p25
    %p27 = scmp.ne.s32.totalorder %s19, %s22
    %p28 = scmp.eq.s32.totalorder %s9, 0
    %p29 = por %p27, %p28
    %p30 = scmp.ne.s32.totalorder %s19, %s22
    %p31 = scmp.eq.s32.totalorder %s14, 1
    %p32 = por %p30, %p31
    %p33 = scmp.ne.s32.totalorder %s22, %s23
    %p34 = scmp.eq.s32.totalorder %s14, 0
    %p35 = por %p33, %p34
    %p36 = scmp.ne.s32.totalorder %s22, %s23
    %p37 = scmp.eq.s32.totalorder %s15, 1
    %p38 = por %p36, %p37
    %p40 = scmp.ne.s32.totalorder %s23, %s39
    %p41 = scmp.eq.s32.totalorder %s15, 0
    %p42 = por %p40, %p41
    %s44 = sadd.s32 %s43, 1
    %p47 = scmp.eq.s32.totalorder %s9, 1
    %p48 = scmp.ne.s32.totalorder %s43, %s45
    %p49 = scmp.eq.s32.totalorder %s9, 0
    %p50 = por %p48, %p49
    %p51 = scmp.ne.s32.totalorder %s43, %s45
    %p52 = scmp.eq.s32.totalorder %s14, 1
    %p53 = por %p51, %p52
    %p54 = scmp.ne.s32.totalorder %s45, %s46
    %p55 = scmp.eq.s32.totalorder %s14, 0
    %p56 = por %p54, %p55
    %p57 = scmp.ne.s32.totalorder %s45, %s46
    %p58 = scmp.eq.s32.totalorder %s15, 1
    %p59 = por %p57, %p58
    %p61 = scmp.ne.s32.totalorder %s46, %s60
    %p62 = scmp.eq.s32.totalorder %s15, 0
    %p63 = por %p61, %p62
    %s65 = sadd.s32 %s64, 1
    %p68 = scmp.eq.s32.totalorder %s9, 1
    %p69 = scmp.ne.s32.totalorder %s64, %s66
    %p70 = scmp.eq.s32.totalorder %s9, 0
    %p71 = por %p69, %p70
    %p72 = scmp.ne.s32.totalorder %s64, %s66
    %p73 = scmp.eq.s32.totalorder %s14, 1
    %p74 = por %p72, %p73
    %p75 = scmp.ne.s32.totalorder %s66, %s67
    %p76 = scmp.eq.s32.totalorder %s14, 0
    %p77 = por %p75, %p76
    %p78 = scmp.ne.s32.totalorder %s66, %s67
    %p79 = scmp.eq.s32.totalorder %s15, 1
    %p80 = por %p78, %p79
    %p82 = scmp.ne.s32.totalorder %s67, %s81
    %p83 = scmp.eq.s32.totalorder %s15, 0
    %p84 = por %p82, %p83
    %s85 = ssub.s32 %s9, %s16
    %p86 = scmp.eq.s32.totalorder %s85, 0
    %s88 = sadd.s32 %s87, 1
    %s89 = scalar_select %p86, %s87, %s88
    %p92 = pneg %p86
    %p93 = scmp.eq.s32.totalorder %s9, 1
    %p94 = por %p92, %p93
    %p95 = scmp.ne.s32.totalorder %s87, %s90
    %p96 = scmp.eq.s32.totalorder %s9, 0
    %p97 = por %p95, %p96
    %p98 = scmp.ne.s32.totalorder %s87, %s90
    %p99 = scmp.eq.s32.totalorder %s14, 1
    %p100 = por %p98, %p99
    %p101 = scmp.ne.s32.totalorder %s90, %s91
    %p102 = scmp.eq.s32.totalorder %s14, 0
    %p103 = por %p101, %p102
    %p104 = scmp.ne.s32.totalorder %s90, %s91
    %p105 = scmp.eq.s32.totalorder %s15, 1
    %p106 = por %p104, %p105
    %p108 = scmp.ne.s32.totalorder %s91, %s107
    %p109 = scmp.eq.s32.totalorder %s15, 0
    %p110 = por %p108, %p109
    %p111 = scmp.le.s32.totalorder 1, %s9
    %p112 = scmp.lt.s32.totalorder %s9, 3
    %p113 = pnand %p111, %p112
    %p114 = pneg %p113
    // Predicated region
    $region9: #{encoder_forward.12} parent=5 // pred_check
      _
    $region10: #{encoder_forward.12} parent=5 // pred_check_branch
      %116 = sbr.rel (%p113) target = $region12
    $region11: #{encoder_forward.12} parent=5 // pred_region
      %s117 = ssub.s32 %s9, 1
      // Predicated region
      $region13: #{encoder_forward.12} parent=11 // pred_check
        %p118 = pneg %p56
      $region14: #{encoder_forward.12} parent=11 // pred_check_branch
        %120 = sbr.rel (%p118) target = $region16
      $region15: #{encoder_forward.12} parent=11 // pred_region
        _
      $region16: #{encoder_forward.12} parent=11 // pred_fallthru
        _
      // Predicated region
      $region17: #{encoder_forward.12} parent=11 // pred_check
        %p121 = pneg %p77
      $region18: #{encoder_forward.12} parent=11 // pred_check_branch
        %123 = sbr.rel (%p121) target = $region20
      $region19: #{encoder_forward.12} parent=11 // pred_region
        _
      $region20: #{encoder_forward.12} parent=11 // pred_fallthru
        _
    $region12: #{encoder_forward.12} parent=5 // pred_fallthru
      _
    %p124 = scmp.lt.s32.totalorder %s9, 2
    // Predicated region
    $region21: #{encoder_forward.12} parent=5 // pred_check
      %p125 = pneg %p124
    $region22: #{encoder_forward.12} parent=5 // pred_check_branch
      %127 = sbr.rel (%p125) target = $region24
    $region23: #{encoder_forward.12} parent=5 // pred_region
      // Predicated region
      $region25: #{encoder_forward.12} parent=23 // pred_check
        %p128 = pneg %p29
      $region26: #{encoder_forward.12} parent=23 // pred_check_branch
        %130 = sbr.rel (%p128) target = $region28
      $region27: #{encoder_forward.12} parent=23 // pred_region
        %p131 = scmp.lt.s32.totalorder %s9, 1
        %s132 = scalar_select %p131, %s9, 1
        %s133 = smul.addr %s132, 8
        %s134 = smul.addr %s133, 8
        %s135 = scalar_lea.vmem %s0, %s134
      $region28: #{encoder_forward.12} parent=23 // pred_fallthru
        _
    $region24: #{encoder_forward.12} parent=5 // pred_fallthru
      _
    %p136 = scmp.le.s32.totalorder 1, %s9
    %p137 = scmp.lt.s32.totalorder %s9, 3
    %p138 = pnand %p136, %p137
    %p139 = pneg %p138
    // Predicated region
    $region29: #{encoder_forward.12} parent=5 // pred_check
      _
    $region30: #{encoder_forward.12} parent=5 // pred_check_branch
      %141 = sbr.rel (%p138) target = $region32
    $region31: #{encoder_forward.12} parent=5 // pred_region
      %s142 = ssub.s32 %s9, 1
      %p143 = scmp.lt.s32.totalorder %s14, 1
      %s144 = scalar_select %p143, %s14, 1
      %s145 = smul.addr %s144, 8
      %s146 = smul.addr %s145, 8
      %s147 = scalar_lea.vmem %s0, %s146
      %p148 = pneg %p35
      %p149 = pneg %p32
      %p150 = pneg %p56
      %p151 = pneg %p53
      %p152 = pneg %p77
      %p153 = pneg %p74
      %p154 = pneg %p103
      %p155 = pneg %p100
      %p156 = scmp.lt.s32.totalorder %s14, 1
      %s157 = scalar_select %p156, %s14, 1
      %s158 = smul.addr %s157, 8
      %s159 = smul.addr %s158, 4
      %s160 = scalar_lea.vmem %s3, %s159
      %p161 = scmp.lt.s32.totalorder %s14, 1
      %s162 = scalar_select %p161, %s14, 1
      %s163 = smul.addr %s162, 8
      %s164 = smul.addr %s163, 8
      %s165 = scalar_lea.vmem %s0, %s164
      %p166 = scmp.lt.s32.totalorder %s14, 1
      %s167 = scalar_select %p166, %s14, 1
      %s168 = smul.addr %s167, 8
      %s169 = smul.addr %s168, 4
      %s170 = scalar_lea.vmem %s3, %s169
      %v171 = vld [vmem:[%s165] sm:$0xff]
      %v172 = vld [vmem:[%s165 + $0x8] sm:$0xff]
      %v173 = vld [vmem:[%s165 + $0x10] sm:$0xff]
      %v174 = vld [vmem:[%s165 + $0x18] sm:$0xff]
      %v175 = vld [vmem:[%s165 + $0x20] sm:$0xff]
      %v176 = vld [vmem:[%s165 + $0x28] sm:$0xff]
      %v177 = vld [vmem:[%s165 + $0x30] sm:$0xff]
      %v178 = vld [vmem:[%s165 + $0x38] sm:$0xff]
      %v179 = vld [vmem:[%s1] sm:$0x1]
      %v181 = vlaneseq
      %v182 = vshrl.u32 %v181, 7
      %v183 = vsub.s32 0, %v182
      %v184 = vrot.slane %v179, %v183
      %v186 = vmul.f32 %v171, %v184
      %v187 = vmul.f32 %v172, %v184
      %v188 = vmul.f32 %v173, %v184
      %v189 = vmul.f32 %v174, %v184
      %v190 = vmul.f32 %v175, %v184
      %v191 = vmul.f32 %v176, %v184
      %v192 = vmul.f32 %v177, %v184
      %v193 = vmul.f32 %v178, %v184
      %v194 = vld [vmem:[%s2] sm:$0x1]
      %v196 = vlaneseq
      %v197 = vshrl.u32 %v196, 7
      %v198 = vsub.s32 0, %v197
      %v199 = vrot.slane %v194, %v198
      %v201 = vadd.f32 %v186, %v199
      %v202 = vadd.f32 %v187, %v199
      %v203 = vadd.f32 %v188, %v199
      %v204 = vadd.f32 %v189, %v199
      %v205 = vadd.f32 %v190, %v199
      %v206 = vadd.f32 %v191, %v199
      %v207 = vadd.f32 %v192, %v199
      %v208 = vadd.f32 %v193, %v199
      %vm209 = vcmp.gt.f32.partialorder %v201, 0.0
      %vm210 = vcmp.gt.f32.partialorder %v202, 0.0
      %vm211 = vcmp.gt.f32.partialorder %v203, 0.0
      %vm212 = vcmp.gt.f32.partialorder %v204, 0.0
      %vm213 = vcmp.gt.f32.partialorder %v205, 0.0
      %vm214 = vcmp.gt.f32.partialorder %v206, 0.0
      %vm215 = vcmp.gt.f32.partialorder %v207, 0.0
      %vm216 = vcmp.gt.f32.partialorder %v208, 0.0
      %v217 = vmul.f32 %v201, 0.2
      %v218 = vmul.f32 %v202, 0.2
      %v219 = vmul.f32 %v203, 0.2
      %v220 = vmul.f32 %v204, 0.2
      %v221 = vmul.f32 %v205, 0.2
      %v222 = vmul.f32 %v206, 0.2
      %v223 = vmul.f32 %v207, 0.2
      %v224 = vmul.f32 %v208, 0.2
      %v225 = vsel %vm209, %v201, %v217
      %v226 = vsel %vm210, %v202, %v218
      %v227 = vsel %vm211, %v203, %v219
      %v228 = vsel %vm212, %v204, %v220
      %v229 = vsel %vm213, %v205, %v221
      %v230 = vsel %vm214, %v206, %v222
      %v231 = vsel %vm215, %v207, %v223
      %v232 = vsel %vm216, %v208, %v224
      %v233 = vpack.c.bf16 %v226, %v225
      %v234 = vpack.c.bf16 %v228, %v227
      %v235 = vpack.c.bf16 %v230, %v229
      %v236 = vpack.c.bf16 %v232, %v231
      %v241 = vunpack.c.l.b16 %v233
      %v242 = vunpack.c.h.b16 %v233
      %v243 = vunpack.c.l.b16 %v234
      %v244 = vunpack.c.h.b16 %v234
      %v245 = vunpack.c.l.b16 %v235
      %v246 = vunpack.c.h.b16 %v235
      %v247 = vunpack.c.l.b16 %v236
      %v248 = vunpack.c.h.b16 %v236
      %v249 = vpack.c.b16 %v241, %v241
      %v250 = vpack.c.b16 %v242, %v242
      %v251 = vpack.c.b16 %v243, %v243
      %v252 = vpack.c.b16 %v244, %v244
      %v253 = vpack.c.b16 %v245, %v245
      %v254 = vpack.c.b16 %v246, %v246
      %v255 = vpack.c.b16 %v247, %v247
      %v256 = vpack.c.b16 %v248, %v248
      %vm265 = vcmask 125952
      %266 = vst.msk [vmem:[%s170] sm:$0xf] %vm265, %v249
      %267 = vst.msk [vmem:[%s170 + $0x4] sm:$0xf] %vm265, %v250
      %268 = vst.msk [vmem:[%s170 + $0x8] sm:$0xf] %vm265, %v251
      %269 = vst.msk [vmem:[%s170 + $0xc] sm:$0xf] %vm265, %v252
      %270 = vst.msk [vmem:[%s170 + $0x10] sm:$0xf] %vm265, %v253
      %271 = vst.msk [vmem:[%s170 + $0x14] sm:$0xf] %vm265, %v254
      %272 = vst.msk [vmem:[%s170 + $0x18] sm:$0xf] %vm265, %v255
      %273 = vst.msk [vmem:[%s170 + $0x1c] sm:$0xf] %vm265, %v256
      %p274 = scmp.lt.s32.totalorder %s14, 1
      %s275 = scalar_select %p274, %s14, 1
      %s276 = smul.addr %s275, 8
      %s277 = smul.addr %s276, 4
      %s278 = scalar_lea.vmem %s3, %s277
      // Predicated region
      $region33: #{encoder_forward.12} parent=31 // pred_check
        %p279 = pneg %p100
      $region34: #{encoder_forward.12} parent=31 // pred_check_branch
        %281 = sbr.rel (%p279) target = $region36
      $region35: #{encoder_forward.12} parent=31 // pred_region
        _
      $region36: #{encoder_forward.12} parent=31 // pred_fallthru
        _
    $region32: #{encoder_forward.12} parent=5 // pred_fallthru
      _
    %p282 = scmp.le.s32.totalorder 2, %s9
    // Predicated region
    $region37: #{encoder_forward.12} parent=5 // pred_check
      %p283 = pneg %p282
    $region38: #{encoder_forward.12} parent=5 // pred_check_branch
      %285 = sbr.rel (%p283) target = $region40
    $region39: #{encoder_forward.12} parent=5 // pred_region
      %s286 = ssub.s32 %s9, 2
      // Predicated region
      $region41: #{encoder_forward.12} parent=39 // pred_check
        %p287 = pneg %p106
      $region42: #{encoder_forward.12} parent=39 // pred_check_branch
        %289 = sbr.rel (%p287) target = $region44
      $region43: #{encoder_forward.12} parent=39 // pred_region
        %p290 = scmp.lt.s32.totalorder %s15, 1
        %s291 = scalar_select %p290, %s15, 1
        %s292 = smul.addr %s291, 8
        %s293 = smul.addr %s292, 4
        %s294 = scalar_lea.vmem %s3, %s293
      $region44: #{encoder_forward.12} parent=39 // pred_fallthru
        _
    $region40: #{encoder_forward.12} parent=5 // pred_fallthru
      _
  $region6: #{encoder_forward.12} parent=0 // loop_footer
    %s13 = sadd.s32 1, %s9
  $region7: #{encoder_forward.12} parent=0 // loop_footer_branch
    %8 = sbr.rel target = $region3
  $region8: #{encoder_forward.12} parent=0 // loop_exit
    _

// kernel: encoder_forward.11
$region0: #{encoder_forward.11}
  #allocation0 [shape = 'u32[]', space=smem, size = 0x4, offset = 0x4, fixed_abs, tag = 'smem constant byte address 0x4 - core index']
  #allocation1 [shape = 'u32[144,128]{1,0:T(1,128)}', space=vmem, size = 0x12000, scoped, tag = 'internal scratch']
  #allocation2 [shape = 'f32[2,16]{1,0:T(2,128)}', space=vmem, size = 0x400, scoped, tag = 'scratch operand']
  %s0 = inlined_call_operand.vmem [shape: bf16[2,36,9,4], index: 0, kind: input, shape index: {}]
  %s1 = inlined_call_operand.vmem [shape: bf16[36,16], index: 1, kind: input, shape index: {}]
  %s2 = inlined_call_operand.vmem [shape: f32[2,64,16], index: 2, kind: output, shape index: {0}]
  %s3 = inlined_call_operand.vmem [shape: f32[2,16], index: 3, kind: output, shape index: {1}]
  %4 = xla_tuple %s2, %s3
  %s5 = sld [smem:[#allocation0]]
  $region57: #{encoder_forward.11} parent=0
    _
  %s7 = ssub.s32 1, %s5
  %s8 = scalar_select 0, %s7, %s5
  loop: start=0, step=1, limit=4
  $region2: #{encoder_forward.11} parent=0 // loop_pre_header
    _
  $region3: #{encoder_forward.11} parent=0 // loop_header
    %s10 = sphi 0, %s14
    %p11 = scmp.ge.s32.totalorder %s10, 4
    %s20 = sphi 0, %s22
    %s23 = sphi 0, %s20
    %s24 = sphi 0, %s23
    %s40 = sphi 0, %s24
    %s44 = sphi 0, %s44
    %s46 = sphi 0, %s44
    %s47 = sphi 0, %s46
    %s61 = sphi 0, %s47
    %s67 = sphi 0, %s69
    %s70 = sphi 0, %s67
    %s71 = sphi 0, %s70
    %s87 = sphi 0, %s71
    %s91 = sphi 0, %s91
    %s93 = sphi 0, %s91
    %s94 = sphi 0, %s93
    %s108 = sphi 0, %s94
  $region4: #{encoder_forward.11} parent=0 // loop_header_branch
    %13 = sbr.rel (%p11) target = $region8
  $region5: #{encoder_forward.11} parent=0 // loop_body
    %s15 = ssub.s32 %s10, 1
    %s16 = ssub.s32 %s10, 2
    %s17 = sadd.s32 %s10, 1
    %s18 = ssub.s32 %s10, %s17
    %p19 = scmp.eq.s32.totalorder %s18, 0
    %s21 = sadd.s32 %s20, 1
    %s22 = scalar_select %p19, %s20, %s21
    %p25 = pneg %p19
    %p26 = scmp.eq.s32.totalorder %s10, 1
    %p27 = por %p25, %p26
    %p28 = scmp.ne.s32.totalorder %s20, %s23
    %p29 = scmp.eq.s32.totalorder %s10, 0
    %p30 = por %p28, %p29
    %p31 = scmp.ne.s32.totalorder %s20, %s23
    %p32 = scmp.eq.s32.totalorder %s15, 1
    %p33 = por %p31, %p32
    %p34 = scmp.ne.s32.totalorder %s23, %s24
    %p35 = scmp.eq.s32.totalorder %s15, 0
    %p36 = por %p34, %p35
    %p37 = scmp.ne.s32.totalorder %s23, %s24
    %p38 = scmp.eq.s32.totalorder %s16, 1
    %p39 = por %p37, %p38
    %p41 = scmp.ne.s32.totalorder %s24, %s40
    %p42 = scmp.eq.s32.totalorder %s16, 0
    %p43 = por %p41, %p42
    %s45 = sadd.s32 %s44, 1
    %p48 = scmp.eq.s32.totalorder %s10, 1
    %p49 = scmp.ne.s32.totalorder %s44, %s46
    %p50 = scmp.eq.s32.totalorder %s10, 0
    %p51 = por %p49, %p50
    %p52 = scmp.ne.s32.totalorder %s44, %s46
    %p53 = scmp.eq.s32.totalorder %s15, 1
    %p54 = por %p52, %p53
    %p55 = scmp.ne.s32.totalorder %s46, %s47
    %p56 = scmp.eq.s32.totalorder %s15, 0
    %p57 = por %p55, %p56
    %p58 = scmp.ne.s32.totalorder %s46, %s47
    %p59 = scmp.eq.s32.totalorder %s16, 1
    %p60 = por %p58, %p59
    %p62 = scmp.ne.s32.totalorder %s47, %s61
    %p63 = scmp.eq.s32.totalorder %s16, 0
    %p64 = por %p62, %p63
    %s65 = ssub.s32 %s10, %s17
    %p66 = scmp.eq.s32.totalorder %s65, 0
    %s68 = sadd.s32 %s67, 1
    %s69 = scalar_select %p66, %s67, %s68
    %p72 = pneg %p66
    %p73 = scmp.eq.s32.totalorder %s10, 1
    %p74 = por %p72, %p73
    %p75 = scmp.ne.s32.totalorder %s67, %s70
    %p76 = scmp.eq.s32.totalorder %s10, 0
    %p77 = por %p75, %p76
    %p78 = scmp.ne.s32.totalorder %s67, %s70
    %p79 = scmp.eq.s32.totalorder %s15, 1
    %p80 = por %p78, %p79
    %p81 = scmp.ne.s32.totalorder %s70, %s71
    %p82 = scmp.eq.s32.totalorder %s15, 0
    %p83 = por %p81, %p82
    %p84 = scmp.ne.s32.totalorder %s70, %s71
    %p85 = scmp.eq.s32.totalorder %s16, 1
    %p86 = por %p84, %p85
    %p88 = scmp.ne.s32.totalorder %s71, %s87
    %p89 = scmp.eq.s32.totalorder %s16, 0
    %p90 = por %p88, %p89
    %s92 = sadd.s32 %s91, 1
    %p95 = scmp.eq.s32.totalorder %s10, 1
    %p96 = scmp.ne.s32.totalorder %s91, %s93
    %p97 = scmp.eq.s32.totalorder %s10, 0
    %p98 = por %p96, %p97
    %p99 = scmp.ne.s32.totalorder %s91, %s93
    %p100 = scmp.eq.s32.totalorder %s15, 1
    %p101 = por %p99, %p100
    %p102 = scmp.ne.s32.totalorder %s93, %s94
    %p103 = scmp.eq.s32.totalorder %s15, 0
    %p104 = por %p102, %p103
    %p105 = scmp.ne.s32.totalorder %s93, %s94
    %p106 = scmp.eq.s32.totalorder %s16, 1
    %p107 = por %p105, %p106
    %p109 = scmp.ne.s32.totalorder %s94, %s108
    %p110 = scmp.eq.s32.totalorder %s16, 0
    %p111 = por %p109, %p110
    %p112 = scmp.le.s32.totalorder 1, %s10
    %p113 = scmp.lt.s32.totalorder %s10, 3
    %p114 = pnand %p112, %p113
    %p115 = pneg %p114
    // Predicated region
    $region9: #{encoder_forward.11} parent=5 // pred_check
      _
    $region10: #{encoder_forward.11} parent=5 // pred_check_branch
      %117 = sbr.rel (%p114) target = $region12
    $region11: #{encoder_forward.11} parent=5 // pred_region
      %s118 = ssub.s32 %s10, 1
      // Predicated region
      $region13: #{encoder_forward.11} parent=11 // pred_check
        %p119 = pneg %p57
      $region14: #{encoder_forward.11} parent=11 // pred_check_branch
        %121 = sbr.rel (%p119) target = $region16
      $region15: #{encoder_forward.11} parent=11 // pred_region
        _
      $region16: #{encoder_forward.11} parent=11 // pred_fallthru
        _
    $region12: #{encoder_forward.11} parent=5 // pred_fallthru
      _
    %p122 = scmp.lt.s32.totalorder %s10, 2
    // Predicated region
    $region17: #{encoder_forward.11} parent=5 // pred_check
      %p123 = pneg %p122
    $region18: #{encoder_forward.11} parent=5 // pred_check_branch
      %125 = sbr.rel (%p123) target = $region20
    $region19: #{encoder_forward.11} parent=5 // pred_region
      // Predicated region
      $region21: #{encoder_forward.11} parent=19 // pred_check
        %p126 = pneg %p30
      $region22: #{encoder_forward.11} parent=19 // pred_check_branch
        %128 = sbr.rel (%p126) target = $region24
      $region23: #{encoder_forward.11} parent=19 // pred_region
        %p129 = scmp.lt.s32.totalorder %s10, 1
        %s130 = scalar_select %p129, %s10, 1
        %s131 = smul.addr %s130, 72
        %s132 = smul.addr %s131, 4
        %s133 = scalar_lea.vmem %s0, %s132
      $region24: #{encoder_forward.11} parent=19 // pred_fallthru
        _
    $region20: #{encoder_forward.11} parent=5 // pred_fallthru
      _
    %p134 = scmp.le.s32.totalorder 1, %s10
    %p135 = scmp.lt.s32.totalorder %s10, 3
    %p136 = pnand %p134, %p135
    %p137 = pneg %p136
    // Predicated region
    $region25: #{encoder_forward.11} parent=5 // pred_check
      _
    $region26: #{encoder_forward.11} parent=5 // pred_check_branch
      %139 = sbr.rel (%p136) target = $region28
    $region27: #{encoder_forward.11} parent=5 // pred_region
      %s140 = ssub.s32 %s10, 1
      %p141 = scmp.lt.s32.totalorder %s15, 1
      %s142 = scalar_select %p141, %s15, 1
      %s143 = smul.addr %s142, 72
      %s144 = smul.addr %s143, 4
      %s145 = scalar_lea.vmem %s0, %s144
      %p146 = pneg %p36
      %p147 = pneg %p33
      %p148 = pneg %p57
      %p149 = pneg %p54
      %p150 = pneg %p83
      %p151 = pneg %p80
      %p152 = scmp.lt.s32.totalorder %s15, 1
      %s153 = scalar_select %p152, %s15, 1
      %s154 = smul.addr %s153, 8
      %s155 = smul.addr %s154, 8
      %s156 = scalar_lea.vmem %s2, %s155
      %p157 = pneg %p104
      %p158 = pneg %p101
      %p159 = scmp.lt.s32.totalorder %s15, 1
      %s160 = scalar_select %p159, %s15, 1
      %s161 = smul.addr %s160, 72
      %s162 = smul.addr %s161, 4
      %s163 = scalar_lea.vmem %s0, %s162
      %p164 = scmp.lt.s32.totalorder %s15, 1
      %s165 = scalar_select %p164, %s15, 1
      %s166 = smul.addr %s165, 8
      %s167 = smul.addr %s166, 8
      %s168 = scalar_lea.vmem %s2, %s167
      %p170 = scmp.eq.s32.totalorder %s15, 0
      // Predicated region
      $region29: #{encoder_forward.11} parent=27 // pred_check
        %p171 = pneg %p170
      $region30: #{encoder_forward.11} parent=27 // pred_check_branch
        %173 = sbr.rel (%p171) target = $region32
      $region31: #{encoder_forward.11} parent=27 // pred_region
        %vm174 = vcmask 123904
        %175 = vst.msk [vmem:[#allocation2] sm:$0x3] %vm174, 0.0
      $region32: #{encoder_forward.11} parent=27 // pred_fallthru
        _
      %v176 = vld [vmem:[%s163] sm:$0xf]
      %v177 = vld [vmem:[%s163 + $0x4] sm:$0x1]
      %v178 = vld [vmem:[%s163 + $0x8] sm:$0xf]
      %v179 = vld [vmem:[%s163 + $0xc] sm:$0x1]
      %v180 = vld [vmem:[%s163 + $0x10] sm:$0xf]
      %v181 = vld [vmem:[%s163 + $0x14] sm:$0x1]
      %v182 = vld [vmem:[%s163 + $0x18] sm:$0xf]
      %v183 = vld [vmem:[%s163 + $0x1c] sm:$0x1]
      %v184 = vld [vmem:[%s163 + $0x20] sm:$0xf]
      %v185 = vld [vmem:[%s163 + $0x24] sm:$0x1]
      %v186 = vld [vmem:[%s163 + $0x28] sm:$0xf]
      %v187 = vld [vmem:[%s163 + $0x2c] sm:$0x1]
      %v188 = vld [vmem:[%s163 + $0x30] sm:$0xf]
      %v189 = vld [vmem:[%s163 + $0x34] sm:$0x1]
      %v190 = vld [vmem:[%s163 + $0x38] sm:$0xf]
      %v191 = vld [vmem:[%s163 + $0x3c] sm:$0x1]
      %v192 = vld [vmem:[%s163 + $0x40] sm:$0xf]
      %v193 = vld [vmem:[%s163 + $0x44] sm:$0x1]
      %v194 = vld [vmem:[%s163 + $0x48] sm:$0xf]
      %v195 = vld [vmem:[%s163 + $0x50] sm:$0xf]
      %v196 = vld [vmem:[%s163 + $0x58] sm:$0xf]
      %v197 = vld [vmem:[%s163 + $0x60] sm:$0xf]
      %v198 = vld [vmem:[%s163 + $0x68] sm:$0xf]
      %v199 = vld [vmem:[%s163 + $0x70] sm:$0xf]
      %v200 = vld [vmem:[%s163 + $0x78] sm:$0xf]
      %v201 = vld [vmem:[%s163 + $0x80] sm:$0xf]
      %v202 = vld [vmem:[%s163 + $0x88] sm:$0xf]
      %v203 = vld [vmem:[%s163 + $0x90] sm:$0xf]
      %v204 = vld [vmem:[%s163 + $0x94] sm:$0x1]
      %v205 = vld [vmem:[%s163 + $0x98] sm:$0xf]
      %v206 = vld [vmem:[%s163 + $0x9c] sm:$0x1]
      %v207 = vld [vmem:[%s163 + $0xa0] sm:$0xf]
      %v208 = vld [vmem:[%s163 + $0xa4] sm:$0x1]
      %v209 = vld [vmem:[%s163 + $0xa8] sm:$0xf]
      %v210 = vld [vmem:[%s163 + $0xac] sm:$0x1]
      %v211 = vld [vmem:[%s163 + $0xb0] sm:$0xf]
      %v212 = vld [vmem:[%s163 + $0xb4] sm:$0x1]
      %v213 = vld [vmem:[%s163 + $0xb8] sm:$0xf]
      %v214 = vld [vmem:[%s163 + $0xbc] sm:$0x1]
      %v215 = vld [vmem:[%s163 + $0xc0] sm:$0xf]
      %v216 = vld [vmem:[%s163 + $0xc4] sm:$0x1]
      %v217 = vld [vmem:[%s163 + $0xc8] sm:$0xf]
      %v218 = vld [vmem:[%s163 + $0xcc] sm:$0x1]
      %v219 = vld [vmem:[%s163 + $0xd8] sm:$0xf]
      %v220 = vld [vmem:[%s163 + $0xe0] sm:$0xf]
      %v221 = vld [vmem:[%s163 + $0xe8] sm:$0xf]
      %v222 = vld [vmem:[%s163 + $0xf0] sm:$0xf]
      %v223 = vld [vmem:[%s163 + $0xf8] sm:$0xf]
      %v224 = vld [vmem:[%s163 + $0x100] sm:$0xf]
      %v225 = vld [vmem:[%s163 + $0x108] sm:$0xf]
      %v226 = vld [vmem:[%s163 + $0x110] sm:$0xf]
      %v227 = vld [vmem:[%s1] sm:$0xf]
      %v228 = vld [vmem:[%s1 + $0x4] sm:$0xf]
      %v229 = vld [vmem:[%s1 + $0x8] sm:$0xf]
      %v230 = vld [vmem:[%s1 + $0xc] sm:$0xf]
      %v231 = vld [vmem:[%s1 + $0x10] sm:$0x3]
      %v240 = vunpack.c.l.b16 %v194
      %v241 = vunpack.c.l.b16 %v195
      %v242 = vunpack.c.l.b16 %v196
      %v243 = vunpack.c.l.b16 %v197
      %v244 = vunpack.c.l.b16 %v198
      %v245 = vunpack.c.l.b16 %v199
      %v246 = vunpack.c.l.b16 %v200
      %v247 = vunpack.c.l.b16 %v201
      %v248 = vpack.c.b16 %v240, %v240
      %v249 = vpack.c.b16 %v241, %v241
      %v250 = vpack.c.b16 %v242, %v242
      %v251 = vpack.c.b16 %v243, %v243
      %v252 = vpack.c.b16 %v244, %v244
      %v253 = vpack.c.b16 %v245, %v245
      %v254 = vpack.c.b16 %v246, %v246
      %v255 = vpack.c.b16 %v247, %v247
      %256 = vrot.lane.b32.xlu0 %v248, 4
      %v257 = vpop.permute.xlu0 %256
      %258 = vrot.lane.b32.xlu0 %v249, 4
      %v259 = vpop.permute.xlu0 %258
      %260 = vrot.lane.b32.xlu0 %v250, 4
      %v261 = vpop.permute.xlu0 %260
      %262 = vrot.lane.b32.xlu0 %v251, 4
      %v263 = vpop.permute.xlu0 %262
      %264 = vrot.lane.b32.xlu0 %v252, 4
      %v265 = vpop.permute.xlu0 %264
      %266 = vrot.lane.b32.xlu0 %v253, 4
      %v267 = vpop.permute.xlu0 %266
      %268 = vrot.lane.b32.xlu0 %v254, 4
      %v269 = vpop.permute.xlu0 %268
      %270 = vrot.lane.b32.xlu0 %v255, 4
      %v271 = vpop.permute.xlu0 %270
      %v288 = vunpack.c.l.b16 %v176
      %v289 = vunpack.c.l.b16 %v177
      %v290 = vunpack.c.l.b16 %v178
      %v291 = vunpack.c.l.b16 %v179
      %v292 = vunpack.c.l.b16 %v180
      %v293 = vunpack.c.l.b16 %v181
      %v294 = vunpack.c.l.b16 %v182
      %v295 = vunpack.c.l.b16 %v183
      %v296 = vunpack.c.l.b16 %v184
      %v297 = vunpack.c.l.b16 %v185
      %v298 = vunpack.c.l.b16 %v186
      %v299 = vunpack.c.l.b16 %v187
      %v300 = vunpack.c.l.b16 %v188
      %v301 = vunpack.c.l.b16 %v189
      %v302 = vunpack.c.l.b16 %v190
      %v303 = vunpack.c.l.b16 %v191
      %v304 = vpack.c.b16 %v289, %v288
      %v305 = vpack.c.b16 %v291, %v290
      %v306 = vpack.c.b16 %v293, %v292
      %v307 = vpack.c.b16 %v295, %v294
      %v308 = vpack.c.b16 %v297, %v296
      %v309 = vpack.c.b16 %v299, %v298
      %v310 = vpack.c.b16 %v301, %v300
      %v311 = vpack.c.b16 %v303, %v302
      %v313 = vshrl.u32 %v304, 16
      %v315 = vshll.u32 %v304, 16
      %v317 = vrot.slane %v315, 1
      %v318 = vor.u32 %v313, %v317
      %v320 = vshrl.u32 %v305, 16
      %v322 = vshll.u32 %v305, 16
      %v324 = vrot.slane %v322, 1
      %v325 = vor.u32 %v320, %v324
      %v327 = vshrl.u32 %v306, 16
      %v329 = vshll.u32 %v306, 16
      %v331 = vrot.slane %v329, 1
      %v332 = vor.u32 %v327, %v331
      %v334 = vshrl.u32 %v307, 16
      %v336 = vshll.u32 %v307, 16
      %v338 = vrot.slane %v336, 1
      %v339 = vor.u32 %v334, %v338
      %v341 = vshrl.u32 %v308, 16
      %v343 = vshll.u32 %v308, 16
      %v345 = vrot.slane %v343, 1
      %v346 = vor.u32 %v341, %v345
      %v348 = vshrl.u32 %v309, 16
      %v350 = vshll.u32 %v309, 16
      %v352 = vrot.slane %v350, 1
      %v353 = vor.u32 %v348, %v352
      %v355 = vshrl.u32 %v310, 16
      %v357 = vshll.u32 %v310, 16
      %v359 = vrot.slane %v357, 1
      %v360 = vor.u32 %v355, %v359
      %v362 = vshrl.u32 %v311, 16
      %v364 = vshll.u32 %v311, 16
      %v366 = vrot.slane %v364, 1
      %v367 = vor.u32 %v362, %v366
      %368 = vrot.lane.b32.xlu0 %v318, 8
      %v369 = vpop.permute.xlu0 %368
      %370 = vrot.lane.b32.xlu0 %v325, 8
      %v371 = vpop.permute.xlu0 %370
      %372 = vrot.lane.b32.xlu0 %v332, 8
      %v373 = vpop.permute.xlu0 %372
      %374 = vrot.lane.b32.xlu0 %v339, 8
      %v375 = vpop.permute.xlu0 %374
      %376 = vrot.lane.b32.xlu0 %v346, 8
      %v377 = vpop.permute.xlu0 %376
      %378 = vrot.lane.b32.xlu0 %v353, 8
      %v379 = vpop.permute.xlu0 %378
      %380 = vrot.lane.b32.xlu0 %v360, 8
      %v381 = vpop.permute.xlu0 %380
      %382 = vrot.lane.b32.xlu0 %v367, 8
      %v383 = vpop.permute.xlu0 %382
      %v392 = vunpack.c.l.b16 %v203
      %v393 = vunpack.c.l.b16 %v205
      %v394 = vunpack.c.l.b16 %v207
      %v395 = vunpack.c.l.b16 %v209
      %v396 = vunpack.c.l.b16 %v211
      %v397 = vunpack.c.l.b16 %v213
      %v398 = vunpack.c.l.b16 %v215
      %v399 = vunpack.c.l.b16 %v217
      %v400 = vpack.c.b16 %v392, %v392
      %v401 = vpack.c.b16 %v393, %v393
      %v402 = vpack.c.b16 %v394, %v394
      %v403 = vpack.c.b16 %v395, %v395
      %v404 = vpack.c.b16 %v396, %v396
      %v405 = vpack.c.b16 %v397, %v397
      %v406 = vpack.c.b16 %v398, %v398
      %v407 = vpack.c.b16 %v399, %v399
      %408 = vrot.lane.b32.xlu0 %v400, 12
      %v409 = vpop.permute.xlu0 %408
      %410 = vrot.lane.b32.xlu0 %v401, 12
      %v411 = vpop.permute.xlu0 %410
      %412 = vrot.lane.b32.xlu0 %v402, 12
      %v413 = vpop.permute.xlu0 %412
      %414 = vrot.lane.b32.xlu0 %v403, 12
      %v415 = vpop.permute.xlu0 %414
      %416 = vrot.lane.b32.xlu0 %v404, 12
      %v417 = vpop.permute.xlu0 %416
      %418 = vrot.lane.b32.xlu0 %v405, 12
      %v419 = vpop.permute.xlu0 %418
      %420 = vrot.lane.b32.xlu0 %v406, 12
      %v421 = vpop.permute.xlu0 %420
      %422 = vrot.lane.b32.xlu0 %v407, 12
      %v423 = vpop.permute.xlu0 %422
      %v432 = vunpack.c.l.b16 %v219
      %v433 = vunpack.c.l.b16 %v220
      %v434 = vunpack.c.l.b16 %v221
      %v435 = vunpack.c.l.b16 %v222
      %v436 = vunpack.c.l.b16 %v223
      %v437 = vunpack.c.l.b16 %v224
      %v438 = vunpack.c.l.b16 %v225
      %v439 = vunpack.c.l.b16 %v226
      %v440 = vpack.c.b16 %v432, %v432
      %v441 = vpack.c.b16 %v433, %v433
      %v442 = vpack.c.b16 %v434, %v434
      %v443 = vpack.c.b16 %v435, %v435
      %v444 = vpack.c.b16 %v436, %v436
      %v445 = vpack.c.b16 %v437, %v437
      %v446 = vpack.c.b16 %v438, %v438
      %v447 = vpack.c.b16 %v439, %v439
      %448 = vrot.lane.b32.xlu0 %v440, 16
      %v449 = vpop.permute.xlu0 %448
      %450 = vrot.lane.b32.xlu0 %v441, 16
      %v451 = vpop.permute.xlu0 %450
      %452 = vrot.lane.b32.xlu0 %v442, 16
      %v453 = vpop.permute.xlu0 %452
      %454 = vrot.lane.b32.xlu0 %v443, 16
      %v455 = vpop.permute.xlu0 %454
      %456 = vrot.lane.b32.xlu0 %v444, 16
      %v457 = vpop.permute.xlu0 %456
      %458 = vrot.lane.b32.xlu0 %v445, 16
      %v459 = vpop.permute.xlu0 %458
      %460 = vrot.lane.b32.xlu0 %v446, 16
      %v461 = vpop.permute.xlu0 %460
      %462 = vrot.lane.b32.xlu0 %v447, 16
      %v463 = vpop.permute.xlu0 %462
      %v472 = vunpack.c.l.b16 %v204
      %v473 = vunpack.c.l.b16 %v206
      %v474 = vunpack.c.l.b16 %v208
      %v475 = vunpack.c.l.b16 %v210
      %v476 = vunpack.c.l.b16 %v212
      %v477 = vunpack.c.l.b16 %v214
      %v478 = vunpack.c.l.b16 %v216
      %v479 = vunpack.c.l.b16 %v218
      %v480 = vpack.c.b16 %v472, %v392
      %v481 = vpack.c.b16 %v473, %v393
      %v482 = vpack.c.b16 %v474, %v394
      %v483 = vpack.c.b16 %v475, %v395
      %v484 = vpack.c.b16 %v476, %v396
      %v485 = vpack.c.b16 %v477, %v397
      %v486 = vpack.c.b16 %v478, %v398
      %v487 = vpack.c.b16 %v479, %v399
      %v489 = vshrl.u32 %v480, 16
      %v491 = vshll.u32 %v480, 16
      %v493 = vrot.slane %v491, 1
      %v494 = vor.u32 %v489, %v493
      %v496 = vshrl.u32 %v481, 16
      %v498 = vshll.u32 %v481, 16
      %v500 = vrot.slane %v498, 1
      %v501 = vor.u32 %v496, %v500
      %v503 = vshrl.u32 %v482, 16
      %v505 = vshll.u32 %v482, 16
      %v507 = vrot.slane %v505, 1
      %v508 = vor.u32 %v503, %v507
      %v510 = vshrl.u32 %v483, 16
      %v512 = vshll.u32 %v483, 16
      %v514 = vrot.slane %v512, 1
      %v515 = vor.u32 %v510, %v514
      %v517 = vshrl.u32 %v484, 16
      %v519 = vshll.u32 %v484, 16
      %v521 = vrot.slane %v519, 1
      %v522 = vor.u32 %v517, %v521
      %v524 = vshrl.u32 %v485, 16
      %v526 = vshll.u32 %v485, 16
      %v528 = vrot.slane %v526, 1
      %v529 = vor.u32 %v524, %v528
      %v531 = vshrl.u32 %v486, 16
      %v533 = vshll.u32 %v486, 16
      %v535 = vrot.slane %v533, 1
      %v536 = vor.u32 %v531, %v535
      %v538 = vshrl.u32 %v487, 16
      %v540 = vshll.u32 %v487, 16
      %v542 = vrot.slane %v540, 1
      %v543 = vor.u32 %v538, %v542
      %544 = vrot.lane.b32.xlu0 %v494, 20
      %v545 = vpop.permute.xlu0 %544
      %546 = vrot.lane.b32.xlu0 %v501, 20
      %v547 = vpop.permute.xlu0 %546
      %548 = vrot.lane.b32.xlu0 %v508, 20
      %v549 = vpop.permute.xlu0 %548
      %550 = vrot.lane.b32.xlu0 %v515, 20
      %v551 = vpop.permute.xlu0 %550
      %552 = vrot.lane.b32.xlu0 %v522, 20
      %v553 = vpop.permute.xlu0 %552
      %554 = vrot.lane.b32.xlu0 %v529, 20
      %v555 = vpop.permute.xlu0 %554
      %556 = vrot.lane.b32.xlu0 %v536, 20
      %v557 = vpop.permute.xlu0 %556
      %558 = vrot.lane.b32.xlu0 %v543, 20
      %v559 = vpop.permute.xlu0 %558
      %v561 = vunpack.c.l.b16 %v192
      %v562 = vpack.c.b16 %v290, %v290
      %v563 = vpack.c.b16 %v292, %v292
      %v564 = vpack.c.b16 %v294, %v294
      %v565 = vpack.c.b16 %v296, %v296
      %v566 = vpack.c.b16 %v298, %v298
      %v567 = vpack.c.b16 %v300, %v300
      %v568 = vpack.c.b16 %v302, %v302
      %v569 = vpack.c.b16 %v561, %v561
      %570 = vrot.lane.b32.xlu0 %v562, 24
      %v571 = vpop.permute.xlu0 %570
      %572 = vrot.lane.b32.xlu0 %v563, 24
      %v573 = vpop.permute.xlu0 %572
      %574 = vrot.lane.b32.xlu0 %v564, 24
      %v575 = vpop.permute.xlu0 %574
      %576 = vrot.lane.b32.xlu0 %v565, 24
      %v577 = vpop.permute.xlu0 %576
      %578 = vrot.lane.b32.xlu0 %v566, 24
      %v579 = vpop.permute.xlu0 %578
      %580 = vrot.lane.b32.xlu0 %v567, 24
      %v581 = vpop.permute.xlu0 %580
      %582 = vrot.lane.b32.xlu0 %v568, 24
      %v583 = vpop.permute.xlu0 %582
      %584 = vrot.lane.b32.xlu0 %v569, 24
      %v585 = vpop.permute.xlu0 %584
      %v587 = vunpack.c.l.b16 %v202
      %v588 = vpack.c.b16 %v587, %v587
      %589 = vrot.lane.b32.xlu0 %v249, 28
      %v590 = vpop.permute.xlu0 %589
      %591 = vrot.lane.b32.xlu0 %v250, 28
      %v592 = vpop.permute.xlu0 %591
      %593 = vrot.lane.b32.xlu0 %v251, 28
      %v594 = vpop.permute.xlu0 %593
      %595 = vrot.lane.b32.xlu0 %v252, 28
      %v596 = vpop.permute.xlu0 %595
      %597 = vrot.lane.b32.xlu0 %v253, 28
      %v598 = vpop.permute.xlu0 %597
      %599 = vrot.lane.b32.xlu0 %v254, 28
      %v600 = vpop.permute.xlu0 %599
      %601 = vrot.lane.b32.xlu0 %v255, 28
      %v602 = vpop.permute.xlu0 %601
      %603 = vrot.lane.b32.xlu0 %v588, 28
      %v604 = vpop.permute.xlu0 %603
      %v606 = vunpack.c.l.b16 %v193
      %v607 = vpack.c.b16 %v606, %v561
      %v609 = vshrl.u32 %v607, 16
      %v611 = vshll.u32 %v607, 16
      %v613 = vrot.slane %v611, 1
      %v614 = vor.u32 %v609, %v613
      %615 = vrot.lane.b32.xlu0 %v325, 32
      %v616 = vpop.permute.xlu0 %615
      %617 = vrot.lane.b32.xlu0 %v332, 32
      %v618 = vpop.permute.xlu0 %617
      %619 = vrot.lane.b32.xlu0 %v339, 32
      %v620 = vpop.permute.xlu0 %619
      %621 = vrot.lane.b32.xlu0 %v346, 32
      %v622 = vpop.permute.xlu0 %621
      %623 = vrot.lane.b32.xlu0 %v353, 32
      %v624 = vpop.permute.xlu0 %623
      %625 = vrot.lane.b32.xlu0 %v360, 32
      %v626 = vpop.permute.xlu0 %625
      %627 = vrot.lane.b32.xlu0 %v367, 32
      %v628 = vpop.permute.xlu0 %627
      %629 = vrot.lane.b32.xlu0 %v614, 32
      %v630 = vpop.permute.xlu0 %629
      %vm631 = vcmask 31744
      %v634 = vsel %vm631, %v176, %v257
      %v637 = vsel %vm631, %v178, %v259
      %v640 = vsel %vm631, %v180, %v261
      %v643 = vsel %vm631, %v182, %v263
      %v646 = vsel %vm631, %v184, %v265
      %v649 = vsel %vm631, %v186, %v267
      %v652 = vsel %vm631, %v188, %v269
      %v655 = vsel %vm631, %v190, %v271
      %vm656 = vcmask 64512
      %v658 = vsel %vm656, %v634, %v369
      %v660 = vsel %vm656, %v637, %v371
      %v662 = vsel %vm656, %v640, %v373
      %v664 = vsel %vm656, %v643, %v375
      %v666 = vsel %vm656, %v646, %v377
      %v668 = vsel %vm656, %v649, %v379
      %v670 = vsel %vm656, %v652, %v381
      %v672 = vsel %vm656, %v655, %v383
      %vm673 = vcmask 97280
      %v675 = vsel %vm673, %v658, %v409
      %v677 = vsel %vm673, %v660, %v411
      %v679 = vsel %vm673, %v662, %v413
      %v681 = vsel %vm673, %v664, %v415
      %v683 = vsel %vm673, %v666, %v417
      %v685 = vsel %vm673, %v668, %v419
      %v687 = vsel %vm673, %v670, %v421
      %v689 = vsel %vm673, %v672, %v423
      %vm690 = vcmask 130048
      %v692 = vsel %vm690, %v675, %v449
      %v694 = vsel %vm690, %v677, %v451
      %v696 = vsel %vm690, %v679, %v453
      %v698 = vsel %vm690, %v681, %v455
      %v700 = vsel %vm690, %v683, %v457
      %v702 = vsel %vm690, %v685, %v459
      %v704 = vsel %vm690, %v687, %v461
      %v706 = vsel %vm690, %v689, %v463
      %vm707 = vcmask 162816
      %v709 = vsel %vm707, %v692, %v545
      %v711 = vsel %vm707, %v694, %v547
      %v713 = vsel %vm707, %v696, %v549
      %v715 = vsel %vm707, %v698, %v551
      %v717 = vsel %vm707, %v700, %v553
      %v719 = vsel %vm707, %v702, %v555
      %v721 = vsel %vm707, %v704, %v557
      %v723 = vsel %vm707, %v706, %v559
      %vm724 = vcmask 195584
      %v726 = vsel %vm724, %v709, %v571
      %v728 = vsel %vm724, %v711, %v573
      %v730 = vsel %vm724, %v713, %v575
      %v732 = vsel %vm724, %v715, %v577
      %v734 = vsel %vm724, %v717, %v579
      %v736 = vsel %vm724, %v719, %v581
      %v738 = vsel %vm724, %v721, %v583
      %v740 = vsel %vm724, %v723, %v585
      %vm741 = vcmask 228352
      %v743 = vsel %vm741, %v726, %v590
      %v745 = vsel %vm741, %v728, %v592
      %v747 = vsel %vm741, %v730, %v594
      %v749 = vsel %vm741, %v732, %v596
      %v751 = vsel %vm741, %v734, %v598
      %v753 = vsel %vm741, %v736, %v600
      %v755 = vsel %vm741, %v738, %v602
      %v757 = vsel %vm741, %v740, %v604
      %vm758 = vcmask 261120
      %v760 = vsel %vm758, %v743, %v616
      %v762 = vsel %vm758, %v745, %v618
      %v764 = vsel %vm758, %v747, %v620
      %v766 = vsel %vm758, %v749, %v622
      %v768 = vsel %vm758, %v751, %v624
      %v770 = vsel %vm758, %v753, %v626
      %v772 = vsel %vm758, %v755, %v628
      %v774 = vsel %vm758, %v757, %v630
      %v783 = vunpack.c.l.b16 %v760
      %v784 = vunpack.c.l.b16 %v762
      %v785 = vunpack.c.l.b16 %v764
      %v786 = vunpack.c.l.b16 %v766
      %v787 = vunpack.c.l.b16 %v768
      %v788 = vunpack.c.l.b16 %v770
      %v789 = vunpack.c.l.b16 %v772
      %v790 = vunpack.c.l.b16 %v774
      %v791 = vpack.c.b16 %v784, %v783
      %v792 = vpack.c.b16 %v786, %v785
      %v793 = vpack.c.b16 %v788, %v787
      %v794 = vpack.c.b16 %v790, %v789
      %v800 = vunpack.c.l.b16 %v227
      %v801 = vunpack.c.l.b16 %v228
      %v802 = vunpack.c.l.b16 %v229
      %v803 = vunpack.c.l.b16 %v230
      %v804 = vunpack.c.l.b16 %v231
      %v805 = vpack.c.b16 %v801, %v800
      %v806 = vpack.c.b16 %v803, %v802
      %v807 = vpack.c.b16 %v804, %v804
      %vm810 = vcmask 293888
      %v812 = vsel %vm810, %v791, 0
      %v815 = vsel %vm810, %v792, 0
      %v818 = vsel %vm810, %v793, 0
      %v821 = vsel %vm810, %v794, 0
      %vm823 = vcmask 1041408
      %v825 = vsel %vm823, %v807, 0
      %827 = vmatprep.subr.bf16.mxu0 0
      %828 = vmatpush1.bf16.msra.mxu0 0
      %829 = vmatprep.subr.bf16.mxu0 0
      %830 = vmatpush1.bf16.msra.mxu0 0
      %831 = vmatprep.subr.bf16.mxu0 0
      %832 = vmatpush1.bf16.msra.mxu0 0
      %833 = vmatprep.subr.bf16.mxu0 0
      %834 = vmatpush1.bf16.msra.mxu0 0
      %835 = vmatprep.subr.bf16.mxu0 0
      %836 = vmatpush1.bf16.msra.mxu0 0
      %837 = vmatprep.subr.bf16.mxu0 0
      %838 = vmatpush1.bf16.msra.mxu0 %v825
      %839 = vmatprep.subr.bf16.mxu0 0
      %840 = vmatpush1.bf16.msra.mxu0 %v806
      %841 = vmatprep.subr.bf16.mxu0 0
      %842 = vmatpush1.bf16.msra.mxu0 %v805
      %843 = vmatprep.subr.bf16.mxu0 0
      %844 = vmatpush2.bf16.msra.mxu0 0
      %845 = vmatprep.subr.bf16.mxu0 0
      %846 = vmatpush2.bf16.msra.mxu0 0
      %847 = vmatprep.subr.bf16.mxu0 0
      %848 = vmatpush2.bf16.msra.mxu0 0
      %849 = vmatprep.subr.bf16.mxu0 0
      %850 = vmatpush2.bf16.msra.mxu0 0
      %851 = vmatprep.subr.bf16.mxu0 0
      %852 = vmatpush2.bf16.msra.mxu0 0
      %853 = vmatprep.subr.bf16.mxu0 0
      %854 = vmatpush2.bf16.msra.mxu0 0
      %855 = vmatprep.subr.bf16.mxu0 0
      %856 = vmatpush2.bf16.msra.mxu0 0
      %857 = vmatprep.subr.bf16.mxu0 0
      %858 = vmatpush2.bf16.msra.mxu0 0
      %859 = vmatprep.mubr.bf16.mxu0 0
      %860 = vmatmul.mubr.bf16.gmra.mxu0 %v812
      %v861 = vpop.f32.mrf.mxu0
      %v862 = vadd.f32 0.0, %v861
      %v863 = vpop.f32.mrf.mxu0
      %v864 = vpop.f32.mrf.mxu0
      %v865 = vadd.f32 0.0, %v864
      %v866 = vpop.f32.mrf.mxu0
      %867 = vmatprep.mubr.bf16.mxu0 0
      %868 = vmatmul.mubr.bf16.gmra.mxu0 %v815
      %v869 = vpop.f32.mrf.mxu0
      %v870 = vadd.f32 0.0, %v869
      %v871 = vpop.f32.mrf.mxu0
      %v872 = vpop.f32.mrf.mxu0
      %v873 = vadd.f32 0.0, %v872
      %v874 = vpop.f32.mrf.mxu0
      %875 = vmatprep.mubr.bf16.mxu0 0
      %876 = vmatmul.mubr.bf16.gmra.mxu0 %v818
      %v877 = vpop.f32.mrf.mxu0
      %v878 = vadd.f32 0.0, %v877
      %v879 = vpop.f32.mrf.mxu0
      %v880 = vpop.f32.mrf.mxu0
      %v881 = vadd.f32 0.0, %v880
      %v882 = vpop.f32.mrf.mxu0
      %883 = vmatprep.mubr.bf16.mxu0 0
      %884 = vmatmul.mubr.bf16.gmra.mxu0 %v821
      %v885 = vpop.f32.mrf.mxu0
      %v886 = vadd.f32 0.0, %v885
      %v887 = vpop.f32.mrf.mxu0
      %v888 = vpop.f32.mrf.mxu0
      %v889 = vadd.f32 0.0, %v888
      %v890 = vpop.f32.mrf.mxu0
      %891 = vdwg.mxu0
      %892 = vst.msk [vmem:[%s168] sm:$0xff] %vm690, %v862
      %893 = vst.msk [vmem:[%s168 + $0x8] sm:$0xff] %vm690, %v865
      %894 = vst.msk [vmem:[%s168 + $0x10] sm:$0xff] %vm690, %v870
      %895 = vst.msk [vmem:[%s168 + $0x18] sm:$0xff] %vm690, %v873
      %896 = vst.msk [vmem:[%s168 + $0x20] sm:$0xff] %vm690, %v878
      %897 = vst.msk [vmem:[%s168 + $0x28] sm:$0xff] %vm690, %v881
      %898 = vst.msk [vmem:[%s168 + $0x30] sm:$0xff] %vm690, %v886
      %899 = vst.msk [vmem:[%s168 + $0x38] sm:$0xff] %vm690, %v889
      %v900 = vld [vmem:[#allocation2] sm:$0x1]
      %v901 = vsel %vm690, %v862, 0.0
      %v902 = vsel %vm690, %v865, 0.0
      %v903 = vadd.f32 %v901, %v902
      %v904 = vsel %vm690, %v870, 0.0
      %v905 = vadd.f32 %v903, %v904
      %v906 = vsel %vm690, %v873, 0.0
      %v907 = vadd.f32 %v905, %v906
      %v908 = vsel %vm690, %v878, 0.0
      %v909 = vadd.f32 %v907, %v908
      %v910 = vsel %vm690, %v881, 0.0
      %v911 = vadd.f32 %v909, %v910
      %v912 = vsel %vm690, %v886, 0.0
      %v913 = vadd.f32 %v911, %v912
      %v914 = vsel %vm690, %v889, 0.0
      %v915 = vadd.f32 %v913, %v914
      %v916 = vrot.slane %v915, 4
      %v917 = vadd.f32 %v915, %v916
      %v918 = vrot.slane %v917, 2
      %v919 = vadd.f32 %v917, %v918
      %v920 = vrot.slane %v919, 1
      %v921 = vadd.f32 %v919, %v920
      %v922 = vadd.f32 %v900, %v921
      %vm923 = vcmask 122880
      %924 = vst.msk [vmem:[#allocation2] sm:$0x1] %vm923, %v922
      %v925 = vld [vmem:[#allocation2 + $0x1] sm:$0x1]
      %v926 = vmul.f32 %v862, %v862
      %v927 = vmul.f32 %v865, %v865
      %v928 = vmul.f32 %v870, %v870
      %v929 = vmul.f32 %v873, %v873
      %v930 = vmul.f32 %v878, %v878
      %v931 = vmul.f32 %v881, %v881
      %v932 = vmul.f32 %v886, %v886
      %v933 = vmul.f32 %v889, %v889
      %v934 = vsel %vm690, %v926, 0.0
      %v935 = vsel %vm690, %v927, 0.0
      %v936 = vadd.f32 %v934, %v935
      %v937 = vsel %vm690, %v928, 0.0
      %v938 = vadd.f32 %v936, %v937
      %v939 = vsel %vm690, %v929, 0.0
      %v940 = vadd.f32 %v938, %v939
      %v941 = vsel %vm690, %v930, 0.0
      %v942 = vadd.f32 %v940, %v941
      %v943 = vsel %vm690, %v931, 0.0
      %v944 = vadd.f32 %v942, %v943
      %v945 = vsel %vm690, %v932, 0.0
      %v946 = vadd.f32 %v944, %v945
      %v947 = vsel %vm690, %v933, 0.0
      %v948 = vadd.f32 %v946, %v947
      %v949 = vrot.slane %v948, 4
      %v950 = vadd.f32 %v948, %v949
      %v951 = vrot.slane %v950, 2
      %v952 = vadd.f32 %v950, %v951
      %v953 = vrot.slane %v952, 1
      %v954 = vadd.f32 %v952, %v953
      %v955 = vadd.f32 %v925, %v954
      %956 = vst.msk [vmem:[#allocation2 + $0x1] sm:$0x1] %vm923, %v955
      %p957 = scmp.eq.s32.totalorder %s15, 1
      // Predicated region
      $region33: #{encoder_forward.11} parent=27 // pred_check
        %p958 = pneg %p957
      $region34: #{encoder_forward.11} parent=27 // pred_check_branch
        %960 = sbr.rel (%p958) target = $region36
      $region35: #{encoder_forward.11} parent=27 // pred_region
        %v961 = vld [vmem:[#allocation2] sm:$0x3]
        %vm962 = vcmask 123904
        %963 = vst.msk [vmem:[%s3] sm:$0x3] %vm962, %v961
      $region36: #{encoder_forward.11} parent=27 // pred_fallthru
        _
      %p964 = scmp.lt.s32.totalorder %s15, 1
      %s965 = scalar_select %p964, %s15, 1
      %s966 = smul.addr %s965, 8
      %s967 = smul.addr %s966, 8
      %s968 = scalar_lea.vmem %s2, %s967
      // Predicated region
      $region37: #{encoder_forward.11} parent=27 // pred_check
        %p969 = pneg %p80
      $region38: #{encoder_forward.11} parent=27 // pred_check_branch
        %971 = sbr.rel (%p969) target = $region40
      $region39: #{encoder_forward.11} parent=27 // pred_region
        _
      $region40: #{encoder_forward.11} parent=27 // pred_fallthru
        _
      // Predicated region
      $region41: #{encoder_forward.11} parent=27 // pred_check
        %p972 = pneg %p101
      $region42: #{encoder_forward.11} parent=27 // pred_check_branch
        %974 = sbr.rel (%p972) target = $region44
      $region43: #{encoder_forward.11} parent=27 // pred_region
        _
      $region44: #{encoder_forward.11} parent=27 // pred_fallthru
        _
      // Predicated region
      $region45: #{encoder_forward.11} parent=27 // pred_check
        %p975 = pneg %p101
      $region46: #{encoder_forward.11} parent=27 // pred_check_branch
        %977 = sbr.rel (%p975) target = $region48
      $region47: #{encoder_forward.11} parent=27 // pred_region
        _
      $region48: #{encoder_forward.11} parent=27 // pred_fallthru
        _
    $region28: #{encoder_forward.11} parent=5 // pred_fallthru
      _
    %p978 = scmp.le.s32.totalorder 2, %s10
    // Predicated region
    $region49: #{encoder_forward.11} parent=5 // pred_check
      %p979 = pneg %p978
    $region50: #{encoder_forward.11} parent=5 // pred_check_branch
      %981 = sbr.rel (%p979) target = $region52
    $region51: #{encoder_forward.11} parent=5 // pred_region
      %s982 = ssub.s32 %s10, 2
      // Predicated region
      $region53: #{encoder_forward.11} parent=51 // pred_check
        %p983 = pneg %p86
      $region54: #{encoder_forward.11} parent=51 // pred_check_branch
        %985 = sbr.rel (%p983) target = $region56
      $region55: #{encoder_forward.11} parent=51 // pred_region
        %p986 = scmp.lt.s32.totalorder %s16, 1
        %s987 = scalar_select %p986, %s16, 1
        %s988 = smul.addr %s987, 8
        %s989 = smul.addr %s988, 8
        %s990 = scalar_lea.vmem %s2, %s989
      $region56: #{encoder_forward.11} parent=51 // pred_fallthru
        _
    $region52: #{encoder_forward.11} parent=5 // pred_fallthru
      _
  $region6: #{encoder_forward.11} parent=0 // loop_footer
    %s14 = sadd.s32 1, %s10
  $region7: #{encoder_forward.11} parent=0 // loop_footer_branch
    %9 = sbr.rel target = $region3
  $region8: #{encoder_forward.11} parent=0 // loop_exit
    _

// kernel: encoder_forward.13
$region0: #{encoder_forward.13}
  #allocation0 [shape = 'u32[]', space=smem, size = 0x4, offset = 0x4, fixed_abs, tag = 'smem constant byte address 0x4 - core index']
  #allocation1 [shape = 'u32[144,128]{1,0:T(1,128)}', space=vmem, size = 0x12000, scoped, tag = 'internal scratch']
  #allocation2 [shape = 'f32[2,64]{1,0:T(2,128)}', space=vmem, size = 0x400, scoped, tag = 'scratch operand']
  %s0 = inlined_call_operand.vmem [shape: bf16[2,1024], index: 0, kind: input, shape index: {}]
  %s1 = inlined_call_operand.vmem [shape: bf16[1024,64], index: 1, kind: input, shape index: {}]
  %s2 = inlined_call_operand.vmem [shape: f32[1,64], index: 2, kind: input, shape index: {}]
  %s3 = inlined_call_operand.vmem [shape: f32[1,64], index: 3, kind: input, shape index: {}]
  %s4 = inlined_call_operand.vmem [shape: bf16[2,64], index: 4, kind: output, shape index: {}]
  %s5 = sld [smem:[#allocation0]]
  $region57: #{encoder_forward.13} parent=0
    _
  %s7 = ssub.s32 1, %s5
  %s8 = scalar_select 0, %s7, %s5
  loop: start=0, step=1, limit=4
  $region2: #{encoder_forward.13} parent=0 // loop_pre_header
    _
  $region3: #{encoder_forward.13} parent=0 // loop_header
    %s10 = sphi 0, %s14
    %p11 = scmp.ge.s32.totalorder %s10, 4
    %s17 = sphi 0, %s29
    %s18 = sphi 0, %s25
    %s19 = sphi 0, %s17
    %s20 = sphi 0, %s18
    %s21 = sphi 0, %s19
    %s22 = sphi 0, %s20
    %s32 = sphi 0, %s34
    %s35 = sphi 0, %s32
    %s36 = sphi 0, %s35
    %s52 = sphi 0, %s36
    %s60 = sphi 0, %s62
    %s63 = sphi 0, %s60
    %s64 = sphi 0, %s63
    %s80 = sphi 0, %s64
    %s86 = sphi 0, %s88
    %s89 = sphi 0, %s86
    %s90 = sphi 0, %s89
    %s106 = sphi 0, %s90
    %s112 = sphi 0, %s114
    %s115 = sphi 0, %s112
    %s116 = sphi 0, %s115
    %s132 = sphi 0, %s116
    %s138 = sphi 0, %s140
    %s141 = sphi 0, %s138
    %s142 = sphi 0, %s141
    %s158 = sphi 0, %s142
  $region4: #{encoder_forward.13} parent=0 // loop_header_branch
    %13 = sbr.rel (%p11) target = $region8
  $region5: #{encoder_forward.13} parent=0 // loop_body
    %s15 = ssub.s32 %s10, 1
    %s16 = ssub.s32 %s10, 2
    %s23 = sadd.s32 1, %s18
    %p24 = scmp.ge.s32.totalorder %s23, 2
    %s25 = scalar_select %p24, 0, %s23
    %s26 = sadd.s32 1, %s17
    %s27 = scalar_select %p24, %s26, %s17
    %p28 = scmp.ge.s32.totalorder %s27, 1
    %s29 = scalar_select %p28, 0, %s27
    %s30 = ssub.s32 %s18, %s25
    %p31 = scmp.eq.s32.totalorder %s30, 0
    %s33 = sadd.s32 %s32, 1
    %s34 = scalar_select %p31, %s32, %s33
    %p37 = pneg %p31
    %p38 = scmp.eq.s32.totalorder %s10, 1
    %p39 = por %p37, %p38
    %p40 = scmp.ne.s32.totalorder %s32, %s35
    %p41 = scmp.eq.s32.totalorder %s10, 0
    %p42 = por %p40, %p41
    %p43 = scmp.ne.s32.totalorder %s32, %s35
    %p44 = scmp.eq.s32.totalorder %s15, 1
    %p45 = por %p43, %p44
    %p46 = scmp.ne.s32.totalorder %s35, %s36
    %p47 = scmp.eq.s32.totalorder %s15, 0
    %p48 = por %p46, %p47
    %p49 = scmp.ne.s32.totalorder %s35, %s36
    %p50 = scmp.eq.s32.totalorder %s16, 1
    %p51 = por %p49, %p50
    %p53 = scmp.ne.s32.totalorder %s36, %s52
    %p54 = scmp.eq.s32.totalorder %s16, 0
    %p55 = por %p53, %p54
    %s56 = ssub.s32 %s18, %s25
    %s57 = ssub.s32 %s17, %s29
    %s58 = sor.u32 %s56, %s57
    %p59 = scmp.eq.s32.totalorder %s58, 0
    %s61 = sadd.s32 %s60, 1
    %s62 = scalar_select %p59, %s60, %s61
    %p65 = pneg %p59
    %p66 = scmp.eq.s32.totalorder %s10, 1
    %p67 = por %p65, %p66
    %p68 = scmp.ne.s32.totalorder %s60, %s63
    %p69 = scmp.eq.s32.totalorder %s10, 0
    %p70 = por %p68, %p69
    %p71 = scmp.ne.s32.totalorder %s60, %s63
    %p72 = scmp.eq.s32.totalorder %s15, 1
    %p73 = por %p71, %p72
    %p74 = scmp.ne.s32.totalorder %s63, %s64
    %p75 = scmp.eq.s32.totalorder %s15, 0
    %p76 = por %p74, %p75
    %p77 = scmp.ne.s32.totalorder %s63, %s64
    %p78 = scmp.eq.s32.totalorder %s16, 1
    %p79 = por %p77, %p78
    %p81 = scmp.ne.s32.totalorder %s64, %s80
    %p82 = scmp.eq.s32.totalorder %s16, 0
    %p83 = por %p81, %p82
    %s84 = ssub.s32 %s17, %s29
    %p85 = scmp.eq.s32.totalorder %s84, 0
    %s87 = sadd.s32 %s86, 1
    %s88 = scalar_select %p85, %s86, %s87
    %p91 = pneg %p85
    %p92 = scmp.eq.s32.totalorder %s10, 1
    %p93 = por %p91, %p92
    %p94 = scmp.ne.s32.totalorder %s86, %s89
    %p95 = scmp.eq.s32.totalorder %s10, 0
    %p96 = por %p94, %p95
    %p97 = scmp.ne.s32.totalorder %s86, %s89
    %p98 = scmp.eq.s32.totalorder %s15, 1
    %p99 = por %p97, %p98
    %p100 = scmp.ne.s32.totalorder %s89, %s90
    %p101 = scmp.eq.s32.totalorder %s15, 0
    %p102 = por %p100, %p101
    %p103 = scmp.ne.s32.totalorder %s89, %s90
    %p104 = scmp.eq.s32.totalorder %s16, 1
    %p105 = por %p103, %p104
    %p107 = scmp.ne.s32.totalorder %s90, %s106
    %p108 = scmp.eq.s32.totalorder %s16, 0
    %p109 = por %p107, %p108
    %s110 = ssub.s32 %s17, %s29
    %p111 = scmp.eq.s32.totalorder %s110, 0
    %s113 = sadd.s32 %s112, 1
    %s114 = scalar_select %p111, %s112, %s113
    %p117 = pneg %p111
    %p118 = scmp.eq.s32.totalorder %s10, 1
    %p119 = por %p117, %p118
    %p120 = scmp.ne.s32.totalorder %s112, %s115
    %p121 = scmp.eq.s32.totalorder %s10, 0
    %p122 = por %p120, %p121
    %p123 = scmp.ne.s32.totalorder %s112, %s115
    %p124 = scmp.eq.s32.totalorder %s15, 1
    %p125 = por %p123, %p124
    %p126 = scmp.ne.s32.totalorder %s115, %s116
    %p127 = scmp.eq.s32.totalorder %s15, 0
    %p128 = por %p126, %p127
    %p129 = scmp.ne.s32.totalorder %s115, %s116
    %p130 = scmp.eq.s32.totalorder %s16, 1
    %p131 = por %p129, %p130
    %p133 = scmp.ne.s32.totalorder %s116, %s132
    %p134 = scmp.eq.s32.totalorder %s16, 0
    %p135 = por %p133, %p134
    %s136 = ssub.s32 %s17, %s29
    %p137 = scmp.eq.s32.totalorder %s136, 0
    %s139 = sadd.s32 %s138, 1
    %s140 = scalar_select %p137, %s138, %s139
    %p143 = pneg %p137
    %p144 = scmp.eq.s32.totalorder %s10, 1
    %p145 = por %p143, %p144
    %p146 = scmp.ne.s32.totalorder %s138, %s141
    %p147 = scmp.eq.s32.totalorder %s10, 0
    %p148 = por %p146, %p147
    %p149 = scmp.ne.s32.totalorder %s138, %s141
    %p150 = scmp.eq.s32.totalorder %s15, 1
    %p151 = por %p149, %p150
    %p152 = scmp.ne.s32.totalorder %s141, %s142
    %p153 = scmp.eq.s32.totalorder %s15, 0
    %p154 = por %p152, %p153
    %p155 = scmp.ne.s32.totalorder %s141, %s142
    %p156 = scmp.eq.s32.totalorder %s16, 1
    %p157 = por %p155, %p156
    %p159 = scmp.ne.s32.totalorder %s142, %s158
    %p160 = scmp.eq.s32.totalorder %s16, 0
    %p161 = por %p159, %p160
    %p162 = scmp.le.s32.totalorder 1, %s10
    %p163 = scmp.lt.s32.totalorder %s10, 3
    %p164 = pnand %p162, %p163
    %p165 = pneg %p164
    // Predicated region
    $region9: #{encoder_forward.13} parent=5 // pred_check
      _
    $region10: #{encoder_forward.13} parent=5 // pred_check_branch
      %167 = sbr.rel (%p164) target = $region12
    $region11: #{encoder_forward.13} parent=5 // pred_region
      %s168 = ssub.s32 %s10, 1
      // Predicated region
      $region13: #{encoder_forward.13} parent=11 // pred_check
        %p169 = pneg %p102
      $region14: #{encoder_forward.13} parent=11 // pred_check_branch
        %171 = sbr.rel (%p169) target = $region16
      $region15: #{encoder_forward.13} parent=11 // pred_region
        %p172 = scmp.lt.s32.totalorder %s19, 0
        %s173 = scalar_select %p172, %s19, 0
        %s174 = scalar_lea.vmem %s2, %s173
      $region16: #{encoder_forward.13} parent=11 // pred_fallthru
        _
      // Predicated region
      $region17: #{encoder_forward.13} parent=11 // pred_check
        %p175 = pneg %p128
      $region18: #{encoder_forward.13} parent=11 // pred_check_branch
        %177 = sbr.rel (%p175) target = $region20
      $region19: #{encoder_forward.13} parent=11 // pred_region
        %p178 = scmp.lt.s32.totalorder %s19, 0
        %s179 = scalar_select %p178, %s19, 0
        %s180 = scalar_lea.vmem %s3, %s179
      $region20: #{encoder_forward.13} parent=11 // pred_fallthru
        _
    $region12: #{encoder_forward.13} parent=5 // pred_fallthru
      _
    %p181 = scmp.lt.s32.totalorder %s10, 2
    // Predicated region
    $region21: #{encoder_forward.13} parent=5 // pred_check
      %p182 = pneg %p181
    $region22: #{encoder_forward.13} parent=5 // pred_check_branch
      %184 = sbr.rel (%p182) target = $region24
    $region23: #{encoder_forward.13} parent=5 // pred_region
      // Predicated region
      $region25: #{encoder_forward.13} parent=23 // pred_check
        %p185 = pneg %p42
      $region26: #{encoder_forward.13} parent=23 // pred_check_branch
        %187 = sbr.rel (%p185) target = $region28
      $region27: #{encoder_forward.13} parent=23 // pred_region
        %s188 = smul.u32 4, %s18
        %p189 = scmp.lt.s32.totalorder %s188, 7
        %s190 = scalar_select %p189, %s188, 7
        %s191 = scalar_lea.vmem %s0, %s190
        %s192 = smul.u32 4, %s18
      $region28: #{encoder_forward.13} parent=23 // pred_fallthru
        _
      // Predicated region
      $region29: #{encoder_forward.13} parent=23 // pred_check
        %p193 = pneg %p70
      $region30: #{encoder_forward.13} parent=23 // pred_check_branch
        %195 = sbr.rel (%p193) target = $region32
      $region31: #{encoder_forward.13} parent=23 // pred_region
        %s196 = smul.u32 64, %s18
        %p197 = scmp.lt.s32.totalorder %s196, 127
        %s198 = scalar_select %p197, %s196, 127
        %p199 = scmp.lt.s32.totalorder %s17, 0
        %s200 = scalar_select %p199, %s17, 0
        %s201 = sadd.s32 %s200, %s198
        %s202 = smul.addr %s201, 4
        %s203 = scalar_lea.vmem %s1, %s202
        %s204 = smul.u32 64, %s18
      $region32: #{encoder_forward.13} parent=23 // pred_fallthru
        _
    $region24: #{encoder_forward.13} parent=5 // pred_fallthru
      _
    %p205 = scmp.le.s32.totalorder 1, %s10
    %p206 = scmp.lt.s32.totalorder %s10, 3
    %p207 = pnand %p205, %p206
    %p208 = pneg %p207
    // Predicated region
    $region33: #{encoder_forward.13} parent=5 // pred_check
      _
    $region34: #{encoder_forward.13} parent=5 // pred_check_branch
      %210 = sbr.rel (%p207) target = $region36
    $region35: #{encoder_forward.13} parent=5 // pred_region
      %s211 = ssub.s32 %s10, 1
      %s212 = smul.u32 4, %s20
      %p213 = scmp.lt.s32.totalorder %s212, 7
      %s214 = scalar_select %p213, %s212, 7
      %s215 = scalar_lea.vmem %s0, %s214
      %p216 = pneg %p48
      %p217 = pneg %p45
      %s218 = smul.u32 64, %s20
      %p219 = scmp.lt.s32.totalorder %s218, 127
      %s220 = scalar_select %p219, %s218, 127
      %p221 = scmp.lt.s32.totalorder %s19, 0
      %s222 = scalar_select %p221, %s19, 0
      %s223 = sadd.s32 %s222, %s220
      %s224 = smul.addr %s223, 4
      %s225 = scalar_lea.vmem %s1, %s224
      %p226 = pneg %p76
      %p227 = pneg %p73
      %p228 = scmp.lt.s32.totalorder %s19, 0
      %s229 = scalar_select %p228, %s19, 0
      %s230 = scalar_lea.vmem %s2, %s229
      %p231 = pneg %p102
      %p232 = pneg %p99
      %p233 = scmp.lt.s32.totalorder %s19, 0
      %s234 = scalar_select %p233, %s19, 0
      %s235 = scalar_lea.vmem %s3, %s234
      %p236 = pneg %p128
      %p237 = pneg %p125
      %p238 = pneg %p154
      %p239 = pneg %p151
      %p240 = scmp.lt.s32.totalorder %s19, 0
      %s241 = scalar_select %p240, %s19, 0
      %s242 = scalar_lea.vmem %s4, %s241
      %s243 = smul.u32 4, %s20
      %p244 = scmp.lt.s32.totalorder %s243, 7
      %s245 = scalar_select %p244, %s243, 7
      %s246 = scalar_lea.vmem %s0, %s245
      %s247 = smul.u32 4, %s20
      %s248 = smul.u32 64, %s20
      %p249 = scmp.lt.s32.totalorder %s248, 127
      %s250 = scalar_select %p249, %s248, 127
      %p251 = scmp.lt.s32.totalorder %s19, 0
      %s252 = scalar_select %p251, %s19, 0
      %s253 = sadd.s32 %s252, %s250
      %s254 = smul.addr %s253, 4
      %s255 = scalar_lea.vmem %s1, %s254
      %s256 = smul.u32 64, %s20
      %p257 = scmp.lt.s32.totalorder %s19, 0
      %s258 = scalar_select %p257, %s19, 0
      %s259 = scalar_lea.vmem %s2, %s258
      %p260 = scmp.lt.s32.totalorder %s19, 0
      %s261 = scalar_select %p260, %s19, 0
      %s262 = scalar_lea.vmem %s3, %s261
      %p263 = scmp.lt.s32.totalorder %s19, 0
      %s264 = scalar_select %p263, %s19, 0
      %s265 = scalar_lea.vmem %s4, %s264
      %p267 = scmp.eq.s32.totalorder %s20, 0
      // Predicated region
      $region37: #{encoder_forward.13} parent=35 // pred_check
        %p268 = pneg %p267
      $region38: #{encoder_forward.13} parent=35 // pred_check_branch
        %270 = sbr.rel (%p268) target = $region40
      $region39: #{encoder_forward.13} parent=35 // pred_region
        %vm271 = vcmask 517120
        %272 = vst.msk [vmem:[#allocation2] sm:$0x3] %vm271, 0.0
      $region40: #{encoder_forward.13} parent=35 // pred_fallthru
        _
      %v273 = vld [vmem:[#allocation2] sm:$0x3]
      %v274 = vld [vmem:[%s246] sm:$0xf]
      %v275 = vld [vmem:[%s255] sm:$0xf]
      %v276 = vld [vmem:[%s255 + $0x4] sm:$0xf]
      %v277 = vld [vmem:[%s255 + $0x8] sm:$0xf]
      %v278 = vld [vmem:[%s255 + $0xc] sm:$0xf]
      %v279 = vld [vmem:[%s255 + $0x10] sm:$0xf]
      %v280 = vld [vmem:[%s255 + $0x14] sm:$0xf]
      %v281 = vld [vmem:[%s255 + $0x18] sm:$0xf]
      %v282 = vld [vmem:[%s255 + $0x1c] sm:$0xf]
      %v283 = vld [vmem:[%s255 + $0x20] sm:$0xf]
      %v284 = vld [vmem:[%s255 + $0x24] sm:$0xf]
      %v285 = vld [vmem:[%s255 + $0x28] sm:$0xf]
      %v286 = vld [vmem:[%s255 + $0x2c] sm:$0xf]
      %v287 = vld [vmem:[%s255 + $0x30] sm:$0xf]
      %v288 = vld [vmem:[%s255 + $0x34] sm:$0xf]
      %v289 = vld [vmem:[%s255 + $0x38] sm:$0xf]
      %v290 = vld [vmem:[%s255 + $0x3c] sm:$0xf]
      %v291 = vld [vmem:[%s255 + $0x40] sm:$0xf]
      %v292 = vld [vmem:[%s255 + $0x44] sm:$0xf]
      %v293 = vld [vmem:[%s255 + $0x48] sm:$0xf]
      %v294 = vld [vmem:[%s255 + $0x4c] sm:$0xf]
      %v295 = vld [vmem:[%s255 + $0x50] sm:$0xf]
      %v296 = vld [vmem:[%s255 + $0x54] sm:$0xf]
      %v297 = vld [vmem:[%s255 + $0x58] sm:$0xf]
      %v298 = vld [vmem:[%s255 + $0x5c] sm:$0xf]
      %v299 = vld [vmem:[%s255 + $0x60] sm:$0xf]
      %v300 = vld [vmem:[%s255 + $0x64] sm:$0xf]
      %v301 = vld [vmem:[%s255 + $0x68] sm:$0xf]
      %v302 = vld [vmem:[%s255 + $0x6c] sm:$0xf]
      %v303 = vld [vmem:[%s255 + $0x70] sm:$0xf]
      %v304 = vld [vmem:[%s255 + $0x74] sm:$0xf]
      %v305 = vld [vmem:[%s255 + $0x78] sm:$0xf]
      %v306 = vld [vmem:[%s255 + $0x7c] sm:$0xf]
      %v307 = vld [vmem:[%s255 + $0x80] sm:$0xf]
      %v308 = vld [vmem:[%s255 + $0x84] sm:$0xf]
      %v309 = vld [vmem:[%s255 + $0x88] sm:$0xf]
      %v310 = vld [vmem:[%s255 + $0x8c] sm:$0xf]
      %v311 = vld [vmem:[%s255 + $0x90] sm:$0xf]
      %v312 = vld [vmem:[%s255 + $0x94] sm:$0xf]
      %v313 = vld [vmem:[%s255 + $0x98] sm:$0xf]
      %v314 = vld [vmem:[%s255 + $0x9c] sm:$0xf]
      %v315 = vld [vmem:[%s255 + $0xa0] sm:$0xf]
      %v316 = vld [vmem:[%s255 + $0xa4] sm:$0xf]
      %v317 = vld [vmem:[%s255 + $0xa8] sm:$0xf]
      %v318 = vld [vmem:[%s255 + $0xac] sm:$0xf]
      %v319 = vld [vmem:[%s255 + $0xb0] sm:$0xf]
      %v320 = vld [vmem:[%s255 + $0xb4] sm:$0xf]
      %v321 = vld [vmem:[%s255 + $0xb8] sm:$0xf]
      %v322 = vld [vmem:[%s255 + $0xbc] sm:$0xf]
      %v323 = vld [vmem:[%s255 + $0xc0] sm:$0xf]
      %v324 = vld [vmem:[%s255 + $0xc4] sm:$0xf]
      %v325 = vld [vmem:[%s255 + $0xc8] sm:$0xf]
      %v326 = vld [vmem:[%s255 + $0xcc] sm:$0xf]
      %v327 = vld [vmem:[%s255 + $0xd0] sm:$0xf]
      %v328 = vld [vmem:[%s255 + $0xd4] sm:$0xf]
      %v329 = vld [vmem:[%s255 + $0xd8] sm:$0xf]
      %v330 = vld [vmem:[%s255 + $0xdc] sm:$0xf]
      %v331 = vld [vmem:[%s255 + $0xe0] sm:$0xf]
      %v332 = vld [vmem:[%s255 + $0xe4] sm:$0xf]
      %v333 = vld [vmem:[%s255 + $0xe8] sm:$0xf]
      %v334 = vld [vmem:[%s255 + $0xec] sm:$0xf]
      %v335 = vld [vmem:[%s255 + $0xf0] sm:$0xf]
      %v336 = vld [vmem:[%s255 + $0xf4] sm:$0xf]
      %v337 = vld [vmem:[%s255 + $0xf8] sm:$0xf]
      %v338 = vld [vmem:[%s255 + $0xfc] sm:$0xf]
      %v341 = vunpack.c.l.s4 1966171168
      %v342 = vunpack.c.0.s8 %v341
      %v343 = vlaneseq
      %v344 = vshrl.u32 %v343, 7
      %v345 = vsub.s32 %v342, %v344
      %v346 = vrot.slane %v274, %v345
      %v347 = vcombine.high %v346, %v346
      %v349 = vunpack.c.l.s4 1966171168
      %v350 = vunpack.c.0.s8 %v349
      %v351 = vlaneseq
      %v352 = vshrl.u32 %v351, 7
      %v353 = vsub.s32 %v350, %v352
      %v354 = vrot.slane %v346, %v353
      %v356 = vunpack.c.l.s4 1966171168
      %v357 = vunpack.c.0.s8 %v356
      %v358 = vlaneseq
      %v359 = vshrl.u32 %v358, 7
      %v360 = vsub.s32 %v357, %v359
      %v361 = vrot.slane %v347, %v360
      %v362 = vcombine.high %v354, %v354
      %v363 = vcombine.high %v361, %v361
      %v432 = vunpack.c.l.b16 %v275
      %v433 = vunpack.c.l.b16 %v276
      %v434 = vunpack.c.l.b16 %v277
      %v435 = vunpack.c.l.b16 %v278
      %v436 = vunpack.c.l.b16 %v279
      %v437 = vunpack.c.l.b16 %v280
      %v438 = vunpack.c.l.b16 %v281
      %v439 = vunpack.c.l.b16 %v282
      %v440 = vunpack.c.l.b16 %v283
      %v441 = vunpack.c.l.b16 %v284
      %v442 = vunpack.c.l.b16 %v285
      %v443 = vunpack.c.l.b16 %v286
      %v444 = vunpack.c.l.b16 %v287
      %v445 = vunpack.c.l.b16 %v288
      %v446 = vunpack.c.l.b16 %v289
      %v447 = vunpack.c.l.b16 %v290
      %v448 = vunpack.c.l.b16 %v291
      %v449 = vunpack.c.l.b16 %v292
      %v450 = vunpack.c.l.b16 %v293
      %v451 = vunpack.c.l.b16 %v294
      %v452 = vunpack.c.l.b16 %v295
      %v453 = vunpack.c.l.b16 %v296
      %v454 = vunpack.c.l.b16 %v297
      %v455 = vunpack.c.l.b16 %v298
      %v456 = vunpack.c.l.b16 %v299
      %v457 = vunpack.c.l.b16 %v300
      %v458 = vunpack.c.l.b16 %v301
      %v459 = vunpack.c.l.b16 %v302
      %v460 = vunpack.c.l.b16 %v303
      %v461 = vunpack.c.l.b16 %v304
      %v462 = vunpack.c.l.b16 %v305
      %v463 = vunpack.c.l.b16 %v306
      %v464 = vunpack.c.l.b16 %v307
      %v465 = vunpack.c.l.b16 %v308
      %v466 = vunpack.c.l.b16 %v309
      %v467 = vunpack.c.l.b16 %v310
      %v468 = vunpack.c.l.b16 %v311
      %v469 = vunpack.c.l.b16 %v312
      %v470 = vunpack.c.l.b16 %v313
      %v471 = vunpack.c.l.b16 %v314
      %v472 = vunpack.c.l.b16 %v315
      %v473 = vunpack.c.l.b16 %v316
      %v474 = vunpack.c.l.b16 %v317
      %v475 = vunpack.c.l.b16 %v318
      %v476 = vunpack.c.l.b16 %v319
      %v477 = vunpack.c.l.b16 %v320
      %v478 = vunpack.c.l.b16 %v321
      %v479 = vunpack.c.l.b16 %v322
      %v480 = vunpack.c.l.b16 %v323
      %v481 = vunpack.c.l.b16 %v324
      %v482 = vunpack.c.l.b16 %v325
      %v483 = vunpack.c.l.b16 %v326
      %v484 = vunpack.c.l.b16 %v327
      %v485 = vunpack.c.l.b16 %v328
      %v486 = vunpack.c.l.b16 %v329
      %v487 = vunpack.c.l.b16 %v330
      %v488 = vunpack.c.l.b16 %v331
      %v489 = vunpack.c.l.b16 %v332
      %v490 = vunpack.c.l.b16 %v333
      %v491 = vunpack.c.l.b16 %v334
      %v492 = vunpack.c.l.b16 %v335
      %v493 = vunpack.c.l.b16 %v336
      %v494 = vunpack.c.l.b16 %v337
      %v495 = vunpack.c.l.b16 %v338
      %v496 = vpack.c.b16 %v433, %v432
      %v497 = vpack.c.b16 %v435, %v434
      %v498 = vpack.c.b16 %v437, %v436
      %v499 = vpack.c.b16 %v439, %v438
      %v500 = vpack.c.b16 %v441, %v440
      %v501 = vpack.c.b16 %v443, %v442
      %v502 = vpack.c.b16 %v445, %v444
      %v503 = vpack.c.b16 %v447, %v446
      %v504 = vpack.c.b16 %v449, %v448
      %v505 = vpack.c.b16 %v451, %v450
      %v506 = vpack.c.b16 %v453, %v452
      %v507 = vpack.c.b16 %v455, %v454
      %v508 = vpack.c.b16 %v457, %v456
      %v509 = vpack.c.b16 %v459, %v458
      %v510 = vpack.c.b16 %v461, %v460
      %v511 = vpack.c.b16 %v463, %v462
      %v512 = vpack.c.b16 %v465, %v464
      %v513 = vpack.c.b16 %v467, %v466
      %v514 = vpack.c.b16 %v469, %v468
      %v515 = vpack.c.b16 %v471, %v470
      %v516 = vpack.c.b16 %v473, %v472
      %v517 = vpack.c.b16 %v475, %v474
      %v518 = vpack.c.b16 %v477, %v476
      %v519 = vpack.c.b16 %v479, %v478
      %v520 = vpack.c.b16 %v481, %v480
      %v521 = vpack.c.b16 %v483, %v482
      %v522 = vpack.c.b16 %v485, %v484
      %v523 = vpack.c.b16 %v487, %v486
      %v524 = vpack.c.b16 %v489, %v488
      %v525 = vpack.c.b16 %v491, %v490
      %v526 = vpack.c.b16 %v493, %v492
      %v527 = vpack.c.b16 %v495, %v494
      %560 = vmatprep.subr.bf16.mxu0 0
      %561 = vmatpush1.bf16.msra.mxu0 %v503
      %562 = vmatprep.subr.bf16.mxu0 0
      %563 = vmatpush1.bf16.msra.mxu0 %v502
      %564 = vmatprep.subr.bf16.mxu0 0
      %565 = vmatpush1.bf16.msra.mxu0 %v501
      %566 = vmatprep.subr.bf16.mxu0 0
      %567 = vmatpush1.bf16.msra.mxu0 %v500
      %568 = vmatprep.subr.bf16.mxu0 0
      %569 = vmatpush1.bf16.msra.mxu0 %v499
      %570 = vmatprep.subr.bf16.mxu0 0
      %571 = vmatpush1.bf16.msra.mxu0 %v498
      %572 = vmatprep.subr.bf16.mxu0 0
      %573 = vmatpush1.bf16.msra.mxu0 %v497
      %574 = vmatprep.subr.bf16.mxu0 0
      %575 = vmatpush1.bf16.msra.mxu0 %v496
      %576 = vmatprep.subr.bf16.mxu0 0
      %577 = vmatpush2.bf16.msra.mxu0 %v511
      %578 = vmatprep.subr.bf16.mxu0 0
      %579 = vmatpush2.bf16.msra.mxu0 %v510
      %580 = vmatprep.subr.bf16.mxu0 0
      %581 = vmatpush2.bf16.msra.mxu0 %v509
      %582 = vmatprep.subr.bf16.mxu0 0
      %583 = vmatpush2.bf16.msra.mxu0 %v508
      %584 = vmatprep.subr.bf16.mxu0 0
      %585 = vmatpush2.bf16.msra.mxu0 %v507
      %586 = vmatprep.subr.bf16.mxu0 0
      %587 = vmatpush2.bf16.msra.mxu0 %v506
      %588 = vmatprep.subr.bf16.mxu0 0
      %589 = vmatpush2.bf16.msra.mxu0 %v505
      %590 = vmatprep.subr.bf16.mxu0 0
      %591 = vmatpush2.bf16.msra.mxu0 %v504
      %592 = vmatprep.mubr.bf16.mxu0 %v361
      %593 = vmatmul.mubr.bf16.gmra.mxu0 %v354
      %v594 = vpop.f32.mrf.mxu0
      %v595 = vadd.f32 0.0, %v594
      %v596 = vpop.f32.mrf.mxu0
      %v597 = vpop.f32.mrf.mxu0
      %v598 = vpop.f32.mrf.mxu0
      %599 = vdwg.mxu0
      %600 = vmatprep.subr.bf16.mxu0 0
      %601 = vmatpush1.bf16.msra.mxu0 %v519
      %602 = vmatprep.subr.bf16.mxu0 0
      %603 = vmatpush1.bf16.msra.mxu0 %v518
      %604 = vmatprep.subr.bf16.mxu0 0
      %605 = vmatpush1.bf16.msra.mxu0 %v517
      %606 = vmatprep.subr.bf16.mxu0 0
      %607 = vmatpush1.bf16.msra.mxu0 %v516
      %608 = vmatprep.subr.bf16.mxu0 0
      %609 = vmatpush1.bf16.msra.mxu0 %v515
      %610 = vmatprep.subr.bf16.mxu0 0
      %611 = vmatpush1.bf16.msra.mxu0 %v514
      %612 = vmatprep.subr.bf16.mxu0 0
      %613 = vmatpush1.bf16.msra.mxu0 %v513
      %614 = vmatprep.subr.bf16.mxu0 0
      %615 = vmatpush1.bf16.msra.mxu0 %v512
      %616 = vmatprep.subr.bf16.mxu0 0
      %617 = vmatpush2.bf16.msra.mxu0 %v527
      %618 = vmatprep.subr.bf16.mxu0 0
      %619 = vmatpush2.bf16.msra.mxu0 %v526
      %620 = vmatprep.subr.bf16.mxu0 0
      %621 = vmatpush2.bf16.msra.mxu0 %v525
      %622 = vmatprep.subr.bf16.mxu0 0
      %623 = vmatpush2.bf16.msra.mxu0 %v524
      %624 = vmatprep.subr.bf16.mxu0 0
      %625 = vmatpush2.bf16.msra.mxu0 %v523
      %626 = vmatprep.subr.bf16.mxu0 0
      %627 = vmatpush2.bf16.msra.mxu0 %v522
      %628 = vmatprep.subr.bf16.mxu0 0
      %629 = vmatpush2.bf16.msra.mxu0 %v521
      %630 = vmatprep.subr.bf16.mxu0 0
      %631 = vmatpush2.bf16.msra.mxu0 %v520
      %632 = vmatprep.mubr.bf16.mxu0 %v363
      %633 = vmatmul.mubr.bf16.gmra.mxu0 %v362
      %v634 = vpop.f32.mrf.mxu0
      %v635 = vadd.f32 %v595, %v634
      %v636 = vpop.f32.mrf.mxu0
      %v637 = vpop.f32.mrf.mxu0
      %v638 = vpop.f32.mrf.mxu0
      %639 = vdwg.mxu0
      %v640 = vadd.f32 %v273, %v635
      %vm641 = vcmask 517120
      %642 = vst.msk [vmem:[#allocation2] sm:$0x3] %vm641, %v640
      %p643 = scmp.eq.s32.totalorder %s20, 1
      // Predicated region
      $region41: #{encoder_forward.13} parent=35 // pred_check
        %p644 = pneg %p643
      $region42: #{encoder_forward.13} parent=35 // pred_check_branch
        %646 = sbr.rel (%p644) target = $region44
      $region43: #{encoder_forward.13} parent=35 // pred_region
        %v647 = vld [vmem:[#allocation2] sm:$0x3]
        %v648 = vsel %vm641, %v647, 0.0
        %v649 = vrot.slane %v648, 4
        %v650 = vadd.f32 %v648, %v649
        %v651 = vrot.slane %v650, 2
        %v652 = vadd.f32 %v650, %v651
        %v653 = vrot.slane %v652, 1
        %v654 = vadd.f32 %v652, %v653
        %v655 = vrcp.pop 2.0
        %v656 = vmul.f32 %v654, %v655
        %v657 = vmul.f32 %v647, %v647
        %v658 = vsel %vm641, %v657, 0.0
        %v659 = vrot.slane %v658, 4
        %v660 = vadd.f32 %v658, %v659
        %v661 = vrot.slane %v660, 2
        %v662 = vadd.f32 %v660, %v661
        %v663 = vrot.slane %v662, 1
        %v664 = vadd.f32 %v662, %v663
        %v665 = vmul.f32 %v664, %v655
        %v666 = vmul.f32 %v656, %v656
        %v667 = vsub.f32 %v665, %v666
        %v668 = vmax.f32 %v667, 0.0
        %v669 = vsub.f32 %v647, %v656
        %v670 = vadd.f32 %v668, 1e-05
        %v671 = vrsqrt.pop %v670
        %v672 = vmul.f32 %v669, %v671
        %v673 = vld [vmem:[%s259] sm:$0x1]
        %v675 = vlaneseq
        %v676 = vshrl.u32 %v675, 7
        %v677 = vsub.s32 0, %v676
        %v678 = vrot.slane %v673, %v677
        %v680 = vmul.f32 %v672, %v678
        %v681 = vld [vmem:[%s262] sm:$0x1]
        %v683 = vlaneseq
        %v684 = vshrl.u32 %v683, 7
        %v685 = vsub.s32 0, %v684
        %v686 = vrot.slane %v681, %v685
        %v688 = vadd.f32 %v680, %v686
        %vm689 = vcmp.gt.f32.partialorder %v688, 0.0
        %v690 = vmul.f32 %v688, 0.2
        %v691 = vsel %vm689, %v688, %v690
        %v692 = vpack.c.bf16 %v691, %v691
        %vm693 = vcmask 516096
        %694 = vst.msk [vmem:[%s265] sm:$0x1] %vm693, %v692
      $region44: #{encoder_forward.13} parent=35 // pred_fallthru
        _
      %p695 = scmp.lt.s32.totalorder %s19, 0
      %s696 = scalar_select %p695, %s19, 0
      %s697 = scalar_lea.vmem %s4, %s696
      // Predicated region
      $region45: #{encoder_forward.13} parent=35 // pred_check
        %p698 = pneg %p151
      $region46: #{encoder_forward.13} parent=35 // pred_check_branch
        %700 = sbr.rel (%p698) target = $region48
      $region47: #{encoder_forward.13} parent=35 // pred_region
        _
      $region48: #{encoder_forward.13} parent=35 // pred_fallthru
        _
      // Predicated region
      $region49: #{encoder_forward.13} parent=35 // pred_check
        %p701 = pneg %p151
      $region50: #{encoder_forward.13} parent=35 // pred_check_branch
        %703 = sbr.rel (%p701) target = $region52
      $region51: #{encoder_forward.13} parent=35 // pred_region
        %p704 = scmp.lt.s32.totalorder %s19, 0
        %s705 = scalar_select %p704, %s19, 0
        %s706 = scalar_lea.vmem %s4, %s705
      $region52: #{encoder_forward.13} parent=35 // pred_fallthru
        _
    $region36: #{encoder_forward.13} parent=5 // pred_fallthru
      _
    %p707 = scmp.le.s32.totalorder 2, %s10
    // Predicated region
    $region53: #{encoder_forward.13} parent=5 // pred_check
      %p708 = pneg %p707
    $region54: #{encoder_forward.13} parent=5 // pred_check_branch
      %710 = sbr.rel (%p708) target = $region56
    $region55: #{encoder_forward.13} parent=5 // pred_region
      %s711 = ssub.s32 %s10, 2
    $region56: #{encoder_forward.13} parent=5 // pred_fallthru
      _
  $region6: #{encoder_forward.13} parent=0 // loop_footer
    %s14 = sadd.s32 1, %s10
  $region7: #{encoder_forward.13} parent=0 // loop_footer_branch
    %9 = sbr.rel target = $region3
  $region8: #{encoder_forward.13} parent=0 // loop_exit
    _

// kernel: encoder_forward.14
$region0: #{encoder_forward.14}
  #allocation0 [shape = 'u32[]', space=smem, size = 0x4, offset = 0x4, fixed_abs, tag = 'smem constant byte address 0x4 - core index']
  #allocation1 [shape = 'u32[144,128]{1,0:T(1,128)}', space=vmem, size = 0x12000, scoped, tag = 'internal scratch']
  #allocation2 [shape = 'f32[2,32]{1,0:T(2,128)}', space=vmem, size = 0x400, scoped, tag = 'scratch operand']
  %s0 = inlined_call_operand.vmem [shape: bf16[2,64], index: 0, kind: input, shape index: {}]
  %s1 = inlined_call_operand.vmem [shape: bf16[64,32], index: 1, kind: input, shape index: {}]
  %s2 = inlined_call_operand.vmem [shape: f32[1,32], index: 2, kind: input, shape index: {}]
  %s3 = inlined_call_operand.vmem [shape: f32[1,32], index: 3, kind: input, shape index: {}]
  %s4 = inlined_call_operand.vmem [shape: bf16[2,32], index: 4, kind: output, shape index: {}]
  %s5 = sld [smem:[#allocation0]]
  $region34: #{encoder_forward.14} parent=0
    _
  %s7 = ssub.s32 1, %s5
  %s8 = scalar_select 0, %s7, %s5
  // Predicated region
  $region2: #{encoder_forward.14} parent=0 // pred_check
    _
  $region3: #{encoder_forward.14} parent=0 // pred_check_branch
    %10 = sbr.rel (0) target = $region5
  $region4: #{encoder_forward.14} parent=0 // pred_region
    _
  $region5: #{encoder_forward.14} parent=0 // pred_fallthru
    _
  // Predicated region
  $region6: #{encoder_forward.14} parent=0 // pred_check
    _
  $region7: #{encoder_forward.14} parent=0 // pred_check_branch
    %12 = sbr.rel (0) target = $region9
  $region8: #{encoder_forward.14} parent=0 // pred_region
    _
  $region9: #{encoder_forward.14} parent=0 // pred_fallthru
    _
  // Predicated region
  $region10: #{encoder_forward.14} parent=0 // pred_check
    _
  $region11: #{encoder_forward.14} parent=0 // pred_check_branch
    %14 = sbr.rel (0) target = $region13
  $region12: #{encoder_forward.14} parent=0 // pred_region
    _
  $region13: #{encoder_forward.14} parent=0 // pred_fallthru
    _
  // Predicated region
  $region14: #{encoder_forward.14} parent=0 // pred_check
    _
  $region15: #{encoder_forward.14} parent=0 // pred_check_branch
    %16 = sbr.rel (0) target = $region17
  $region16: #{encoder_forward.14} parent=0 // pred_region
    _
  $region17: #{encoder_forward.14} parent=0 // pred_fallthru
    _
  %p18 = scmp.eq.s32.totalorder 0, 0
  // Predicated region
  $region18: #{encoder_forward.14} parent=0 // pred_check
    %p19 = pneg %p18
  $region19: #{encoder_forward.14} parent=0 // pred_check_branch
    %21 = sbr.rel (%p19) target = $region21
  $region20: #{encoder_forward.14} parent=0 // pred_region
    %vm22 = vcmask 254976
    %23 = vst.msk [vmem:[#allocation2] sm:$0x3] %vm22, 0.0
  $region21: #{encoder_forward.14} parent=0 // pred_fallthru
    _
  %v24 = vld [vmem:[#allocation2] sm:$0x3]
  %v25 = vld [vmem:[%s0] sm:$0x1]
  %v26 = vld [vmem:[%s1] sm:$0xf]
  %v27 = vld [vmem:[%s1 + $0x4] sm:$0xf]
  %v28 = vld [vmem:[%s1 + $0x8] sm:$0xf]
  %v29 = vld [vmem:[%s1 + $0xc] sm:$0xf]
  %v30 = vld [vmem:[%s1 + $0x10] sm:$0xf]
  %v31 = vld [vmem:[%s1 + $0x14] sm:$0xf]
  %v32 = vld [vmem:[%s1 + $0x18] sm:$0xf]
  %v33 = vld [vmem:[%s1 + $0x1c] sm:$0xf]
  %v42 = vunpack.c.l.b16 %v26
  %v43 = vunpack.c.l.b16 %v27
  %v44 = vunpack.c.l.b16 %v28
  %v45 = vunpack.c.l.b16 %v29
  %v46 = vunpack.c.l.b16 %v30
  %v47 = vunpack.c.l.b16 %v31
  %v48 = vunpack.c.l.b16 %v32
  %v49 = vunpack.c.l.b16 %v33
  %v50 = vpack.c.b16 %v43, %v42
  %v51 = vpack.c.b16 %v45, %v44
  %v52 = vpack.c.b16 %v47, %v46
  %v53 = vpack.c.b16 %v49, %v48
  %vm58 = vcmask 523264
  %v60 = vsel %vm58, %v25, 0
  %62 = vmatprep.subr.bf16.mxu0 0
  %63 = vmatpush1.bf16.msra.mxu0 0
  %64 = vmatprep.subr.bf16.mxu0 0
  %65 = vmatpush1.bf16.msra.mxu0 0
  %66 = vmatprep.subr.bf16.mxu0 0
  %67 = vmatpush1.bf16.msra.mxu0 0
  %68 = vmatprep.subr.bf16.mxu0 0
  %69 = vmatpush1.bf16.msra.mxu0 0
  %70 = vmatprep.subr.bf16.mxu0 0
  %71 = vmatpush1.bf16.msra.mxu0 %v53
  %72 = vmatprep.subr.bf16.mxu0 0
  %73 = vmatpush1.bf16.msra.mxu0 %v52
  %74 = vmatprep.subr.bf16.mxu0 0
  %75 = vmatpush1.bf16.msra.mxu0 %v51
  %76 = vmatprep.subr.bf16.mxu0 0
  %77 = vmatpush1.bf16.msra.mxu0 %v50
  %78 = vmatprep.subr.bf16.mxu0 0
  %79 = vmatpush2.bf16.msra.mxu0 0
  %80 = vmatprep.subr.bf16.mxu0 0
  %81 = vmatpush2.bf16.msra.mxu0 0
  %82 = vmatprep.subr.bf16.mxu0 0
  %83 = vmatpush2.bf16.msra.mxu0 0
  %84 = vmatprep.subr.bf16.mxu0 0
  %85 = vmatpush2.bf16.msra.mxu0 0
  %86 = vmatprep.subr.bf16.mxu0 0
  %87 = vmatpush2.bf16.msra.mxu0 0
  %88 = vmatprep.subr.bf16.mxu0 0
  %89 = vmatpush2.bf16.msra.mxu0 0
  %90 = vmatprep.subr.bf16.mxu0 0
  %91 = vmatpush2.bf16.msra.mxu0 0
  %92 = vmatprep.subr.bf16.mxu0 0
  %93 = vmatpush2.bf16.msra.mxu0 0
  %94 = vmatprep.mubr.bf16.mxu0 0
  %95 = vmatmul.mubr.bf16.gmra.mxu0 %v60
  %v96 = vpop.f32.mrf.mxu0
  %v97 = vadd.f32 0.0, %v96
  %v98 = vpop.f32.mrf.mxu0
  %v99 = vpop.f32.mrf.mxu0
  %v100 = vpop.f32.mrf.mxu0
  %101 = vdwg.mxu0
  %v102 = vadd.f32 %v24, %v97
  %vm103 = vcmask 254976
  %104 = vst.msk [vmem:[#allocation2] sm:$0x3] %vm103, %v102
  // Predicated region
  $region22: #{encoder_forward.14} parent=0 // pred_check
    %p105 = pneg %p18
  $region23: #{encoder_forward.14} parent=0 // pred_check_branch
    %107 = sbr.rel (%p105) target = $region25
  $region24: #{encoder_forward.14} parent=0 // pred_region
    %v108 = vld [vmem:[#allocation2] sm:$0x3]
    %v109 = vsel %vm103, %v108, 0.0
    %v110 = vrot.slane %v109, 4
    %v111 = vadd.f32 %v109, %v110
    %v112 = vrot.slane %v111, 2
    %v113 = vadd.f32 %v111, %v112
    %v114 = vrot.slane %v113, 1
    %v115 = vadd.f32 %v113, %v114
    %v116 = vrcp.pop 2.0
    %v117 = vmul.f32 %v115, %v116
    %v118 = vmul.f32 %v108, %v108
    %v119 = vsel %vm103, %v118, 0.0
    %v120 = vrot.slane %v119, 4
    %v121 = vadd.f32 %v119, %v120
    %v122 = vrot.slane %v121, 2
    %v123 = vadd.f32 %v121, %v122
    %v124 = vrot.slane %v123, 1
    %v125 = vadd.f32 %v123, %v124
    %v126 = vmul.f32 %v125, %v116
    %v127 = vmul.f32 %v117, %v117
    %v128 = vsub.f32 %v126, %v127
    %v129 = vmax.f32 %v128, 0.0
    %v130 = vsub.f32 %v108, %v117
    %v131 = vadd.f32 %v129, 1e-05
    %v132 = vrsqrt.pop %v131
    %v133 = vmul.f32 %v130, %v132
    %v134 = vld [vmem:[%s2] sm:$0x1]
    %v136 = vlaneseq
    %v137 = vshrl.u32 %v136, 7
    %v138 = vsub.s32 0, %v137
    %v139 = vrot.slane %v134, %v138
    %v141 = vmul.f32 %v133, %v139
    %v142 = vld [vmem:[%s3] sm:$0x1]
    %v144 = vlaneseq
    %v145 = vshrl.u32 %v144, 7
    %v146 = vsub.s32 0, %v145
    %v147 = vrot.slane %v142, %v146
    %v149 = vadd.f32 %v141, %v147
    %vm150 = vcmp.gt.f32.partialorder %v149, 0.0
    %v151 = vmul.f32 %v149, 0.2
    %v152 = vsel %vm150, %v149, %v151
    %v153 = vpack.c.bf16 %v152, %v152
    %vm154 = vcmask 253952
    %155 = vst.msk [vmem:[%s4] sm:$0x1] %vm154, %v153
  $region25: #{encoder_forward.14} parent=0 // pred_fallthru
    _
  // Predicated region
  $region26: #{encoder_forward.14} parent=0 // pred_check
    _
  $region27: #{encoder_forward.14} parent=0 // pred_check_branch
    %157 = sbr.rel (0) target = $region29
  $region28: #{encoder_forward.14} parent=0 // pred_region
    _
  $region29: #{encoder_forward.14} parent=0 // pred_fallthru
    _
  // Predicated region
  $region30: #{encoder_forward.14} parent=0 // pred_check
    _
  $region31: #{encoder_forward.14} parent=0 // pred_check_branch
    %159 = sbr.rel (0) target = $region33
  $region32: #{encoder_forward.14} parent=0 // pred_region
    _
  $region33: #{encoder_forward.14} parent=0 // pred_fallthru
    _

// kernel: encoder_forward.15
$region0: #{encoder_forward.15}
  #allocation0 [shape = 'u32[]', space=smem, size = 0x4, offset = 0x4, fixed_abs, tag = 'smem constant byte address 0x4 - core index']
  #allocation1 [shape = 'u32[144,128]{1,0:T(1,128)}', space=vmem, size = 0x12000, scoped, tag = 'internal scratch']
  #allocation2 [shape = 'f32[2,32]{1,0:T(2,128)}', space=vmem, size = 0x400, scoped, tag = 'scratch operand']
  %s0 = inlined_call_operand.vmem [shape: bf16[2,32], index: 0, kind: input, shape index: {}]
  %s1 = inlined_call_operand.vmem [shape: bf16[32,32], index: 1, kind: input, shape index: {}]
  %s2 = inlined_call_operand.vmem [shape: f32[1,32], index: 2, kind: input, shape index: {}]
  %s3 = inlined_call_operand.vmem [shape: f32[1,32], index: 3, kind: input, shape index: {}]
  %s4 = inlined_call_operand.vmem [shape: bf16[2,32], index: 4, kind: output, shape index: {}]
  %s5 = sld [smem:[#allocation0]]
  $region34: #{encoder_forward.15} parent=0
    _
  %s7 = ssub.s32 1, %s5
  %s8 = scalar_select 0, %s7, %s5
  // Predicated region
  $region2: #{encoder_forward.15} parent=0 // pred_check
    _
  $region3: #{encoder_forward.15} parent=0 // pred_check_branch
    %10 = sbr.rel (0) target = $region5
  $region4: #{encoder_forward.15} parent=0 // pred_region
    _
  $region5: #{encoder_forward.15} parent=0 // pred_fallthru
    _
  // Predicated region
  $region6: #{encoder_forward.15} parent=0 // pred_check
    _
  $region7: #{encoder_forward.15} parent=0 // pred_check_branch
    %12 = sbr.rel (0) target = $region9
  $region8: #{encoder_forward.15} parent=0 // pred_region
    _
  $region9: #{encoder_forward.15} parent=0 // pred_fallthru
    _
  // Predicated region
  $region10: #{encoder_forward.15} parent=0 // pred_check
    _
  $region11: #{encoder_forward.15} parent=0 // pred_check_branch
    %14 = sbr.rel (0) target = $region13
  $region12: #{encoder_forward.15} parent=0 // pred_region
    _
  $region13: #{encoder_forward.15} parent=0 // pred_fallthru
    _
  // Predicated region
  $region14: #{encoder_forward.15} parent=0 // pred_check
    _
  $region15: #{encoder_forward.15} parent=0 // pred_check_branch
    %16 = sbr.rel (0) target = $region17
  $region16: #{encoder_forward.15} parent=0 // pred_region
    _
  $region17: #{encoder_forward.15} parent=0 // pred_fallthru
    _
  %p18 = scmp.eq.s32.totalorder 0, 0
  // Predicated region
  $region18: #{encoder_forward.15} parent=0 // pred_check
    %p19 = pneg %p18
  $region19: #{encoder_forward.15} parent=0 // pred_check_branch
    %21 = sbr.rel (%p19) target = $region21
  $region20: #{encoder_forward.15} parent=0 // pred_region
    %vm22 = vcmask 254976
    %23 = vst.msk [vmem:[#allocation2] sm:$0x3] %vm22, 0.0
  $region21: #{encoder_forward.15} parent=0 // pred_fallthru
    _
  %v24 = vld [vmem:[#allocation2] sm:$0x3]
  %v25 = vld [vmem:[%s0] sm:$0x1]
  %v26 = vld [vmem:[%s1] sm:$0xf]
  %v27 = vld [vmem:[%s1 + $0x4] sm:$0xf]
  %v28 = vld [vmem:[%s1 + $0x8] sm:$0xf]
  %v29 = vld [vmem:[%s1 + $0xc] sm:$0xf]
  %v34 = vunpack.c.l.b16 %v26
  %v35 = vunpack.c.l.b16 %v27
  %v36 = vunpack.c.l.b16 %v28
  %v37 = vunpack.c.l.b16 %v29
  %v38 = vpack.c.b16 %v35, %v34
  %v39 = vpack.c.b16 %v37, %v36
  %vm42 = vcmask 261120
  %v44 = vsel %vm42, %v25, 0
  %46 = vmatprep.subr.bf16.mxu0 0
  %47 = vmatpush1.bf16.msra.mxu0 0
  %48 = vmatprep.subr.bf16.mxu0 0
  %49 = vmatpush1.bf16.msra.mxu0 0
  %50 = vmatprep.subr.bf16.mxu0 0
  %51 = vmatpush1.bf16.msra.mxu0 0
  %52 = vmatprep.subr.bf16.mxu0 0
  %53 = vmatpush1.bf16.msra.mxu0 0
  %54 = vmatprep.subr.bf16.mxu0 0
  %55 = vmatpush1.bf16.msra.mxu0 0
  %56 = vmatprep.subr.bf16.mxu0 0
  %57 = vmatpush1.bf16.msra.mxu0 0
  %58 = vmatprep.subr.bf16.mxu0 0
  %59 = vmatpush1.bf16.msra.mxu0 %v39
  %60 = vmatprep.subr.bf16.mxu0 0
  %61 = vmatpush1.bf16.msra.mxu0 %v38
  %62 = vmatprep.subr.bf16.mxu0 0
  %63 = vmatpush2.bf16.msra.mxu0 0
  %64 = vmatprep.subr.bf16.mxu0 0
  %65 = vmatpush2.bf16.msra.mxu0 0
  %66 = vmatprep.subr.bf16.mxu0 0
  %67 = vmatpush2.bf16.msra.mxu0 0
  %68 = vmatprep.subr.bf16.mxu0 0
  %69 = vmatpush2.bf16.msra.mxu0 0
  %70 = vmatprep.subr.bf16.mxu0 0
  %71 = vmatpush2.bf16.msra.mxu0 0
  %72 = vmatprep.subr.bf16.mxu0 0
  %73 = vmatpush2.bf16.msra.mxu0 0
  %74 = vmatprep.subr.bf16.mxu0 0
  %75 = vmatpush2.bf16.msra.mxu0 0
  %76 = vmatprep.subr.bf16.mxu0 0
  %77 = vmatpush2.bf16.msra.mxu0 0
  %78 = vmatprep.mubr.bf16.mxu0 0
  %79 = vmatmul.mubr.bf16.gmra.mxu0 %v44
  %v80 = vpop.f32.mrf.mxu0
  %v81 = vadd.f32 0.0, %v80
  %v82 = vpop.f32.mrf.mxu0
  %v83 = vpop.f32.mrf.mxu0
  %v84 = vpop.f32.mrf.mxu0
  %85 = vdwg.mxu0
  %v86 = vadd.f32 %v24, %v81
  %vm87 = vcmask 254976
  %88 = vst.msk [vmem:[#allocation2] sm:$0x3] %vm87, %v86
  // Predicated region
  $region22: #{encoder_forward.15} parent=0 // pred_check
    %p89 = pneg %p18
  $region23: #{encoder_forward.15} parent=0 // pred_check_branch
    %91 = sbr.rel (%p89) target = $region25
  $region24: #{encoder_forward.15} parent=0 // pred_region
    %v92 = vld [vmem:[#allocation2] sm:$0x3]
    %v93 = vsel %vm87, %v92, 0.0
    %v94 = vrot.slane %v93, 4
    %v95 = vadd.f32 %v93, %v94
    %v96 = vrot.slane %v95, 2
    %v97 = vadd.f32 %v95, %v96
    %v98 = vrot.slane %v97, 1
    %v99 = vadd.f32 %v97, %v98
    %v100 = vrcp.pop 2.0
    %v101 = vmul.f32 %v99, %v100
    %v102 = vmul.f32 %v92, %v92
    %v103 = vsel %vm87, %v102, 0.0
    %v104 = vrot.slane %v103, 4
    %v105 = vadd.f32 %v103, %v104
    %v106 = vrot.slane %v105, 2
    %v107 = vadd.f32 %v105, %v106
    %v108 = vrot.slane %v107, 1
    %v109 = vadd.f32 %v107, %v108
    %v110 = vmul.f32 %v109, %v100
    %v111 = vmul.f32 %v101, %v101
    %v112 = vsub.f32 %v110, %v111
    %v113 = vmax.f32 %v112, 0.0
    %v114 = vsub.f32 %v92, %v101
    %v115 = vadd.f32 %v113, 1e-05
    %v116 = vrsqrt.pop %v115
    %v117 = vmul.f32 %v114, %v116
    %v118 = vld [vmem:[%s2] sm:$0x1]
    %v120 = vlaneseq
    %v121 = vshrl.u32 %v120, 7
    %v122 = vsub.s32 0, %v121
    %v123 = vrot.slane %v118, %v122
    %v125 = vmul.f32 %v117, %v123
    %v126 = vld [vmem:[%s3] sm:$0x1]
    %v128 = vlaneseq
    %v129 = vshrl.u32 %v128, 7
    %v130 = vsub.s32 0, %v129
    %v131 = vrot.slane %v126, %v130
    %v133 = vadd.f32 %v125, %v131
    %vm134 = vcmp.gt.f32.partialorder %v133, 0.0
    %v135 = vmul.f32 %v133, 0.2
    %v136 = vsel %vm134, %v133, %v135
    %v137 = vpack.c.bf16 %v136, %v136
    %vm138 = vcmask 253952
    %139 = vst.msk [vmem:[%s4] sm:$0x1] %vm138, %v137
  $region25: #{encoder_forward.15} parent=0 // pred_fallthru
    _
  // Predicated region
  $region26: #{encoder_forward.15} parent=0 // pred_check
    _
  $region27: #{encoder_forward.15} parent=0 // pred_check_branch
    %141 = sbr.rel (0) target = $region29
  $region28: #{encoder_forward.15} parent=0 // pred_region
    _
  $region29: #{encoder_forward.15} parent=0 // pred_fallthru
    _
  // Predicated region
  $region30: #{encoder_forward.15} parent=0 // pred_check
    _
  $region31: #{encoder_forward.15} parent=0 // pred_check_branch
    %143 = sbr.rel (0) target = $region33
  $region32: #{encoder_forward.15} parent=0 // pred_region
    _
  $region33: #{encoder_forward.15} parent=0 // pred_fallthru
    _

// kernel: encoder_forward.17
$region0: #{encoder_forward.17}
  #allocation0 [shape = 'u32[]', space=smem, size = 0x4, offset = 0x4, fixed_abs, tag = 'smem constant byte address 0x4 - core index']
  #allocation1 [shape = 'u32[144,128]{1,0:T(1,128)}', space=vmem, size = 0x12000, scoped, tag = 'internal scratch']
  #allocation2 [shape = 'f32[2,32]{1,0:T(2,128)}', space=vmem, size = 0x400, scoped, tag = 'scratch operand']
  %s0 = inlined_call_operand.vmem [shape: bf16[2,32], index: 0, kind: input, shape index: {}]
  %s1 = inlined_call_operand.vmem [shape: bf16[32,32], index: 1, kind: input, shape index: {}]
  %s2 = inlined_call_operand.vmem [shape: f32[1,32], index: 2, kind: input, shape index: {}]
  %s3 = inlined_call_operand.vmem [shape: f32[1,32], index: 3, kind: input, shape index: {}]
  %s4 = inlined_call_operand.hbm [shape: f32[2,32], index: 4, kind: output, shape index: {}]
  %s5 = sld [smem:[#allocation0]]
  $region34: #{encoder_forward.17} parent=0
    _
  %s7 = ssub.s32 1, %s5
  %s8 = scalar_select 0, %s7, %s5
  $region1: #{encoder_forward.17} parent=0
    #allocation3 [shape = 'u8[1024]{0}', space=vmem, size = 0x400, scoped, tag = 'output window, operand 0, single buffered']
    #allocation4 [shape = 's32[1]{0}', space=sflag, size = 0x4, scoped, tag = 'scoped memory for encoder_forward.17']
    %9 = vsyncpa [#allocation4], 0
    // Predicated region
    $region2: #{encoder_forward.17} parent=1 // pred_check
      _
    $region3: #{encoder_forward.17} parent=1 // pred_check_branch
      %11 = sbr.rel (0) target = $region5
    $region4: #{encoder_forward.17} parent=1 // pred_region
      _
    $region5: #{encoder_forward.17} parent=1 // pred_fallthru
      _
    // Predicated region
    $region6: #{encoder_forward.17} parent=1 // pred_check
      _
    $region7: #{encoder_forward.17} parent=1 // pred_check_branch
      %13 = sbr.rel (0) target = $region9
    $region8: #{encoder_forward.17} parent=1 // pred_region
      _
    $region9: #{encoder_forward.17} parent=1 // pred_fallthru
      _
    // Predicated region
    $region10: #{encoder_forward.17} parent=1 // pred_check
      _
    $region11: #{encoder_forward.17} parent=1 // pred_check_branch
      %15 = sbr.rel (0) target = $region13
    $region12: #{encoder_forward.17} parent=1 // pred_region
      _
    $region13: #{encoder_forward.17} parent=1 // pred_fallthru
      _
    // Predicated region
    $region14: #{encoder_forward.17} parent=1 // pred_check
      _
    $region15: #{encoder_forward.17} parent=1 // pred_check_branch
      %17 = sbr.rel (0) target = $region17
    $region16: #{encoder_forward.17} parent=1 // pred_region
      _
    $region17: #{encoder_forward.17} parent=1 // pred_fallthru
      _
    %p19 = scmp.eq.s32.totalorder 0, 0
    // Predicated region
    $region18: #{encoder_forward.17} parent=1 // pred_check
      %p20 = pneg %p19
    $region19: #{encoder_forward.17} parent=1 // pred_check_branch
      %22 = sbr.rel (%p20) target = $region21
    $region20: #{encoder_forward.17} parent=1 // pred_region
      %vm23 = vcmask 254976
      %24 = vst.msk [vmem:[#allocation2] sm:$0x3] %vm23, 0.0
    $region21: #{encoder_forward.17} parent=1 // pred_fallthru
      _
    %v25 = vld [vmem:[#allocation2] sm:$0x3]
    %v26 = vld [vmem:[%s0] sm:$0x1]
    %v27 = vld [vmem:[%s1] sm:$0xf]
    %v28 = vld [vmem:[%s1 + $0x4] sm:$0xf]
    %v29 = vld [vmem:[%s1 + $0x8] sm:$0xf]
    %v30 = vld [vmem:[%s1 + $0xc] sm:$0xf]
    %v35 = vunpack.c.l.b16 %v27
    %v36 = vunpack.c.l.b16 %v28
    %v37 = vunpack.c.l.b16 %v29
    %v38 = vunpack.c.l.b16 %v30
    %v39 = vpack.c.b16 %v36, %v35
    %v40 = vpack.c.b16 %v38, %v37
    %vm43 = vcmask 261120
    %v45 = vsel %vm43, %v26, 0
    %47 = vmatprep.subr.bf16.mxu0 0
    %48 = vmatpush1.bf16.msra.mxu0 0
    %49 = vmatprep.subr.bf16.mxu0 0
    %50 = vmatpush1.bf16.msra.mxu0 0
    %51 = vmatprep.subr.bf16.mxu0 0
    %52 = vmatpush1.bf16.msra.mxu0 0
    %53 = vmatprep.subr.bf16.mxu0 0
    %54 = vmatpush1.bf16.msra.mxu0 0
    %55 = vmatprep.subr.bf16.mxu0 0
    %56 = vmatpush1.bf16.msra.mxu0 0
    %57 = vmatprep.subr.bf16.mxu0 0
    %58 = vmatpush1.bf16.msra.mxu0 0
    %59 = vmatprep.subr.bf16.mxu0 0
    %60 = vmatpush1.bf16.msra.mxu0 %v40
    %61 = vmatprep.subr.bf16.mxu0 0
    %62 = vmatpush1.bf16.msra.mxu0 %v39
    %63 = vmatprep.subr.bf16.mxu0 0
    %64 = vmatpush2.bf16.msra.mxu0 0
    %65 = vmatprep.subr.bf16.mxu0 0
    %66 = vmatpush2.bf16.msra.mxu0 0
    %67 = vmatprep.subr.bf16.mxu0 0
    %68 = vmatpush2.bf16.msra.mxu0 0
    %69 = vmatprep.subr.bf16.mxu0 0
    %70 = vmatpush2.bf16.msra.mxu0 0
    %71 = vmatprep.subr.bf16.mxu0 0
    %72 = vmatpush2.bf16.msra.mxu0 0
    %73 = vmatprep.subr.bf16.mxu0 0
    %74 = vmatpush2.bf16.msra.mxu0 0
    %75 = vmatprep.subr.bf16.mxu0 0
    %76 = vmatpush2.bf16.msra.mxu0 0
    %77 = vmatprep.subr.bf16.mxu0 0
    %78 = vmatpush2.bf16.msra.mxu0 0
    %79 = vmatprep.mubr.bf16.mxu0 0
    %80 = vmatmul.mubr.bf16.gmra.mxu0 %v45
    %v81 = vpop.f32.mrf.mxu0
    %v82 = vadd.f32 0.0, %v81
    %v83 = vpop.f32.mrf.mxu0
    %v84 = vpop.f32.mrf.mxu0
    %v85 = vpop.f32.mrf.mxu0
    %86 = vdwg.mxu0
    %v87 = vadd.f32 %v25, %v82
    %vm88 = vcmask 254976
    %89 = vst.msk [vmem:[#allocation2] sm:$0x3] %vm88, %v87
    // Predicated region
    $region22: #{encoder_forward.17} parent=1 // pred_check
      %p90 = pneg %p19
    $region23: #{encoder_forward.17} parent=1 // pred_check_branch
      %92 = sbr.rel (%p90) target = $region25
    $region24: #{encoder_forward.17} parent=1 // pred_region
      %v93 = vld [vmem:[#allocation2] sm:$0x3]
      %v94 = vsel %vm88, %v93, 0.0
      %v95 = vrot.slane %v94, 4
      %v96 = vadd.f32 %v94, %v95
      %v97 = vrot.slane %v96, 2
      %v98 = vadd.f32 %v96, %v97
      %v99 = vrot.slane %v98, 1
      %v100 = vadd.f32 %v98, %v99
      %v101 = vrcp.pop 2.0
      %v102 = vmul.f32 %v100, %v101
      %v103 = vmul.f32 %v93, %v93
      %v104 = vsel %vm88, %v103, 0.0
      %v105 = vrot.slane %v104, 4
      %v106 = vadd.f32 %v104, %v105
      %v107 = vrot.slane %v106, 2
      %v108 = vadd.f32 %v106, %v107
      %v109 = vrot.slane %v108, 1
      %v110 = vadd.f32 %v108, %v109
      %v111 = vmul.f32 %v110, %v101
      %v112 = vmul.f32 %v102, %v102
      %v113 = vsub.f32 %v111, %v112
      %v114 = vmax.f32 %v113, 0.0
      %v115 = vsub.f32 %v93, %v102
      %v116 = vadd.f32 %v114, 1e-05
      %v117 = vrsqrt.pop %v116
      %v118 = vmul.f32 %v115, %v117
      %v119 = vld [vmem:[%s2] sm:$0x1]
      %v121 = vlaneseq
      %v122 = vshrl.u32 %v121, 7
      %v123 = vsub.s32 0, %v122
      %v124 = vrot.slane %v119, %v123
      %v126 = vmul.f32 %v118, %v124
      %v127 = vld [vmem:[%s3] sm:$0x1]
      %v129 = vlaneseq
      %v130 = vshrl.u32 %v129, 7
      %v131 = vsub.s32 0, %v130
      %v132 = vrot.slane %v127, %v131
      %v134 = vadd.f32 %v126, %v132
      %v135 = vtanh.pop %v134
      %136 = vst.msk [vmem:[#allocation3] sm:$0x3] %vm88, %v135
    $region25: #{encoder_forward.17} parent=1 // pred_fallthru
      _
    // Predicated region
    $region26: #{encoder_forward.17} parent=1 // pred_check
      _
    $region27: #{encoder_forward.17} parent=1 // pred_check_branch
      %138 = sbr.rel (0) target = $region29
    $region28: #{encoder_forward.17} parent=1 // pred_region
      %s140 = ssub.s32 32, 32
      %141 = vsyncadd [#allocation4], %s140
      %s143 = sshll.u32 [#allocation3], 4
      %s144 = int_to_ptr.vmem [resolvable:$true] %s143
      %146 = dma.vmem_to_hbm [thread:$0]  %s144, 32, %s4, [#allocation4]
    $region29: #{encoder_forward.17} parent=1 // pred_fallthru
      _
    // Predicated region
    $region30: #{encoder_forward.17} parent=1 // pred_check
      _
    $region31: #{encoder_forward.17} parent=1 // pred_check_branch
      %148 = sbr.rel (0) target = $region33
    $region32: #{encoder_forward.17} parent=1 // pred_region
      %149 = dma.done [#allocation4], 32
    $region33: #{encoder_forward.17} parent=1 // pred_fallthru
      _
    %150 = vsyncpa [#allocation4], 1

</llo_original>
